<compile_context>
chip_gen: v7x
topology: tpu7x:2x2x1
jax: 0.10.0
libtpu: 0.0.40
codegen_flags: <defaults>
</compile_context>

<pallas_src>
import functools

import jax
import jax.numpy as jnp
from jax.experimental import pallas as pl
from jax.experimental.pallas import tpu as pltpu


# ----------------------------------------------------------------------------
# Fused Pallas kernel
# ----------------------------------------------------------------------------
def _lstm_cell(px, h, c, whh_bf16, hidden):
    """One LSTM step.

    px:  (B, 4H) f32  pre-activation from the input path (x @ W_ih + bias)
    h,c: (B, H)  f32  previous hidden / cell state
    whh: (H, 4H) bf16 hidden->gates weights (PyTorch gate order i, f, g, o)
    """
    H = hidden
    gates = px + jnp.dot(h.astype(jnp.bfloat16), whh_bf16,
                         preferred_element_type=jnp.float32)      # (B, 4H) f32
    # Full-vreg transcendentals on the EUP, then lane slices per gate.
    sg = jax.nn.sigmoid(gates)
    tg = jnp.tanh(gates)
    i = sg[:, 0 * H:1 * H]
    f = sg[:, 1 * H:2 * H]
    g = tg[:, 2 * H:3 * H]
    o = sg[:, 3 * H:4 * H]
    c_new = f * c + i * g
    h_new = o * jnp.tanh(c_new)
    return h_new, c_new


def _birnn_fused_kernel(x_ref,        # (T_total, B, D)  f32, time-major
                        t_wih_ref,    # (2, D, 4H) bf16  title [fwd, bwd] W_ih
                        t_whh_ref,    # (2, H, 4H) bf16  title W_hh
                        t_b_ref,      # (2, 1, 4H) f32   title bias (b_ih+b_hh)
                        b_wih_ref,    # (2, D, 4H) bf16  body W_ih
                        b_whh_ref,    # (2, H, 4H) bf16  body W_hh
                        b_b_ref,      # (2, 1, 4H) f32   body bias
                        wd_ref,       # (4H, CH)   f32   decoder weight
                        bd_ref,       # (1, CH)    f32   decoder bias
                        wc_ref,       # (CH, NC)   f32   classifier weight
                        bc_ref,       # (1, NC)    f32   classifier bias
                        out_ref,      # (B, NC)    f32   softmax probabilities
                        *, title_len, body_len, hidden, conditional):
    H = hidden
    B = x_ref.shape[1]
    xb = x_ref[...].astype(jnp.bfloat16)   # single cast of the whole input

    def run_bidir(t0, T, wih_ref, whh_ref, b_ref, h0f, c0f, h0b, c0b):
        # Hoisted weight loads and bias broadcasts (outside the time loop).
        wih_f = wih_ref[0]
        wih_b = wih_ref[1]
        whh_f = whh_ref[0]
        whh_b = whh_ref[1]
        bias_f = jnp.broadcast_to(b_ref[0], (B, 4 * H))
        bias_b = jnp.broadcast_to(b_ref[1], (B, 4 * H))

        # Phase 1: input projections for every step (independent of the
        # recurrence -> off the serial critical path).
        px_f = [jnp.dot(xb[t0 + t], wih_f,
                        preferred_element_type=jnp.float32) + bias_f
                for t in range(T)]
        px_b = [jnp.dot(xb[t0 + t], wih_b,
                        preferred_element_type=jnp.float32) + bias_b
                for t in range(T)]

        # Phase 2: both recurrences, fully unrolled (static T). The backward
        # direction processes original time T-1-s at step s (no reversal copy).
        hf, cf, hb, cb = h0f, c0f, h0b, c0b
        h_bwd_at_last_time = None
        for s in range(T):
            hf, cf = _lstm_cell(px_f[s], hf, cf, whh_f, H)
            hb, cb = _lstm_cell(px_b[T - 1 - s], hb, cb, whh_b, H)
            if s == 0:
                # bwd hidden at the original last time index (== out[:, -1, bwd])
                h_bwd_at_last_time = hb
        return hf, cf, hb, cb, h_bwd_at_last_time

    zeros = jnp.zeros((B, H), jnp.float32)

    # ---- title bidirectional LSTM ----
    t_hf, t_cf, t_hb, t_cb, t_hb_last = run_bidir(
        0, title_len, t_wih_ref, t_whh_ref, t_b_ref, zeros, zeros, zeros, zeros)

    # ---- body bidirectional LSTM (conditionally init from title final states) ----
    if conditional:
        h0f, c0f, h0b, c0b = t_hf, t_cf, t_hb, t_cb
    else:
        h0f = c0f = h0b = c0b = zeros
    b_hf, _, _, _, b_hb_last = run_bidir(
        title_len, body_len, b_wih_ref, b_whh_ref, b_b_ref, h0f, c0f, h0b, c0b)

    # ---- concat last outputs -> decoder -> classifier -> softmax ----
    # Order matches PyTorch: [title_fwd, title_bwd, body_fwd, body_bwd].
    feat = jnp.concatenate([t_hf, t_hb_last, b_hf, b_hb_last], axis=-1)  # (B, 4H)
    hcls = (jnp.dot(feat, wd_ref[...], preferred_element_type=jnp.float32)
            + bd_ref[...])
    # TODO(synk): nn.Dropout is stochastic at train time; treated as identity (eval).
    logits = (jnp.dot(hcls, wc_ref[...], preferred_element_type=jnp.float32)
              + bc_ref[...])
    m = jnp.max(logits, axis=-1, keepdims=True)
    e = jnp.exp(logits - m)
    out_ref[...] = e / jnp.sum(e, axis=-1, keepdims=True)


# ----------------------------------------------------------------------------
# Wrapper: one pallas_call for the whole forward
# ----------------------------------------------------------------------------
_VMEM = pl.BlockSpec(memory_space=pltpu.MemorySpace.VMEM)


def birnn_forward(x, params, *, title_len, body_len, conditional=True):
    B, T_total, _ = x.shape
    assert T_total == title_len + body_len
    H = params["nhidden"]
    nclass = params["cls_w"].shape[-1]

    # Single batch-first -> time-major transpose (reversal and the title/body
    # split happen inside the kernel, so no [::-1] / slice copies are made).
    x_tm = jnp.transpose(x, (1, 0, 2))

    kernel = functools.partial(
        _birnn_fused_kernel,
        title_len=title_len, body_len=body_len, hidden=H,
        conditional=conditional)

    return pl.pallas_call(
        kernel,
        out_shape=jax.ShapeDtypeStruct((B, nclass), jnp.float32),
        in_specs=[_VMEM] * 11,
        out_specs=_VMEM,
    )(x_tm,
      params["title_wih"], params["title_whh"], params["title_b"],
      params["body_wih"], params["body_whh"], params["body_b"],
      params["decoder_w"], params["decoder_b"],
      params["cls_w"], params["cls_b"])


# ----------------------------------------------------------------------------
# Deterministic parameter init (shapes follow the PyTorch module __init__)
# ----------------------------------------------------------------------------
def _init_lstm_bidir(key, D, H):
    def one_dir(k):
        k1, k2, k3, k4 = jax.random.split(k, 4)
        bound = 1.0 / float(H) ** 0.5
        w_ih = jax.random.uniform(k1, (D, 4 * H), jnp.float32, -bound, bound)
        w_hh = jax.random.uniform(k2, (H, 4 * H), jnp.float32, -bound, bound)
        b = (jax.random.uniform(k3, (1, 4 * H), jnp.float32, -bound, bound)
             + jax.random.uniform(k4, (1, 4 * H), jnp.float32, -bound, bound))
        return w_ih, w_hh, b

    kf, kb = jax.random.split(key)
    wf, whf, bf = one_dir(kf)
    wb, whb, bb = one_dir(kb)
    wih = jnp.stack([wf, wb]).astype(jnp.bfloat16)     # (2, D, 4H) bf16
    whh = jnp.stack([whf, whb]).astype(jnp.bfloat16)   # (2, H, 4H) bf16
    bias = jnp.stack([bf, bb])                          # (2, 1, 4H) f32
    return wih, whh, bias


def init_params(key, *, ninput, nhidden, classify_hidden, nclass):
    ks = jax.random.split(key, 6)
    chn = 2  # bidirectional
    bound_d = 1.0 / float((nhidden + nhidden) * chn) ** 0.5
    bound_c = 1.0 / float(classify_hidden) ** 0.5
    t_wih, t_whh, t_b = _init_lstm_bidir(ks[0], ninput, nhidden)
    b_wih, b_whh, b_b = _init_lstm_bidir(ks[1], ninput, nhidden)
    return {
        "nhidden": nhidden,
        "title_wih": t_wih, "title_whh": t_whh, "title_b": t_b,
        "body_wih": b_wih, "body_whh": b_whh, "body_b": b_b,
        "decoder_w": jax.random.uniform(
            ks[2], ((nhidden + nhidden) * chn, classify_hidden),
            jnp.float32, -bound_d, bound_d),
        "decoder_b": jax.random.uniform(
            ks[3], (1, classify_hidden), jnp.float32, -bound_d, bound_d),
        "cls_w": jax.random.uniform(
            ks[4], (classify_hidden, nclass), jnp.float32, -bound_c, bound_c),
        "cls_b": jax.random.uniform(
            ks[5], (1, nclass), jnp.float32, -bound_c, bound_c),
    }


# ----------------------------------------------------------------------------
if __name__ == "__main__":
    B = 2
    NINPUT = 16          # titleninput == bodyninput (single input tensor x)
    NHIDDEN = 32
    TITLE_LEN = 8
    BODY_LEN = 8
    CLASSIFY_HIDDEN = 32
    NCLASS = 4

    root = jax.random.PRNGKey(0)
    kx, kp = jax.random.split(root)
    x = jax.random.normal(kx, (B, TITLE_LEN + BODY_LEN, NINPUT), jnp.float32)
    params = init_params(kp, ninput=NINPUT, nhidden=NHIDDEN,
                         classify_hidden=CLASSIFY_HIDDEN, nclass=NCLASS)

    probs = birnn_forward(x, params, title_len=TITLE_LEN, body_len=BODY_LEN,
                          conditional=True)
    probs = jax.block_until_ready(probs)

    assert probs.shape == (B, NCLASS)
    assert bool(jnp.all(jnp.isfinite(probs)))
    # rows of a softmax sum to 1
    assert bool(jnp.allclose(jnp.sum(probs, axis=-1), 1.0, atol=1e-5))
    print("KERNEL_OK")
</pallas_src>

<mosaic_0001>
module attributes {stable_mosaic.version = 11 : i64} {
  func.func @_birnn_fused_kernel(%arg0: memref<16x2x16xf32, #tpu.memory_space<vmem>>, %arg1: memref<2x16x128xbf16, #tpu.memory_space<vmem>>, %arg2: memref<2x32x128xbf16, #tpu.memory_space<vmem>>, %arg3: memref<2x1x128xf32, #tpu.memory_space<vmem>>, %arg4: memref<2x16x128xbf16, #tpu.memory_space<vmem>>, %arg5: memref<2x32x128xbf16, #tpu.memory_space<vmem>>, %arg6: memref<2x1x128xf32, #tpu.memory_space<vmem>>, %arg7: memref<128x32xf32, #tpu.memory_space<vmem>>, %arg8: memref<1x32xf32, #tpu.memory_space<vmem>>, %arg9: memref<32x4xf32, #tpu.memory_space<vmem>>, %arg10: memref<1x4xf32, #tpu.memory_space<vmem>>, %arg11: memref<2x4xf32, #tpu.memory_space<vmem>>) attributes {dimension_semantics = [], scalar_prefetch = 0 : i64, scratch_operands = 0 : i64, tpu.core_type = #tpu.core_type<tc>} {
    %c0 = arith.constant 0 : index
    %c0_0 = arith.constant 0 : index
    %c0_1 = arith.constant 0 : index
    %0 = vector.load %arg0[%c0, %c0_0, %c0_1] : memref<16x2x16xf32, #tpu.memory_space<vmem>>, vector<16x2x16xf32>
    %1 = arith.truncf %0 : vector<16x2x16xf32> to vector<16x2x16xbf16>
    %cst = arith.constant 0.000000e+00 : f32
    %2 = vector.broadcast %cst : f32 to vector<2x32xf32>
    %c0_2 = arith.constant 0 : index
    %c0_3 = arith.constant 0 : index
    %c0_4 = arith.constant 0 : index
    %3 = vector.load %arg1[%c0_2, %c0_3, %c0_4] : memref<2x16x128xbf16, #tpu.memory_space<vmem>>, vector<1x16x128xbf16>
    %4 = vector.shape_cast %3 : vector<1x16x128xbf16> to vector<16x128xbf16>
    %c1 = arith.constant 1 : index
    %c0_5 = arith.constant 0 : index
    %c0_6 = arith.constant 0 : index
    %5 = vector.load %arg1[%c1, %c0_5, %c0_6] : memref<2x16x128xbf16, #tpu.memory_space<vmem>>, vector<1x16x128xbf16>
    %6 = vector.shape_cast %5 : vector<1x16x128xbf16> to vector<16x128xbf16>
    %c0_7 = arith.constant 0 : index
    %c0_8 = arith.constant 0 : index
    %c0_9 = arith.constant 0 : index
    %7 = vector.load %arg2[%c0_7, %c0_8, %c0_9] : memref<2x32x128xbf16, #tpu.memory_space<vmem>>, vector<1x32x128xbf16>
    %8 = vector.shape_cast %7 : vector<1x32x128xbf16> to vector<32x128xbf16>
    %c1_10 = arith.constant 1 : index
    %c0_11 = arith.constant 0 : index
    %c0_12 = arith.constant 0 : index
    %9 = vector.load %arg2[%c1_10, %c0_11, %c0_12] : memref<2x32x128xbf16, #tpu.memory_space<vmem>>, vector<1x32x128xbf16>
    %10 = vector.shape_cast %9 : vector<1x32x128xbf16> to vector<32x128xbf16>
    %c0_13 = arith.constant 0 : index
    %c0_14 = arith.constant 0 : index
    %c0_15 = arith.constant 0 : index
    %11 = vector.load %arg3[%c0_13, %c0_14, %c0_15] : memref<2x1x128xf32, #tpu.memory_space<vmem>>, vector<1x1x128xf32>
    %12 = vector.shape_cast %11 : vector<1x1x128xf32> to vector<1x128xf32>
    %13 = vector.shape_cast %12 : vector<1x128xf32> to vector<1x128xf32>
    %14 = vector.broadcast %13 : vector<1x128xf32> to vector<2x128xf32>
    %c1_16 = arith.constant 1 : index
    %c0_17 = arith.constant 0 : index
    %c0_18 = arith.constant 0 : index
    %15 = vector.load %arg3[%c1_16, %c0_17, %c0_18] : memref<2x1x128xf32, #tpu.memory_space<vmem>>, vector<1x1x128xf32>
    %16 = vector.shape_cast %15 : vector<1x1x128xf32> to vector<1x128xf32>
    %17 = vector.shape_cast %16 : vector<1x128xf32> to vector<1x128xf32>
    %18 = vector.broadcast %17 : vector<1x128xf32> to vector<2x128xf32>
    %19 = vector.extract_strided_slice %1 {offsets = [0, 0, 0], sizes = [1, 2, 16], strides = [1, 1, 1]} : vector<16x2x16xbf16> to vector<1x2x16xbf16>
    %20 = vector.shape_cast %19 : vector<1x2x16xbf16> to vector<2x16xbf16>
    %cst_19 = arith.constant dense<0.000000e+00> : vector<2x128xf32>
    %21 = tpu.matmul %20, %4, %cst_19 {dimension_numbers = #tpu.dot_dimension_numbers<[1], [0], [0], [1], [0, 0, 1, 1], [], []>} : vector<2x16xbf16>, vector<16x128xbf16>, vector<2x128xf32> -> vector<2x128xf32>
    %22 = arith.addf %21, %14 : vector<2x128xf32>
    %23 = vector.extract_strided_slice %1 {offsets = [1, 0, 0], sizes = [1, 2, 16], strides = [1, 1, 1]} : vector<16x2x16xbf16> to vector<1x2x16xbf16>
    %24 = vector.shape_cast %23 : vector<1x2x16xbf16> to vector<2x16xbf16>
    %cst_20 = arith.constant dense<0.000000e+00> : vector<2x128xf32>
    %25 = tpu.matmul %24, %4, %cst_20 {dimension_numbers = #tpu.dot_dimension_numbers<[1], [0], [0], [1], [0, 0, 1, 1], [], []>} : vector<2x16xbf16>, vector<16x128xbf16>, vector<2x128xf32> -> vector<2x128xf32>
    %26 = arith.addf %25, %14 : vector<2x128xf32>
    %27 = vector.extract_strided_slice %1 {offsets = [2, 0, 0], sizes = [1, 2, 16], strides = [1, 1, 1]} : vector<16x2x16xbf16> to vector<1x2x16xbf16>
    %28 = vector.shape_cast %27 : vector<1x2x16xbf16> to vector<2x16xbf16>
    %cst_21 = arith.constant dense<0.000000e+00> : vector<2x128xf32>
    %29 = tpu.matmul %28, %4, %cst_21 {dimension_numbers = #tpu.dot_dimension_numbers<[1], [0], [0], [1], [0, 0, 1, 1], [], []>} : vector<2x16xbf16>, vector<16x128xbf16>, vector<2x128xf32> -> vector<2x128xf32>
    %30 = arith.addf %29, %14 : vector<2x128xf32>
    %31 = vector.extract_strided_slice %1 {offsets = [3, 0, 0], sizes = [1, 2, 16], strides = [1, 1, 1]} : vector<16x2x16xbf16> to vector<1x2x16xbf16>
    %32 = vector.shape_cast %31 : vector<1x2x16xbf16> to vector<2x16xbf16>
    %cst_22 = arith.constant dense<0.000000e+00> : vector<2x128xf32>
    %33 = tpu.matmul %32, %4, %cst_22 {dimension_numbers = #tpu.dot_dimension_numbers<[1], [0], [0], [1], [0, 0, 1, 1], [], []>} : vector<2x16xbf16>, vector<16x128xbf16>, vector<2x128xf32> -> vector<2x128xf32>
    %34 = arith.addf %33, %14 : vector<2x128xf32>
    %35 = vector.extract_strided_slice %1 {offsets = [4, 0, 0], sizes = [1, 2, 16], strides = [1, 1, 1]} : vector<16x2x16xbf16> to vector<1x2x16xbf16>
    %36 = vector.shape_cast %35 : vector<1x2x16xbf16> to vector<2x16xbf16>
    %cst_23 = arith.constant dense<0.000000e+00> : vector<2x128xf32>
    %37 = tpu.matmul %36, %4, %cst_23 {dimension_numbers = #tpu.dot_dimension_numbers<[1], [0], [0], [1], [0, 0, 1, 1], [], []>} : vector<2x16xbf16>, vector<16x128xbf16>, vector<2x128xf32> -> vector<2x128xf32>
    %38 = arith.addf %37, %14 : vector<2x128xf32>
    %39 = vector.extract_strided_slice %1 {offsets = [5, 0, 0], sizes = [1, 2, 16], strides = [1, 1, 1]} : vector<16x2x16xbf16> to vector<1x2x16xbf16>
    %40 = vector.shape_cast %39 : vector<1x2x16xbf16> to vector<2x16xbf16>
    %cst_24 = arith.constant dense<0.000000e+00> : vector<2x128xf32>
    %41 = tpu.matmul %40, %4, %cst_24 {dimension_numbers = #tpu.dot_dimension_numbers<[1], [0], [0], [1], [0, 0, 1, 1], [], []>} : vector<2x16xbf16>, vector<16x128xbf16>, vector<2x128xf32> -> vector<2x128xf32>
    %42 = arith.addf %41, %14 : vector<2x128xf32>
    %43 = vector.extract_strided_slice %1 {offsets = [6, 0, 0], sizes = [1, 2, 16], strides = [1, 1, 1]} : vector<16x2x16xbf16> to vector<1x2x16xbf16>
    %44 = vector.shape_cast %43 : vector<1x2x16xbf16> to vector<2x16xbf16>
    %cst_25 = arith.constant dense<0.000000e+00> : vector<2x128xf32>
    %45 = tpu.matmul %44, %4, %cst_25 {dimension_numbers = #tpu.dot_dimension_numbers<[1], [0], [0], [1], [0, 0, 1, 1], [], []>} : vector<2x16xbf16>, vector<16x128xbf16>, vector<2x128xf32> -> vector<2x128xf32>
    %46 = arith.addf %45, %14 : vector<2x128xf32>
    %47 = vector.extract_strided_slice %1 {offsets = [7, 0, 0], sizes = [1, 2, 16], strides = [1, 1, 1]} : vector<16x2x16xbf16> to vector<1x2x16xbf16>
    %48 = vector.shape_cast %47 : vector<1x2x16xbf16> to vector<2x16xbf16>
    %cst_26 = arith.constant dense<0.000000e+00> : vector<2x128xf32>
    %49 = tpu.matmul %48, %4, %cst_26 {dimension_numbers = #tpu.dot_dimension_numbers<[1], [0], [0], [1], [0, 0, 1, 1], [], []>} : vector<2x16xbf16>, vector<16x128xbf16>, vector<2x128xf32> -> vector<2x128xf32>
    %50 = arith.addf %49, %14 : vector<2x128xf32>
    %51 = vector.extract_strided_slice %1 {offsets = [0, 0, 0], sizes = [1, 2, 16], strides = [1, 1, 1]} : vector<16x2x16xbf16> to vector<1x2x16xbf16>
    %52 = vector.shape_cast %51 : vector<1x2x16xbf16> to vector<2x16xbf16>
    %cst_27 = arith.constant dense<0.000000e+00> : vector<2x128xf32>
    %53 = tpu.matmul %52, %6, %cst_27 {dimension_numbers = #tpu.dot_dimension_numbers<[1], [0], [0], [1], [0, 0, 1, 1], [], []>} : vector<2x16xbf16>, vector<16x128xbf16>, vector<2x128xf32> -> vector<2x128xf32>
    %54 = arith.addf %53, %18 : vector<2x128xf32>
    %55 = vector.extract_strided_slice %1 {offsets = [1, 0, 0], sizes = [1, 2, 16], strides = [1, 1, 1]} : vector<16x2x16xbf16> to vector<1x2x16xbf16>
    %56 = vector.shape_cast %55 : vector<1x2x16xbf16> to vector<2x16xbf16>
    %cst_28 = arith.constant dense<0.000000e+00> : vector<2x128xf32>
    %57 = tpu.matmul %56, %6, %cst_28 {dimension_numbers = #tpu.dot_dimension_numbers<[1], [0], [0], [1], [0, 0, 1, 1], [], []>} : vector<2x16xbf16>, vector<16x128xbf16>, vector<2x128xf32> -> vector<2x128xf32>
    %58 = arith.addf %57, %18 : vector<2x128xf32>
    %59 = vector.extract_strided_slice %1 {offsets = [2, 0, 0], sizes = [1, 2, 16], strides = [1, 1, 1]} : vector<16x2x16xbf16> to vector<1x2x16xbf16>
    %60 = vector.shape_cast %59 : vector<1x2x16xbf16> to vector<2x16xbf16>
    %cst_29 = arith.constant dense<0.000000e+00> : vector<2x128xf32>
    %61 = tpu.matmul %60, %6, %cst_29 {dimension_numbers = #tpu.dot_dimension_numbers<[1], [0], [0], [1], [0, 0, 1, 1], [], []>} : vector<2x16xbf16>, vector<16x128xbf16>, vector<2x128xf32> -> vector<2x128xf32>
    %62 = arith.addf %61, %18 : vector<2x128xf32>
    %63 = vector.extract_strided_slice %1 {offsets = [3, 0, 0], sizes = [1, 2, 16], strides = [1, 1, 1]} : vector<16x2x16xbf16> to vector<1x2x16xbf16>
    %64 = vector.shape_cast %63 : vector<1x2x16xbf16> to vector<2x16xbf16>
    %cst_30 = arith.constant dense<0.000000e+00> : vector<2x128xf32>
    %65 = tpu.matmul %64, %6, %cst_30 {dimension_numbers = #tpu.dot_dimension_numbers<[1], [0], [0], [1], [0, 0, 1, 1], [], []>} : vector<2x16xbf16>, vector<16x128xbf16>, vector<2x128xf32> -> vector<2x128xf32>
    %66 = arith.addf %65, %18 : vector<2x128xf32>
    %67 = vector.extract_strided_slice %1 {offsets = [4, 0, 0], sizes = [1, 2, 16], strides = [1, 1, 1]} : vector<16x2x16xbf16> to vector<1x2x16xbf16>
    %68 = vector.shape_cast %67 : vector<1x2x16xbf16> to vector<2x16xbf16>
    %cst_31 = arith.constant dense<0.000000e+00> : vector<2x128xf32>
    %69 = tpu.matmul %68, %6, %cst_31 {dimension_numbers = #tpu.dot_dimension_numbers<[1], [0], [0], [1], [0, 0, 1, 1], [], []>} : vector<2x16xbf16>, vector<16x128xbf16>, vector<2x128xf32> -> vector<2x128xf32>
    %70 = arith.addf %69, %18 : vector<2x128xf32>
    %71 = vector.extract_strided_slice %1 {offsets = [5, 0, 0], sizes = [1, 2, 16], strides = [1, 1, 1]} : vector<16x2x16xbf16> to vector<1x2x16xbf16>
    %72 = vector.shape_cast %71 : vector<1x2x16xbf16> to vector<2x16xbf16>
    %cst_32 = arith.constant dense<0.000000e+00> : vector<2x128xf32>
    %73 = tpu.matmul %72, %6, %cst_32 {dimension_numbers = #tpu.dot_dimension_numbers<[1], [0], [0], [1], [0, 0, 1, 1], [], []>} : vector<2x16xbf16>, vector<16x128xbf16>, vector<2x128xf32> -> vector<2x128xf32>
    %74 = arith.addf %73, %18 : vector<2x128xf32>
    %75 = vector.extract_strided_slice %1 {offsets = [6, 0, 0], sizes = [1, 2, 16], strides = [1, 1, 1]} : vector<16x2x16xbf16> to vector<1x2x16xbf16>
    %76 = vector.shape_cast %75 : vector<1x2x16xbf16> to vector<2x16xbf16>
    %cst_33 = arith.constant dense<0.000000e+00> : vector<2x128xf32>
    %77 = tpu.matmul %76, %6, %cst_33 {dimension_numbers = #tpu.dot_dimension_numbers<[1], [0], [0], [1], [0, 0, 1, 1], [], []>} : vector<2x16xbf16>, vector<16x128xbf16>, vector<2x128xf32> -> vector<2x128xf32>
    %78 = arith.addf %77, %18 : vector<2x128xf32>
    %79 = vector.extract_strided_slice %1 {offsets = [7, 0, 0], sizes = [1, 2, 16], strides = [1, 1, 1]} : vector<16x2x16xbf16> to vector<1x2x16xbf16>
    %80 = vector.shape_cast %79 : vector<1x2x16xbf16> to vector<2x16xbf16>
    %cst_34 = arith.constant dense<0.000000e+00> : vector<2x128xf32>
    %81 = tpu.matmul %80, %6, %cst_34 {dimension_numbers = #tpu.dot_dimension_numbers<[1], [0], [0], [1], [0, 0, 1, 1], [], []>} : vector<2x16xbf16>, vector<16x128xbf16>, vector<2x128xf32> -> vector<2x128xf32>
    %82 = arith.addf %81, %18 : vector<2x128xf32>
    %83 = arith.truncf %2 : vector<2x32xf32> to vector<2x32xbf16>
    %cst_35 = arith.constant dense<0.000000e+00> : vector<2x128xf32>
    %84 = tpu.matmul %83, %8, %cst_35 {dimension_numbers = #tpu.dot_dimension_numbers<[1], [0], [0], [1], [0, 0, 1, 1], [], []>} : vector<2x32xbf16>, vector<32x128xbf16>, vector<2x128xf32> -> vector<2x128xf32>
    %85 = arith.addf %22, %84 : vector<2x128xf32>
    %86 = arith.negf %85 : vector<2x128xf32>
    %87 = math.exp %86 : vector<2x128xf32>
    %cst_36 = arith.constant 1.000000e+00 : f32
    %88 = vector.broadcast %cst_36 : f32 to vector<2x128xf32>
    %89 = arith.addf %88, %87 : vector<2x128xf32>
    %90 = arith.divf %88, %89 : vector<2x128xf32>
    %91 = math.tanh %85 : vector<2x128xf32>
    %92 = vector.extract_strided_slice %90 {offsets = [0, 0], sizes = [2, 32], strides = [1, 1]} : vector<2x128xf32> to vector<2x32xf32>
    %93 = vector.extract_strided_slice %90 {offsets = [0, 32], sizes = [2, 32], strides = [1, 1]} : vector<2x128xf32> to vector<2x32xf32>
    %94 = vector.extract_strided_slice %91 {offsets = [0, 64], sizes = [2, 32], strides = [1, 1]} : vector<2x128xf32> to vector<2x32xf32>
    %95 = vector.extract_strided_slice %90 {offsets = [0, 96], sizes = [2, 32], strides = [1, 1]} : vector<2x128xf32> to vector<2x32xf32>
    %96 = arith.mulf %93, %2 : vector<2x32xf32>
    %97 = arith.mulf %92, %94 : vector<2x32xf32>
    %98 = arith.addf %96, %97 : vector<2x32xf32>
    %99 = math.tanh %98 : vector<2x32xf32>
    %100 = arith.mulf %95, %99 : vector<2x32xf32>
    %101 = arith.truncf %2 : vector<2x32xf32> to vector<2x32xbf16>
    %cst_37 = arith.constant dense<0.000000e+00> : vector<2x128xf32>
    %102 = tpu.matmul %101, %10, %cst_37 {dimension_numbers = #tpu.dot_dimension_numbers<[1], [0], [0], [1], [0, 0, 1, 1], [], []>} : vector<2x32xbf16>, vector<32x128xbf16>, vector<2x128xf32> -> vector<2x128xf32>
    %103 = arith.addf %82, %102 : vector<2x128xf32>
    %104 = arith.negf %103 : vector<2x128xf32>
    %105 = math.exp %104 : vector<2x128xf32>
    %cst_38 = arith.constant 1.000000e+00 : f32
    %106 = vector.broadcast %cst_38 : f32 to vector<2x128xf32>
    %107 = arith.addf %106, %105 : vector<2x128xf32>
    %108 = arith.divf %106, %107 : vector<2x128xf32>
    %109 = math.tanh %103 : vector<2x128xf32>
    %110 = vector.extract_strided_slice %108 {offsets = [0, 0], sizes = [2, 32], strides = [1, 1]} : vector<2x128xf32> to vector<2x32xf32>
    %111 = vector.extract_strided_slice %108 {offsets = [0, 32], sizes = [2, 32], strides = [1, 1]} : vector<2x128xf32> to vector<2x32xf32>
    %112 = vector.extract_strided_slice %109 {offsets = [0, 64], sizes = [2, 32], strides = [1, 1]} : vector<2x128xf32> to vector<2x32xf32>
    %113 = vector.extract_strided_slice %108 {offsets = [0, 96], sizes = [2, 32], strides = [1, 1]} : vector<2x128xf32> to vector<2x32xf32>
    %114 = arith.mulf %111, %2 : vector<2x32xf32>
    %115 = arith.mulf %110, %112 : vector<2x32xf32>
    %116 = arith.addf %114, %115 : vector<2x32xf32>
    %117 = math.tanh %116 : vector<2x32xf32>
    %118 = arith.mulf %113, %117 : vector<2x32xf32>
    %119 = arith.truncf %100 : vector<2x32xf32> to vector<2x32xbf16>
    %cst_39 = arith.constant dense<0.000000e+00> : vector<2x128xf32>
    %120 = tpu.matmul %119, %8, %cst_39 {dimension_numbers = #tpu.dot_dimension_numbers<[1], [0], [0], [1], [0, 0, 1, 1], [], []>} : vector<2x32xbf16>, vector<32x128xbf16>, vector<2x128xf32> -> vector<2x128xf32>
    %121 = arith.addf %26, %120 : vector<2x128xf32>
    %122 = arith.negf %121 : vector<2x128xf32>
    %123 = math.exp %122 : vector<2x128xf32>
    %cst_40 = arith.constant 1.000000e+00 : f32
    %124 = vector.broadcast %cst_40 : f32 to vector<2x128xf32>
    %125 = arith.addf %124, %123 : vector<2x128xf32>
    %126 = arith.divf %124, %125 : vector<2x128xf32>
    %127 = math.tanh %121 : vector<2x128xf32>
    %128 = vector.extract_strided_slice %126 {offsets = [0, 0], sizes = [2, 32], strides = [1, 1]} : vector<2x128xf32> to vector<2x32xf32>
    %129 = vector.extract_strided_slice %126 {offsets = [0, 32], sizes = [2, 32], strides = [1, 1]} : vector<2x128xf32> to vector<2x32xf32>
    %130 = vector.extract_strided_slice %127 {offsets = [0, 64], sizes = [2, 32], strides = [1, 1]} : vector<2x128xf32> to vector<2x32xf32>
    %131 = vector.extract_strided_slice %126 {offsets = [0, 96], sizes = [2, 32], strides = [1, 1]} : vector<2x128xf32> to vector<2x32xf32>
    %132 = arith.mulf %129, %98 : vector<2x32xf32>
    %133 = arith.mulf %128, %130 : vector<2x32xf32>
    %134 = arith.addf %132, %133 : vector<2x32xf32>
    %135 = math.tanh %134 : vector<2x32xf32>
    %136 = arith.mulf %131, %135 : vector<2x32xf32>
    %137 = arith.truncf %118 : vector<2x32xf32> to vector<2x32xbf16>
    %cst_41 = arith.constant dense<0.000000e+00> : vector<2x128xf32>
    %138 = tpu.matmul %137, %10, %cst_41 {dimension_numbers = #tpu.dot_dimension_numbers<[1], [0], [0], [1], [0, 0, 1, 1], [], []>} : vector<2x32xbf16>, vector<32x128xbf16>, vector<2x128xf32> -> vector<2x128xf32>
    %139 = arith.addf %78, %138 : vector<2x128xf32>
    %140 = arith.negf %139 : vector<2x128xf32>
    %141 = math.exp %140 : vector<2x128xf32>
    %cst_42 = arith.constant 1.000000e+00 : f32
    %142 = vector.broadcast %cst_42 : f32 to vector<2x128xf32>
    %143 = arith.addf %142, %141 : vector<2x128xf32>
    %144 = arith.divf %142, %143 : vector<2x128xf32>
    %145 = math.tanh %139 : vector<2x128xf32>
    %146 = vector.extract_strided_slice %144 {offsets = [0, 0], sizes = [2, 32], strides = [1, 1]} : vector<2x128xf32> to vector<2x32xf32>
    %147 = vector.extract_strided_slice %144 {offsets = [0, 32], sizes = [2, 32], strides = [1, 1]} : vector<2x128xf32> to vector<2x32xf32>
    %148 = vector.extract_strided_slice %145 {offsets = [0, 64], sizes = [2, 32], strides = [1, 1]} : vector<2x128xf32> to vector<2x32xf32>
    %149 = vector.extract_strided_slice %144 {offsets = [0, 96], sizes = [2, 32], strides = [1, 1]} : vector<2x128xf32> to vector<2x32xf32>
    %150 = arith.mulf %147, %116 : vector<2x32xf32>
    %151 = arith.mulf %146, %148 : vector<2x32xf32>
    %152 = arith.addf %150, %151 : vector<2x32xf32>
    %153 = math.tanh %152 : vector<2x32xf32>
    %154 = arith.mulf %149, %153 : vector<2x32xf32>
    %155 = arith.truncf %136 : vector<2x32xf32> to vector<2x32xbf16>
    %cst_43 = arith.constant dense<0.000000e+00> : vector<2x128xf32>
    %156 = tpu.matmul %155, %8, %cst_43 {dimension_numbers = #tpu.dot_dimension_numbers<[1], [0], [0], [1], [0, 0, 1, 1], [], []>} : vector<2x32xbf16>, vector<32x128xbf16>, vector<2x128xf32> -> vector<2x128xf32>
    %157 = arith.addf %30, %156 : vector<2x128xf32>
    %158 = arith.negf %157 : vector<2x128xf32>
    %159 = math.exp %158 : vector<2x128xf32>
    %cst_44 = arith.constant 1.000000e+00 : f32
    %160 = vector.broadcast %cst_44 : f32 to vector<2x128xf32>
    %161 = arith.addf %160, %159 : vector<2x128xf32>
    %162 = arith.divf %160, %161 : vector<2x128xf32>
    %163 = math.tanh %157 : vector<2x128xf32>
    %164 = vector.extract_strided_slice %162 {offsets = [0, 0], sizes = [2, 32], strides = [1, 1]} : vector<2x128xf32> to vector<2x32xf32>
    %165 = vector.extract_strided_slice %162 {offsets = [0, 32], sizes = [2, 32], strides = [1, 1]} : vector<2x128xf32> to vector<2x32xf32>
    %166 = vector.extract_strided_slice %163 {offsets = [0, 64], sizes = [2, 32], strides = [1, 1]} : vector<2x128xf32> to vector<2x32xf32>
    %167 = vector.extract_strided_slice %162 {offsets = [0, 96], sizes = [2, 32], strides = [1, 1]} : vector<2x128xf32> to vector<2x32xf32>
    %168 = arith.mulf %165, %134 : vector<2x32xf32>
    %169 = arith.mulf %164, %166 : vector<2x32xf32>
    %170 = arith.addf %168, %169 : vector<2x32xf32>
    %171 = math.tanh %170 : vector<2x32xf32>
    %172 = arith.mulf %167, %171 : vector<2x32xf32>
    %173 = arith.truncf %154 : vector<2x32xf32> to vector<2x32xbf16>
    %cst_45 = arith.constant dense<0.000000e+00> : vector<2x128xf32>
    %174 = tpu.matmul %173, %10, %cst_45 {dimension_numbers = #tpu.dot_dimension_numbers<[1], [0], [0], [1], [0, 0, 1, 1], [], []>} : vector<2x32xbf16>, vector<32x128xbf16>, vector<2x128xf32> -> vector<2x128xf32>
    %175 = arith.addf %74, %174 : vector<2x128xf32>
    %176 = arith.negf %175 : vector<2x128xf32>
    %177 = math.exp %176 : vector<2x128xf32>
    %cst_46 = arith.constant 1.000000e+00 : f32
    %178 = vector.broadcast %cst_46 : f32 to vector<2x128xf32>
    %179 = arith.addf %178, %177 : vector<2x128xf32>
    %180 = arith.divf %178, %179 : vector<2x128xf32>
    %181 = math.tanh %175 : vector<2x128xf32>
    %182 = vector.extract_strided_slice %180 {offsets = [0, 0], sizes = [2, 32], strides = [1, 1]} : vector<2x128xf32> to vector<2x32xf32>
    %183 = vector.extract_strided_slice %180 {offsets = [0, 32], sizes = [2, 32], strides = [1, 1]} : vector<2x128xf32> to vector<2x32xf32>
    %184 = vector.extract_strided_slice %181 {offsets = [0, 64], sizes = [2, 32], strides = [1, 1]} : vector<2x128xf32> to vector<2x32xf32>
    %185 = vector.extract_strided_slice %180 {offsets = [0, 96], sizes = [2, 32], strides = [1, 1]} : vector<2x128xf32> to vector<2x32xf32>
    %186 = arith.mulf %183, %152 : vector<2x32xf32>
    %187 = arith.mulf %182, %184 : vector<2x32xf32>
    %188 = arith.addf %186, %187 : vector<2x32xf32>
    %189 = math.tanh %188 : vector<2x32xf32>
    %190 = arith.mulf %185, %189 : vector<2x32xf32>
    %191 = arith.truncf %172 : vector<2x32xf32> to vector<2x32xbf16>
    %cst_47 = arith.constant dense<0.000000e+00> : vector<2x128xf32>
    %192 = tpu.matmul %191, %8, %cst_47 {dimension_numbers = #tpu.dot_dimension_numbers<[1], [0], [0], [1], [0, 0, 1, 1], [], []>} : vector<2x32xbf16>, vector<32x128xbf16>, vector<2x128xf32> -> vector<2x128xf32>
    %193 = arith.addf %34, %192 : vector<2x128xf32>
    %194 = arith.negf %193 : vector<2x128xf32>
    %195 = math.exp %194 : vector<2x128xf32>
    %cst_48 = arith.constant 1.000000e+00 : f32
    %196 = vector.broadcast %cst_48 : f32 to vector<2x128xf32>
    %197 = arith.addf %196, %195 : vector<2x128xf32>
    %198 = arith.divf %196, %197 : vector<2x128xf32>
    %199 = math.tanh %193 : vector<2x128xf32>
    %200 = vector.extract_strided_slice %198 {offsets = [0, 0], sizes = [2, 32], strides = [1, 1]} : vector<2x128xf32> to vector<2x32xf32>
    %201 = vector.extract_strided_slice %198 {offsets = [0, 32], sizes = [2, 32], strides = [1, 1]} : vector<2x128xf32> to vector<2x32xf32>
    %202 = vector.extract_strided_slice %199 {offsets = [0, 64], sizes = [2, 32], strides = [1, 1]} : vector<2x128xf32> to vector<2x32xf32>
    %203 = vector.extract_strided_slice %198 {offsets = [0, 96], sizes = [2, 32], strides = [1, 1]} : vector<2x128xf32> to vector<2x32xf32>
    %204 = arith.mulf %201, %170 : vector<2x32xf32>
    %205 = arith.mulf %200, %202 : vector<2x32xf32>
    %206 = arith.addf %204, %205 : vector<2x32xf32>
    %207 = math.tanh %206 : vector<2x32xf32>
    %208 = arith.mulf %203, %207 : vector<2x32xf32>
    %209 = arith.truncf %190 : vector<2x32xf32> to vector<2x32xbf16>
    %cst_49 = arith.constant dense<0.000000e+00> : vector<2x128xf32>
    %210 = tpu.matmul %209, %10, %cst_49 {dimension_numbers = #tpu.dot_dimension_numbers<[1], [0], [0], [1], [0, 0, 1, 1], [], []>} : vector<2x32xbf16>, vector<32x128xbf16>, vector<2x128xf32> -> vector<2x128xf32>
    %211 = arith.addf %70, %210 : vector<2x128xf32>
    %212 = arith.negf %211 : vector<2x128xf32>
    %213 = math.exp %212 : vector<2x128xf32>
    %cst_50 = arith.constant 1.000000e+00 : f32
    %214 = vector.broadcast %cst_50 : f32 to vector<2x128xf32>
    %215 = arith.addf %214, %213 : vector<2x128xf32>
    %216 = arith.divf %214, %215 : vector<2x128xf32>
    %217 = math.tanh %211 : vector<2x128xf32>
    %218 = vector.extract_strided_slice %216 {offsets = [0, 0], sizes = [2, 32], strides = [1, 1]} : vector<2x128xf32> to vector<2x32xf32>
    %219 = vector.extract_strided_slice %216 {offsets = [0, 32], sizes = [2, 32], strides = [1, 1]} : vector<2x128xf32> to vector<2x32xf32>
    %220 = vector.extract_strided_slice %217 {offsets = [0, 64], sizes = [2, 32], strides = [1, 1]} : vector<2x128xf32> to vector<2x32xf32>
    %221 = vector.extract_strided_slice %216 {offsets = [0, 96], sizes = [2, 32], strides = [1, 1]} : vector<2x128xf32> to vector<2x32xf32>
    %222 = arith.mulf %219, %188 : vector<2x32xf32>
    %223 = arith.mulf %218, %220 : vector<2x32xf32>
    %224 = arith.addf %222, %223 : vector<2x32xf32>
    %225 = math.tanh %224 : vector<2x32xf32>
    %226 = arith.mulf %221, %225 : vector<2x32xf32>
    %227 = arith.truncf %208 : vector<2x32xf32> to vector<2x32xbf16>
    %cst_51 = arith.constant dense<0.000000e+00> : vector<2x128xf32>
    %228 = tpu.matmul %227, %8, %cst_51 {dimension_numbers = #tpu.dot_dimension_numbers<[1], [0], [0], [1], [0, 0, 1, 1], [], []>} : vector<2x32xbf16>, vector<32x128xbf16>, vector<2x128xf32> -> vector<2x128xf32>
    %229 = arith.addf %38, %228 : vector<2x128xf32>
    %230 = arith.negf %229 : vector<2x128xf32>
    %231 = math.exp %230 : vector<2x128xf32>
    %cst_52 = arith.constant 1.000000e+00 : f32
    %232 = vector.broadcast %cst_52 : f32 to vector<2x128xf32>
    %233 = arith.addf %232, %231 : vector<2x128xf32>
    %234 = arith.divf %232, %233 : vector<2x128xf32>
    %235 = math.tanh %229 : vector<2x128xf32>
    %236 = vector.extract_strided_slice %234 {offsets = [0, 0], sizes = [2, 32], strides = [1, 1]} : vector<2x128xf32> to vector<2x32xf32>
    %237 = vector.extract_strided_slice %234 {offsets = [0, 32], sizes = [2, 32], strides = [1, 1]} : vector<2x128xf32> to vector<2x32xf32>
    %238 = vector.extract_strided_slice %235 {offsets = [0, 64], sizes = [2, 32], strides = [1, 1]} : vector<2x128xf32> to vector<2x32xf32>
    %239 = vector.extract_strided_slice %234 {offsets = [0, 96], sizes = [2, 32], strides = [1, 1]} : vector<2x128xf32> to vector<2x32xf32>
    %240 = arith.mulf %237, %206 : vector<2x32xf32>
    %241 = arith.mulf %236, %238 : vector<2x32xf32>
    %242 = arith.addf %240, %241 : vector<2x32xf32>
    %243 = math.tanh %242 : vector<2x32xf32>
    %244 = arith.mulf %239, %243 : vector<2x32xf32>
    %245 = arith.truncf %226 : vector<2x32xf32> to vector<2x32xbf16>
    %cst_53 = arith.constant dense<0.000000e+00> : vector<2x128xf32>
    %246 = tpu.matmul %245, %10, %cst_53 {dimension_numbers = #tpu.dot_dimension_numbers<[1], [0], [0], [1], [0, 0, 1, 1], [], []>} : vector<2x32xbf16>, vector<32x128xbf16>, vector<2x128xf32> -> vector<2x128xf32>
    %247 = arith.addf %66, %246 : vector<2x128xf32>
    %248 = arith.negf %247 : vector<2x128xf32>
    %249 = math.exp %248 : vector<2x128xf32>
    %cst_54 = arith.constant 1.000000e+00 : f32
    %250 = vector.broadcast %cst_54 : f32 to vector<2x128xf32>
    %251 = arith.addf %250, %249 : vector<2x128xf32>
    %252 = arith.divf %250, %251 : vector<2x128xf32>
    %253 = math.tanh %247 : vector<2x128xf32>
    %254 = vector.extract_strided_slice %252 {offsets = [0, 0], sizes = [2, 32], strides = [1, 1]} : vector<2x128xf32> to vector<2x32xf32>
    %255 = vector.extract_strided_slice %252 {offsets = [0, 32], sizes = [2, 32], strides = [1, 1]} : vector<2x128xf32> to vector<2x32xf32>
    %256 = vector.extract_strided_slice %253 {offsets = [0, 64], sizes = [2, 32], strides = [1, 1]} : vector<2x128xf32> to vector<2x32xf32>
    %257 = vector.extract_strided_slice %252 {offsets = [0, 96], sizes = [2, 32], strides = [1, 1]} : vector<2x128xf32> to vector<2x32xf32>
    %258 = arith.mulf %255, %224 : vector<2x32xf32>
    %259 = arith.mulf %254, %256 : vector<2x32xf32>
    %260 = arith.addf %258, %259 : vector<2x32xf32>
    %261 = math.tanh %260 : vector<2x32xf32>
    %262 = arith.mulf %257, %261 : vector<2x32xf32>
    %263 = arith.truncf %244 : vector<2x32xf32> to vector<2x32xbf16>
    %cst_55 = arith.constant dense<0.000000e+00> : vector<2x128xf32>
    %264 = tpu.matmul %263, %8, %cst_55 {dimension_numbers = #tpu.dot_dimension_numbers<[1], [0], [0], [1], [0, 0, 1, 1], [], []>} : vector<2x32xbf16>, vector<32x128xbf16>, vector<2x128xf32> -> vector<2x128xf32>
    %265 = arith.addf %42, %264 : vector<2x128xf32>
    %266 = arith.negf %265 : vector<2x128xf32>
    %267 = math.exp %266 : vector<2x128xf32>
    %cst_56 = arith.constant 1.000000e+00 : f32
    %268 = vector.broadcast %cst_56 : f32 to vector<2x128xf32>
    %269 = arith.addf %268, %267 : vector<2x128xf32>
    %270 = arith.divf %268, %269 : vector<2x128xf32>
    %271 = math.tanh %265 : vector<2x128xf32>
    %272 = vector.extract_strided_slice %270 {offsets = [0, 0], sizes = [2, 32], strides = [1, 1]} : vector<2x128xf32> to vector<2x32xf32>
    %273 = vector.extract_strided_slice %270 {offsets = [0, 32], sizes = [2, 32], strides = [1, 1]} : vector<2x128xf32> to vector<2x32xf32>
    %274 = vector.extract_strided_slice %271 {offsets = [0, 64], sizes = [2, 32], strides = [1, 1]} : vector<2x128xf32> to vector<2x32xf32>
    %275 = vector.extract_strided_slice %270 {offsets = [0, 96], sizes = [2, 32], strides = [1, 1]} : vector<2x128xf32> to vector<2x32xf32>
    %276 = arith.mulf %273, %242 : vector<2x32xf32>
    %277 = arith.mulf %272, %274 : vector<2x32xf32>
    %278 = arith.addf %276, %277 : vector<2x32xf32>
    %279 = math.tanh %278 : vector<2x32xf32>
    %280 = arith.mulf %275, %279 : vector<2x32xf32>
    %281 = arith.truncf %262 : vector<2x32xf32> to vector<2x32xbf16>
    %cst_57 = arith.constant dense<0.000000e+00> : vector<2x128xf32>
    %282 = tpu.matmul %281, %10, %cst_57 {dimension_numbers = #tpu.dot_dimension_numbers<[1], [0], [0], [1], [0, 0, 1, 1], [], []>} : vector<2x32xbf16>, vector<32x128xbf16>, vector<2x128xf32> -> vector<2x128xf32>
    %283 = arith.addf %62, %282 : vector<2x128xf32>
    %284 = arith.negf %283 : vector<2x128xf32>
    %285 = math.exp %284 : vector<2x128xf32>
    %cst_58 = arith.constant 1.000000e+00 : f32
    %286 = vector.broadcast %cst_58 : f32 to vector<2x128xf32>
    %287 = arith.addf %286, %285 : vector<2x128xf32>
    %288 = arith.divf %286, %287 : vector<2x128xf32>
    %289 = math.tanh %283 : vector<2x128xf32>
    %290 = vector.extract_strided_slice %288 {offsets = [0, 0], sizes = [2, 32], strides = [1, 1]} : vector<2x128xf32> to vector<2x32xf32>
    %291 = vector.extract_strided_slice %288 {offsets = [0, 32], sizes = [2, 32], strides = [1, 1]} : vector<2x128xf32> to vector<2x32xf32>
    %292 = vector.extract_strided_slice %289 {offsets = [0, 64], sizes = [2, 32], strides = [1, 1]} : vector<2x128xf32> to vector<2x32xf32>
    %293 = vector.extract_strided_slice %288 {offsets = [0, 96], sizes = [2, 32], strides = [1, 1]} : vector<2x128xf32> to vector<2x32xf32>
    %294 = arith.mulf %291, %260 : vector<2x32xf32>
    %295 = arith.mulf %290, %292 : vector<2x32xf32>
    %296 = arith.addf %294, %295 : vector<2x32xf32>
    %297 = math.tanh %296 : vector<2x32xf32>
    %298 = arith.mulf %293, %297 : vector<2x32xf32>
    %299 = arith.truncf %280 : vector<2x32xf32> to vector<2x32xbf16>
    %cst_59 = arith.constant dense<0.000000e+00> : vector<2x128xf32>
    %300 = tpu.matmul %299, %8, %cst_59 {dimension_numbers = #tpu.dot_dimension_numbers<[1], [0], [0], [1], [0, 0, 1, 1], [], []>} : vector<2x32xbf16>, vector<32x128xbf16>, vector<2x128xf32> -> vector<2x128xf32>
    %301 = arith.addf %46, %300 : vector<2x128xf32>
    %302 = arith.negf %301 : vector<2x128xf32>
    %303 = math.exp %302 : vector<2x128xf32>
    %cst_60 = arith.constant 1.000000e+00 : f32
    %304 = vector.broadcast %cst_60 : f32 to vector<2x128xf32>
    %305 = arith.addf %304, %303 : vector<2x128xf32>
    %306 = arith.divf %304, %305 : vector<2x128xf32>
    %307 = math.tanh %301 : vector<2x128xf32>
    %308 = vector.extract_strided_slice %306 {offsets = [0, 0], sizes = [2, 32], strides = [1, 1]} : vector<2x128xf32> to vector<2x32xf32>
    %309 = vector.extract_strided_slice %306 {offsets = [0, 32], sizes = [2, 32], strides = [1, 1]} : vector<2x128xf32> to vector<2x32xf32>
    %310 = vector.extract_strided_slice %307 {offsets = [0, 64], sizes = [2, 32], strides = [1, 1]} : vector<2x128xf32> to vector<2x32xf32>
    %311 = vector.extract_strided_slice %306 {offsets = [0, 96], sizes = [2, 32], strides = [1, 1]} : vector<2x128xf32> to vector<2x32xf32>
    %312 = arith.mulf %309, %278 : vector<2x32xf32>
    %313 = arith.mulf %308, %310 : vector<2x32xf32>
    %314 = arith.addf %312, %313 : vector<2x32xf32>
    %315 = math.tanh %314 : vector<2x32xf32>
    %316 = arith.mulf %311, %315 : vector<2x32xf32>
    %317 = arith.truncf %298 : vector<2x32xf32> to vector<2x32xbf16>
    %cst_61 = arith.constant dense<0.000000e+00> : vector<2x128xf32>
    %318 = tpu.matmul %317, %10, %cst_61 {dimension_numbers = #tpu.dot_dimension_numbers<[1], [0], [0], [1], [0, 0, 1, 1], [], []>} : vector<2x32xbf16>, vector<32x128xbf16>, vector<2x128xf32> -> vector<2x128xf32>
    %319 = arith.addf %58, %318 : vector<2x128xf32>
    %320 = arith.negf %319 : vector<2x128xf32>
    %321 = math.exp %320 : vector<2x128xf32>
    %cst_62 = arith.constant 1.000000e+00 : f32
    %322 = vector.broadcast %cst_62 : f32 to vector<2x128xf32>
    %323 = arith.addf %322, %321 : vector<2x128xf32>
    %324 = arith.divf %322, %323 : vector<2x128xf32>
    %325 = math.tanh %319 : vector<2x128xf32>
    %326 = vector.extract_strided_slice %324 {offsets = [0, 0], sizes = [2, 32], strides = [1, 1]} : vector<2x128xf32> to vector<2x32xf32>
    %327 = vector.extract_strided_slice %324 {offsets = [0, 32], sizes = [2, 32], strides = [1, 1]} : vector<2x128xf32> to vector<2x32xf32>
    %328 = vector.extract_strided_slice %325 {offsets = [0, 64], sizes = [2, 32], strides = [1, 1]} : vector<2x128xf32> to vector<2x32xf32>
    %329 = vector.extract_strided_slice %324 {offsets = [0, 96], sizes = [2, 32], strides = [1, 1]} : vector<2x128xf32> to vector<2x32xf32>
    %330 = arith.mulf %327, %296 : vector<2x32xf32>
    %331 = arith.mulf %326, %328 : vector<2x32xf32>
    %332 = arith.addf %330, %331 : vector<2x32xf32>
    %333 = math.tanh %332 : vector<2x32xf32>
    %334 = arith.mulf %329, %333 : vector<2x32xf32>
    %335 = arith.truncf %316 : vector<2x32xf32> to vector<2x32xbf16>
    %cst_63 = arith.constant dense<0.000000e+00> : vector<2x128xf32>
    %336 = tpu.matmul %335, %8, %cst_63 {dimension_numbers = #tpu.dot_dimension_numbers<[1], [0], [0], [1], [0, 0, 1, 1], [], []>} : vector<2x32xbf16>, vector<32x128xbf16>, vector<2x128xf32> -> vector<2x128xf32>
    %337 = arith.addf %50, %336 : vector<2x128xf32>
    %338 = arith.negf %337 : vector<2x128xf32>
    %339 = math.exp %338 : vector<2x128xf32>
    %cst_64 = arith.constant 1.000000e+00 : f32
    %340 = vector.broadcast %cst_64 : f32 to vector<2x128xf32>
    %341 = arith.addf %340, %339 : vector<2x128xf32>
    %342 = arith.divf %340, %341 : vector<2x128xf32>
    %343 = math.tanh %337 : vector<2x128xf32>
    %344 = vector.extract_strided_slice %342 {offsets = [0, 0], sizes = [2, 32], strides = [1, 1]} : vector<2x128xf32> to vector<2x32xf32>
    %345 = vector.extract_strided_slice %342 {offsets = [0, 32], sizes = [2, 32], strides = [1, 1]} : vector<2x128xf32> to vector<2x32xf32>
    %346 = vector.extract_strided_slice %343 {offsets = [0, 64], sizes = [2, 32], strides = [1, 1]} : vector<2x128xf32> to vector<2x32xf32>
    %347 = vector.extract_strided_slice %342 {offsets = [0, 96], sizes = [2, 32], strides = [1, 1]} : vector<2x128xf32> to vector<2x32xf32>
    %348 = arith.mulf %345, %314 : vector<2x32xf32>
    %349 = arith.mulf %344, %346 : vector<2x32xf32>
    %350 = arith.addf %348, %349 : vector<2x32xf32>
    %351 = math.tanh %350 : vector<2x32xf32>
    %352 = arith.mulf %347, %351 : vector<2x32xf32>
    %353 = arith.truncf %334 : vector<2x32xf32> to vector<2x32xbf16>
    %cst_65 = arith.constant dense<0.000000e+00> : vector<2x128xf32>
    %354 = tpu.matmul %353, %10, %cst_65 {dimension_numbers = #tpu.dot_dimension_numbers<[1], [0], [0], [1], [0, 0, 1, 1], [], []>} : vector<2x32xbf16>, vector<32x128xbf16>, vector<2x128xf32> -> vector<2x128xf32>
    %355 = arith.addf %54, %354 : vector<2x128xf32>
    %356 = arith.negf %355 : vector<2x128xf32>
    %357 = math.exp %356 : vector<2x128xf32>
    %cst_66 = arith.constant 1.000000e+00 : f32
    %358 = vector.broadcast %cst_66 : f32 to vector<2x128xf32>
    %359 = arith.addf %358, %357 : vector<2x128xf32>
    %360 = arith.divf %358, %359 : vector<2x128xf32>
    %361 = math.tanh %355 : vector<2x128xf32>
    %362 = vector.extract_strided_slice %360 {offsets = [0, 0], sizes = [2, 32], strides = [1, 1]} : vector<2x128xf32> to vector<2x32xf32>
    %363 = vector.extract_strided_slice %360 {offsets = [0, 32], sizes = [2, 32], strides = [1, 1]} : vector<2x128xf32> to vector<2x32xf32>
    %364 = vector.extract_strided_slice %361 {offsets = [0, 64], sizes = [2, 32], strides = [1, 1]} : vector<2x128xf32> to vector<2x32xf32>
    %365 = vector.extract_strided_slice %360 {offsets = [0, 96], sizes = [2, 32], strides = [1, 1]} : vector<2x128xf32> to vector<2x32xf32>
    %366 = arith.mulf %363, %332 : vector<2x32xf32>
    %367 = arith.mulf %362, %364 : vector<2x32xf32>
    %368 = arith.addf %366, %367 : vector<2x32xf32>
    %369 = math.tanh %368 : vector<2x32xf32>
    %370 = arith.mulf %365, %369 : vector<2x32xf32>
    %c0_67 = arith.constant 0 : index
    %c0_68 = arith.constant 0 : index
    %c0_69 = arith.constant 0 : index
    %371 = vector.load %arg4[%c0_67, %c0_68, %c0_69] : memref<2x16x128xbf16, #tpu.memory_space<vmem>>, vector<1x16x128xbf16>
    %372 = vector.shape_cast %371 : vector<1x16x128xbf16> to vector<16x128xbf16>
    %c1_70 = arith.constant 1 : index
    %c0_71 = arith.constant 0 : index
    %c0_72 = arith.constant 0 : index
    %373 = vector.load %arg4[%c1_70, %c0_71, %c0_72] : memref<2x16x128xbf16, #tpu.memory_space<vmem>>, vector<1x16x128xbf16>
    %374 = vector.shape_cast %373 : vector<1x16x128xbf16> to vector<16x128xbf16>
    %c0_73 = arith.constant 0 : index
    %c0_74 = arith.constant 0 : index
    %c0_75 = arith.constant 0 : index
    %375 = vector.load %arg5[%c0_73, %c0_74, %c0_75] : memref<2x32x128xbf16, #tpu.memory_space<vmem>>, vector<1x32x128xbf16>
    %376 = vector.shape_cast %375 : vector<1x32x128xbf16> to vector<32x128xbf16>
    %c1_76 = arith.constant 1 : index
    %c0_77 = arith.constant 0 : index
    %c0_78 = arith.constant 0 : index
    %377 = vector.load %arg5[%c1_76, %c0_77, %c0_78] : memref<2x32x128xbf16, #tpu.memory_space<vmem>>, vector<1x32x128xbf16>
    %378 = vector.shape_cast %377 : vector<1x32x128xbf16> to vector<32x128xbf16>
    %c0_79 = arith.constant 0 : index
    %c0_80 = arith.constant 0 : index
    %c0_81 = arith.constant 0 : index
    %379 = vector.load %arg6[%c0_79, %c0_80, %c0_81] : memref<2x1x128xf32, #tpu.memory_space<vmem>>, vector<1x1x128xf32>
    %380 = vector.shape_cast %379 : vector<1x1x128xf32> to vector<1x128xf32>
    %381 = vector.shape_cast %380 : vector<1x128xf32> to vector<1x128xf32>
    %382 = vector.broadcast %381 : vector<1x128xf32> to vector<2x128xf32>
    %c1_82 = arith.constant 1 : index
    %c0_83 = arith.constant 0 : index
    %c0_84 = arith.constant 0 : index
    %383 = vector.load %arg6[%c1_82, %c0_83, %c0_84] : memref<2x1x128xf32, #tpu.memory_space<vmem>>, vector<1x1x128xf32>
    %384 = vector.shape_cast %383 : vector<1x1x128xf32> to vector<1x128xf32>
    %385 = vector.shape_cast %384 : vector<1x128xf32> to vector<1x128xf32>
    %386 = vector.broadcast %385 : vector<1x128xf32> to vector<2x128xf32>
    %387 = vector.extract_strided_slice %1 {offsets = [8, 0, 0], sizes = [1, 2, 16], strides = [1, 1, 1]} : vector<16x2x16xbf16> to vector<1x2x16xbf16>
    %388 = vector.shape_cast %387 : vector<1x2x16xbf16> to vector<2x16xbf16>
    %cst_85 = arith.constant dense<0.000000e+00> : vector<2x128xf32>
    %389 = tpu.matmul %388, %372, %cst_85 {dimension_numbers = #tpu.dot_dimension_numbers<[1], [0], [0], [1], [0, 0, 1, 1], [], []>} : vector<2x16xbf16>, vector<16x128xbf16>, vector<2x128xf32> -> vector<2x128xf32>
    %390 = arith.addf %389, %382 : vector<2x128xf32>
    %391 = vector.extract_strided_slice %1 {offsets = [9, 0, 0], sizes = [1, 2, 16], strides = [1, 1, 1]} : vector<16x2x16xbf16> to vector<1x2x16xbf16>
    %392 = vector.shape_cast %391 : vector<1x2x16xbf16> to vector<2x16xbf16>
    %cst_86 = arith.constant dense<0.000000e+00> : vector<2x128xf32>
    %393 = tpu.matmul %392, %372, %cst_86 {dimension_numbers = #tpu.dot_dimension_numbers<[1], [0], [0], [1], [0, 0, 1, 1], [], []>} : vector<2x16xbf16>, vector<16x128xbf16>, vector<2x128xf32> -> vector<2x128xf32>
    %394 = arith.addf %393, %382 : vector<2x128xf32>
    %395 = vector.extract_strided_slice %1 {offsets = [10, 0, 0], sizes = [1, 2, 16], strides = [1, 1, 1]} : vector<16x2x16xbf16> to vector<1x2x16xbf16>
    %396 = vector.shape_cast %395 : vector<1x2x16xbf16> to vector<2x16xbf16>
    %cst_87 = arith.constant dense<0.000000e+00> : vector<2x128xf32>
    %397 = tpu.matmul %396, %372, %cst_87 {dimension_numbers = #tpu.dot_dimension_numbers<[1], [0], [0], [1], [0, 0, 1, 1], [], []>} : vector<2x16xbf16>, vector<16x128xbf16>, vector<2x128xf32> -> vector<2x128xf32>
    %398 = arith.addf %397, %382 : vector<2x128xf32>
    %399 = vector.extract_strided_slice %1 {offsets = [11, 0, 0], sizes = [1, 2, 16], strides = [1, 1, 1]} : vector<16x2x16xbf16> to vector<1x2x16xbf16>
    %400 = vector.shape_cast %399 : vector<1x2x16xbf16> to vector<2x16xbf16>
    %cst_88 = arith.constant dense<0.000000e+00> : vector<2x128xf32>
    %401 = tpu.matmul %400, %372, %cst_88 {dimension_numbers = #tpu.dot_dimension_numbers<[1], [0], [0], [1], [0, 0, 1, 1], [], []>} : vector<2x16xbf16>, vector<16x128xbf16>, vector<2x128xf32> -> vector<2x128xf32>
    %402 = arith.addf %401, %382 : vector<2x128xf32>
    %403 = vector.extract_strided_slice %1 {offsets = [12, 0, 0], sizes = [1, 2, 16], strides = [1, 1, 1]} : vector<16x2x16xbf16> to vector<1x2x16xbf16>
    %404 = vector.shape_cast %403 : vector<1x2x16xbf16> to vector<2x16xbf16>
    %cst_89 = arith.constant dense<0.000000e+00> : vector<2x128xf32>
    %405 = tpu.matmul %404, %372, %cst_89 {dimension_numbers = #tpu.dot_dimension_numbers<[1], [0], [0], [1], [0, 0, 1, 1], [], []>} : vector<2x16xbf16>, vector<16x128xbf16>, vector<2x128xf32> -> vector<2x128xf32>
    %406 = arith.addf %405, %382 : vector<2x128xf32>
    %407 = vector.extract_strided_slice %1 {offsets = [13, 0, 0], sizes = [1, 2, 16], strides = [1, 1, 1]} : vector<16x2x16xbf16> to vector<1x2x16xbf16>
    %408 = vector.shape_cast %407 : vector<1x2x16xbf16> to vector<2x16xbf16>
    %cst_90 = arith.constant dense<0.000000e+00> : vector<2x128xf32>
    %409 = tpu.matmul %408, %372, %cst_90 {dimension_numbers = #tpu.dot_dimension_numbers<[1], [0], [0], [1], [0, 0, 1, 1], [], []>} : vector<2x16xbf16>, vector<16x128xbf16>, vector<2x128xf32> -> vector<2x128xf32>
    %410 = arith.addf %409, %382 : vector<2x128xf32>
    %411 = vector.extract_strided_slice %1 {offsets = [14, 0, 0], sizes = [1, 2, 16], strides = [1, 1, 1]} : vector<16x2x16xbf16> to vector<1x2x16xbf16>
    %412 = vector.shape_cast %411 : vector<1x2x16xbf16> to vector<2x16xbf16>
    %cst_91 = arith.constant dense<0.000000e+00> : vector<2x128xf32>
    %413 = tpu.matmul %412, %372, %cst_91 {dimension_numbers = #tpu.dot_dimension_numbers<[1], [0], [0], [1], [0, 0, 1, 1], [], []>} : vector<2x16xbf16>, vector<16x128xbf16>, vector<2x128xf32> -> vector<2x128xf32>
    %414 = arith.addf %413, %382 : vector<2x128xf32>
    %415 = vector.extract_strided_slice %1 {offsets = [15, 0, 0], sizes = [1, 2, 16], strides = [1, 1, 1]} : vector<16x2x16xbf16> to vector<1x2x16xbf16>
    %416 = vector.shape_cast %415 : vector<1x2x16xbf16> to vector<2x16xbf16>
    %cst_92 = arith.constant dense<0.000000e+00> : vector<2x128xf32>
    %417 = tpu.matmul %416, %372, %cst_92 {dimension_numbers = #tpu.dot_dimension_numbers<[1], [0], [0], [1], [0, 0, 1, 1], [], []>} : vector<2x16xbf16>, vector<16x128xbf16>, vector<2x128xf32> -> vector<2x128xf32>
    %418 = arith.addf %417, %382 : vector<2x128xf32>
    %419 = vector.extract_strided_slice %1 {offsets = [15, 0, 0], sizes = [1, 2, 16], strides = [1, 1, 1]} : vector<16x2x16xbf16> to vector<1x2x16xbf16>
    %420 = vector.shape_cast %419 : vector<1x2x16xbf16> to vector<2x16xbf16>
    %cst_93 = arith.constant dense<0.000000e+00> : vector<2x128xf32>
    %421 = tpu.matmul %420, %374, %cst_93 {dimension_numbers = #tpu.dot_dimension_numbers<[1], [0], [0], [1], [0, 0, 1, 1], [], []>} : vector<2x16xbf16>, vector<16x128xbf16>, vector<2x128xf32> -> vector<2x128xf32>
    %422 = arith.addf %421, %386 : vector<2x128xf32>
    %423 = arith.truncf %352 : vector<2x32xf32> to vector<2x32xbf16>
    %cst_94 = arith.constant dense<0.000000e+00> : vector<2x128xf32>
    %424 = tpu.matmul %423, %376, %cst_94 {dimension_numbers = #tpu.dot_dimension_numbers<[1], [0], [0], [1], [0, 0, 1, 1], [], []>} : vector<2x32xbf16>, vector<32x128xbf16>, vector<2x128xf32> -> vector<2x128xf32>
    %425 = arith.addf %390, %424 : vector<2x128xf32>
    %426 = arith.negf %425 : vector<2x128xf32>
    %427 = math.exp %426 : vector<2x128xf32>
    %cst_95 = arith.constant 1.000000e+00 : f32
    %428 = vector.broadcast %cst_95 : f32 to vector<2x128xf32>
    %429 = arith.addf %428, %427 : vector<2x128xf32>
    %430 = arith.divf %428, %429 : vector<2x128xf32>
    %431 = math.tanh %425 : vector<2x128xf32>
    %432 = vector.extract_strided_slice %430 {offsets = [0, 0], sizes = [2, 32], strides = [1, 1]} : vector<2x128xf32> to vector<2x32xf32>
    %433 = vector.extract_strided_slice %430 {offsets = [0, 32], sizes = [2, 32], strides = [1, 1]} : vector<2x128xf32> to vector<2x32xf32>
    %434 = vector.extract_strided_slice %431 {offsets = [0, 64], sizes = [2, 32], strides = [1, 1]} : vector<2x128xf32> to vector<2x32xf32>
    %435 = vector.extract_strided_slice %430 {offsets = [0, 96], sizes = [2, 32], strides = [1, 1]} : vector<2x128xf32> to vector<2x32xf32>
    %436 = arith.mulf %433, %350 : vector<2x32xf32>
    %437 = arith.mulf %432, %434 : vector<2x32xf32>
    %438 = arith.addf %436, %437 : vector<2x32xf32>
    %439 = math.tanh %438 : vector<2x32xf32>
    %440 = arith.mulf %435, %439 : vector<2x32xf32>
    %441 = arith.truncf %370 : vector<2x32xf32> to vector<2x32xbf16>
    %cst_96 = arith.constant dense<0.000000e+00> : vector<2x128xf32>
    %442 = tpu.matmul %441, %378, %cst_96 {dimension_numbers = #tpu.dot_dimension_numbers<[1], [0], [0], [1], [0, 0, 1, 1], [], []>} : vector<2x32xbf16>, vector<32x128xbf16>, vector<2x128xf32> -> vector<2x128xf32>
    %443 = arith.addf %422, %442 : vector<2x128xf32>
    %444 = arith.negf %443 : vector<2x128xf32>
    %445 = math.exp %444 : vector<2x128xf32>
    %cst_97 = arith.constant 1.000000e+00 : f32
    %446 = vector.broadcast %cst_97 : f32 to vector<2x128xf32>
    %447 = arith.addf %446, %445 : vector<2x128xf32>
    %448 = arith.divf %446, %447 : vector<2x128xf32>
    %449 = math.tanh %443 : vector<2x128xf32>
    %450 = vector.extract_strided_slice %448 {offsets = [0, 0], sizes = [2, 32], strides = [1, 1]} : vector<2x128xf32> to vector<2x32xf32>
    %451 = vector.extract_strided_slice %448 {offsets = [0, 32], sizes = [2, 32], strides = [1, 1]} : vector<2x128xf32> to vector<2x32xf32>
    %452 = vector.extract_strided_slice %449 {offsets = [0, 64], sizes = [2, 32], strides = [1, 1]} : vector<2x128xf32> to vector<2x32xf32>
    %453 = vector.extract_strided_slice %448 {offsets = [0, 96], sizes = [2, 32], strides = [1, 1]} : vector<2x128xf32> to vector<2x32xf32>
    %454 = arith.mulf %451, %368 : vector<2x32xf32>
    %455 = arith.mulf %450, %452 : vector<2x32xf32>
    %456 = arith.addf %454, %455 : vector<2x32xf32>
    %457 = math.tanh %456 : vector<2x32xf32>
    %458 = arith.mulf %453, %457 : vector<2x32xf32>
    %459 = arith.truncf %440 : vector<2x32xf32> to vector<2x32xbf16>
    %cst_98 = arith.constant dense<0.000000e+00> : vector<2x128xf32>
    %460 = tpu.matmul %459, %376, %cst_98 {dimension_numbers = #tpu.dot_dimension_numbers<[1], [0], [0], [1], [0, 0, 1, 1], [], []>} : vector<2x32xbf16>, vector<32x128xbf16>, vector<2x128xf32> -> vector<2x128xf32>
    %461 = arith.addf %394, %460 : vector<2x128xf32>
    %462 = arith.negf %461 : vector<2x128xf32>
    %463 = math.exp %462 : vector<2x128xf32>
    %cst_99 = arith.constant 1.000000e+00 : f32
    %464 = vector.broadcast %cst_99 : f32 to vector<2x128xf32>
    %465 = arith.addf %464, %463 : vector<2x128xf32>
    %466 = arith.divf %464, %465 : vector<2x128xf32>
    %467 = math.tanh %461 : vector<2x128xf32>
    %468 = vector.extract_strided_slice %466 {offsets = [0, 0], sizes = [2, 32], strides = [1, 1]} : vector<2x128xf32> to vector<2x32xf32>
    %469 = vector.extract_strided_slice %466 {offsets = [0, 32], sizes = [2, 32], strides = [1, 1]} : vector<2x128xf32> to vector<2x32xf32>
    %470 = vector.extract_strided_slice %467 {offsets = [0, 64], sizes = [2, 32], strides = [1, 1]} : vector<2x128xf32> to vector<2x32xf32>
    %471 = vector.extract_strided_slice %466 {offsets = [0, 96], sizes = [2, 32], strides = [1, 1]} : vector<2x128xf32> to vector<2x32xf32>
    %472 = arith.mulf %469, %438 : vector<2x32xf32>
    %473 = arith.mulf %468, %470 : vector<2x32xf32>
    %474 = arith.addf %472, %473 : vector<2x32xf32>
    %475 = math.tanh %474 : vector<2x32xf32>
    %476 = arith.mulf %471, %475 : vector<2x32xf32>
    %477 = arith.truncf %476 : vector<2x32xf32> to vector<2x32xbf16>
    %cst_100 = arith.constant dense<0.000000e+00> : vector<2x128xf32>
    %478 = tpu.matmul %477, %376, %cst_100 {dimension_numbers = #tpu.dot_dimension_numbers<[1], [0], [0], [1], [0, 0, 1, 1], [], []>} : vector<2x32xbf16>, vector<32x128xbf16>, vector<2x128xf32> -> vector<2x128xf32>
    %479 = arith.addf %398, %478 : vector<2x128xf32>
    %480 = arith.negf %479 : vector<2x128xf32>
    %481 = math.exp %480 : vector<2x128xf32>
    %cst_101 = arith.constant 1.000000e+00 : f32
    %482 = vector.broadcast %cst_101 : f32 to vector<2x128xf32>
    %483 = arith.addf %482, %481 : vector<2x128xf32>
    %484 = arith.divf %482, %483 : vector<2x128xf32>
    %485 = math.tanh %479 : vector<2x128xf32>
    %486 = vector.extract_strided_slice %484 {offsets = [0, 0], sizes = [2, 32], strides = [1, 1]} : vector<2x128xf32> to vector<2x32xf32>
    %487 = vector.extract_strided_slice %484 {offsets = [0, 32], sizes = [2, 32], strides = [1, 1]} : vector<2x128xf32> to vector<2x32xf32>
    %488 = vector.extract_strided_slice %485 {offsets = [0, 64], sizes = [2, 32], strides = [1, 1]} : vector<2x128xf32> to vector<2x32xf32>
    %489 = vector.extract_strided_slice %484 {offsets = [0, 96], sizes = [2, 32], strides = [1, 1]} : vector<2x128xf32> to vector<2x32xf32>
    %490 = arith.mulf %487, %474 : vector<2x32xf32>
    %491 = arith.mulf %486, %488 : vector<2x32xf32>
    %492 = arith.addf %490, %491 : vector<2x32xf32>
    %493 = math.tanh %492 : vector<2x32xf32>
    %494 = arith.mulf %489, %493 : vector<2x32xf32>
    %495 = arith.truncf %494 : vector<2x32xf32> to vector<2x32xbf16>
    %cst_102 = arith.constant dense<0.000000e+00> : vector<2x128xf32>
    %496 = tpu.matmul %495, %376, %cst_102 {dimension_numbers = #tpu.dot_dimension_numbers<[1], [0], [0], [1], [0, 0, 1, 1], [], []>} : vector<2x32xbf16>, vector<32x128xbf16>, vector<2x128xf32> -> vector<2x128xf32>
    %497 = arith.addf %402, %496 : vector<2x128xf32>
    %498 = arith.negf %497 : vector<2x128xf32>
    %499 = math.exp %498 : vector<2x128xf32>
    %cst_103 = arith.constant 1.000000e+00 : f32
    %500 = vector.broadcast %cst_103 : f32 to vector<2x128xf32>
    %501 = arith.addf %500, %499 : vector<2x128xf32>
    %502 = arith.divf %500, %501 : vector<2x128xf32>
    %503 = math.tanh %497 : vector<2x128xf32>
    %504 = vector.extract_strided_slice %502 {offsets = [0, 0], sizes = [2, 32], strides = [1, 1]} : vector<2x128xf32> to vector<2x32xf32>
    %505 = vector.extract_strided_slice %502 {offsets = [0, 32], sizes = [2, 32], strides = [1, 1]} : vector<2x128xf32> to vector<2x32xf32>
    %506 = vector.extract_strided_slice %503 {offsets = [0, 64], sizes = [2, 32], strides = [1, 1]} : vector<2x128xf32> to vector<2x32xf32>
    %507 = vector.extract_strided_slice %502 {offsets = [0, 96], sizes = [2, 32], strides = [1, 1]} : vector<2x128xf32> to vector<2x32xf32>
    %508 = arith.mulf %505, %492 : vector<2x32xf32>
    %509 = arith.mulf %504, %506 : vector<2x32xf32>
    %510 = arith.addf %508, %509 : vector<2x32xf32>
    %511 = math.tanh %510 : vector<2x32xf32>
    %512 = arith.mulf %507, %511 : vector<2x32xf32>
    %513 = arith.truncf %512 : vector<2x32xf32> to vector<2x32xbf16>
    %cst_104 = arith.constant dense<0.000000e+00> : vector<2x128xf32>
    %514 = tpu.matmul %513, %376, %cst_104 {dimension_numbers = #tpu.dot_dimension_numbers<[1], [0], [0], [1], [0, 0, 1, 1], [], []>} : vector<2x32xbf16>, vector<32x128xbf16>, vector<2x128xf32> -> vector<2x128xf32>
    %515 = arith.addf %406, %514 : vector<2x128xf32>
    %516 = arith.negf %515 : vector<2x128xf32>
    %517 = math.exp %516 : vector<2x128xf32>
    %cst_105 = arith.constant 1.000000e+00 : f32
    %518 = vector.broadcast %cst_105 : f32 to vector<2x128xf32>
    %519 = arith.addf %518, %517 : vector<2x128xf32>
    %520 = arith.divf %518, %519 : vector<2x128xf32>
    %521 = math.tanh %515 : vector<2x128xf32>
    %522 = vector.extract_strided_slice %520 {offsets = [0, 0], sizes = [2, 32], strides = [1, 1]} : vector<2x128xf32> to vector<2x32xf32>
    %523 = vector.extract_strided_slice %520 {offsets = [0, 32], sizes = [2, 32], strides = [1, 1]} : vector<2x128xf32> to vector<2x32xf32>
    %524 = vector.extract_strided_slice %521 {offsets = [0, 64], sizes = [2, 32], strides = [1, 1]} : vector<2x128xf32> to vector<2x32xf32>
    %525 = vector.extract_strided_slice %520 {offsets = [0, 96], sizes = [2, 32], strides = [1, 1]} : vector<2x128xf32> to vector<2x32xf32>
    %526 = arith.mulf %523, %510 : vector<2x32xf32>
    %527 = arith.mulf %522, %524 : vector<2x32xf32>
    %528 = arith.addf %526, %527 : vector<2x32xf32>
    %529 = math.tanh %528 : vector<2x32xf32>
    %530 = arith.mulf %525, %529 : vector<2x32xf32>
    %531 = arith.truncf %530 : vector<2x32xf32> to vector<2x32xbf16>
    %cst_106 = arith.constant dense<0.000000e+00> : vector<2x128xf32>
    %532 = tpu.matmul %531, %376, %cst_106 {dimension_numbers = #tpu.dot_dimension_numbers<[1], [0], [0], [1], [0, 0, 1, 1], [], []>} : vector<2x32xbf16>, vector<32x128xbf16>, vector<2x128xf32> -> vector<2x128xf32>
    %533 = arith.addf %410, %532 : vector<2x128xf32>
    %534 = arith.negf %533 : vector<2x128xf32>
    %535 = math.exp %534 : vector<2x128xf32>
    %cst_107 = arith.constant 1.000000e+00 : f32
    %536 = vector.broadcast %cst_107 : f32 to vector<2x128xf32>
    %537 = arith.addf %536, %535 : vector<2x128xf32>
    %538 = arith.divf %536, %537 : vector<2x128xf32>
    %539 = math.tanh %533 : vector<2x128xf32>
    %540 = vector.extract_strided_slice %538 {offsets = [0, 0], sizes = [2, 32], strides = [1, 1]} : vector<2x128xf32> to vector<2x32xf32>
    %541 = vector.extract_strided_slice %538 {offsets = [0, 32], sizes = [2, 32], strides = [1, 1]} : vector<2x128xf32> to vector<2x32xf32>
    %542 = vector.extract_strided_slice %539 {offsets = [0, 64], sizes = [2, 32], strides = [1, 1]} : vector<2x128xf32> to vector<2x32xf32>
    %543 = vector.extract_strided_slice %538 {offsets = [0, 96], sizes = [2, 32], strides = [1, 1]} : vector<2x128xf32> to vector<2x32xf32>
    %544 = arith.mulf %541, %528 : vector<2x32xf32>
    %545 = arith.mulf %540, %542 : vector<2x32xf32>
    %546 = arith.addf %544, %545 : vector<2x32xf32>
    %547 = math.tanh %546 : vector<2x32xf32>
    %548 = arith.mulf %543, %547 : vector<2x32xf32>
    %549 = arith.truncf %548 : vector<2x32xf32> to vector<2x32xbf16>
    %cst_108 = arith.constant dense<0.000000e+00> : vector<2x128xf32>
    %550 = tpu.matmul %549, %376, %cst_108 {dimension_numbers = #tpu.dot_dimension_numbers<[1], [0], [0], [1], [0, 0, 1, 1], [], []>} : vector<2x32xbf16>, vector<32x128xbf16>, vector<2x128xf32> -> vector<2x128xf32>
    %551 = arith.addf %414, %550 : vector<2x128xf32>
    %552 = arith.negf %551 : vector<2x128xf32>
    %553 = math.exp %552 : vector<2x128xf32>
    %cst_109 = arith.constant 1.000000e+00 : f32
    %554 = vector.broadcast %cst_109 : f32 to vector<2x128xf32>
    %555 = arith.addf %554, %553 : vector<2x128xf32>
    %556 = arith.divf %554, %555 : vector<2x128xf32>
    %557 = math.tanh %551 : vector<2x128xf32>
    %558 = vector.extract_strided_slice %556 {offsets = [0, 0], sizes = [2, 32], strides = [1, 1]} : vector<2x128xf32> to vector<2x32xf32>
    %559 = vector.extract_strided_slice %556 {offsets = [0, 32], sizes = [2, 32], strides = [1, 1]} : vector<2x128xf32> to vector<2x32xf32>
    %560 = vector.extract_strided_slice %557 {offsets = [0, 64], sizes = [2, 32], strides = [1, 1]} : vector<2x128xf32> to vector<2x32xf32>
    %561 = vector.extract_strided_slice %556 {offsets = [0, 96], sizes = [2, 32], strides = [1, 1]} : vector<2x128xf32> to vector<2x32xf32>
    %562 = arith.mulf %559, %546 : vector<2x32xf32>
    %563 = arith.mulf %558, %560 : vector<2x32xf32>
    %564 = arith.addf %562, %563 : vector<2x32xf32>
    %565 = math.tanh %564 : vector<2x32xf32>
    %566 = arith.mulf %561, %565 : vector<2x32xf32>
    %567 = arith.truncf %566 : vector<2x32xf32> to vector<2x32xbf16>
    %cst_110 = arith.constant dense<0.000000e+00> : vector<2x128xf32>
    %568 = tpu.matmul %567, %376, %cst_110 {dimension_numbers = #tpu.dot_dimension_numbers<[1], [0], [0], [1], [0, 0, 1, 1], [], []>} : vector<2x32xbf16>, vector<32x128xbf16>, vector<2x128xf32> -> vector<2x128xf32>
    %569 = arith.addf %418, %568 : vector<2x128xf32>
    %570 = arith.negf %569 : vector<2x128xf32>
    %571 = math.exp %570 : vector<2x128xf32>
    %cst_111 = arith.constant 1.000000e+00 : f32
    %572 = vector.broadcast %cst_111 : f32 to vector<2x128xf32>
    %573 = arith.addf %572, %571 : vector<2x128xf32>
    %574 = arith.divf %572, %573 : vector<2x128xf32>
    %575 = math.tanh %569 : vector<2x128xf32>
    %576 = vector.extract_strided_slice %574 {offsets = [0, 0], sizes = [2, 32], strides = [1, 1]} : vector<2x128xf32> to vector<2x32xf32>
    %577 = vector.extract_strided_slice %574 {offsets = [0, 32], sizes = [2, 32], strides = [1, 1]} : vector<2x128xf32> to vector<2x32xf32>
    %578 = vector.extract_strided_slice %575 {offsets = [0, 64], sizes = [2, 32], strides = [1, 1]} : vector<2x128xf32> to vector<2x32xf32>
    %579 = vector.extract_strided_slice %574 {offsets = [0, 96], sizes = [2, 32], strides = [1, 1]} : vector<2x128xf32> to vector<2x32xf32>
    %580 = arith.mulf %577, %564 : vector<2x32xf32>
    %581 = arith.mulf %576, %578 : vector<2x32xf32>
    %582 = arith.addf %580, %581 : vector<2x32xf32>
    %583 = math.tanh %582 : vector<2x32xf32>
    %584 = arith.mulf %579, %583 : vector<2x32xf32>
    %585 = tpu.concatenate %352, %118, %584, %458 in 1 : vector<2x32xf32>, vector<2x32xf32>, vector<2x32xf32>, vector<2x32xf32> -> vector<2x128xf32>
    %c0_112 = arith.constant 0 : index
    %c0_113 = arith.constant 0 : index
    %586 = vector.load %arg7[%c0_112, %c0_113] : memref<128x32xf32, #tpu.memory_space<vmem>>, vector<128x32xf32>
    %cst_114 = arith.constant dense<0.000000e+00> : vector<2x32xf32>
    %587 = tpu.matmul %585, %586, %cst_114 {dimension_numbers = #tpu.dot_dimension_numbers<[1], [0], [0], [1], [0, 0, 1, 1], [], []>} : vector<2x128xf32>, vector<128x32xf32>, vector<2x32xf32> -> vector<2x32xf32>
    %c0_115 = arith.constant 0 : index
    %c0_116 = arith.constant 0 : index
    %588 = vector.load %arg8[%c0_115, %c0_116] : memref<1x32xf32, #tpu.memory_space<vmem>>, vector<1x32xf32>
    %589 = vector.broadcast %588 : vector<1x32xf32> to vector<2x32xf32>
    %590 = arith.addf %587, %589 : vector<2x32xf32>
    %c0_117 = arith.constant 0 : index
    %c0_118 = arith.constant 0 : index
    %591 = vector.load %arg9[%c0_117, %c0_118] : memref<32x4xf32, #tpu.memory_space<vmem>>, vector<32x4xf32>
    %cst_119 = arith.constant dense<0.000000e+00> : vector<2x4xf32>
    %592 = tpu.matmul %590, %591, %cst_119 {dimension_numbers = #tpu.dot_dimension_numbers<[1], [0], [0], [1], [0, 0, 1, 1], [], []>} : vector<2x32xf32>, vector<32x4xf32>, vector<2x4xf32> -> vector<2x4xf32>
    %c0_120 = arith.constant 0 : index
    %c0_121 = arith.constant 0 : index
    %593 = vector.load %arg10[%c0_120, %c0_121] : memref<1x4xf32, #tpu.memory_space<vmem>>, vector<1x4xf32>
    %594 = vector.broadcast %593 : vector<1x4xf32> to vector<2x4xf32>
    %595 = arith.addf %592, %594 : vector<2x4xf32>
    %cst_122 = arith.constant dense<0xFF800000> : vector<2xf32>
    %596 = vector.multi_reduction <maximumf>, %595, %cst_122 [1] : vector<2x4xf32> to vector<2xf32>
    %597 = vector.shape_cast %596 : vector<2xf32> to vector<2x1xf32>
    %598 = vector.broadcast %597 : vector<2x1xf32> to vector<2x4xf32>
    %599 = arith.subf %595, %598 : vector<2x4xf32>
    %600 = math.exp %599 : vector<2x4xf32>
    %cst_123 = arith.constant dense<0.000000e+00> : vector<2xf32>
    %601 = vector.multi_reduction <add>, %600, %cst_123 [1] : vector<2x4xf32> to vector<2xf32>
    %602 = vector.shape_cast %601 : vector<2xf32> to vector<2x1xf32>
    %603 = vector.broadcast %602 : vector<2x1xf32> to vector<2x4xf32>
    %604 = arith.divf %600, %603 : vector<2x4xf32>
    %c0_124 = arith.constant 0 : index
    %c0_125 = arith.constant 0 : index
    %605 = vector.load %arg11[%c0_124, %c0_125] : memref<2x4xf32, #tpu.memory_space<vmem>>, vector<2x4xf32>
    tpu.vector_store %arg11[%c0_124, %c0_125], %604 {strides = array<i32>} : memref<2x4xf32, #tpu.memory_space<vmem>>, vector<2x4xf32>,
    return
  }
}

</mosaic_0001>

<llo_original>
// kernel: tpu_custom_call.1
$region0: #{tpu_custom_call.1}
  #allocation0 [shape = 'u32[]', space=smem, size = 0x4, offset = 0x4, fixed_abs, tag = 'smem constant byte address 0x4 - core index']
  #allocation1 [shape = 'u32[144,128]{1,0:T(1,128)}', space=vmem, size = 0x12000, scoped, tag = 'internal scratch']
  %s0 = inlined_call_operand.vmem [shape: f32[16,2,16], index: 0, kind: input, shape index: {}]
  %s1 = inlined_call_operand.vmem [shape: bf16[2,16,128], index: 1, kind: input, shape index: {}]
  %s2 = inlined_call_operand.vmem [shape: bf16[2,32,128], index: 2, kind: input, shape index: {}]
  %s3 = inlined_call_operand.vmem [shape: f32[2,1,128], index: 3, kind: input, shape index: {}]
  %s4 = inlined_call_operand.vmem [shape: bf16[2,16,128], index: 4, kind: input, shape index: {}]
  %s5 = inlined_call_operand.vmem [shape: bf16[2,32,128], index: 5, kind: input, shape index: {}]
  %s6 = inlined_call_operand.vmem [shape: f32[2,1,128], index: 6, kind: input, shape index: {}]
  %s7 = inlined_call_operand.vmem [shape: f32[128,32], index: 7, kind: input, shape index: {}]
  %s8 = inlined_call_operand.vmem [shape: f32[1,32], index: 8, kind: input, shape index: {}]
  %s9 = inlined_call_operand.vmem [shape: f32[32,4], index: 9, kind: input, shape index: {}]
  %s10 = inlined_call_operand.vmem [shape: f32[1,4], index: 10, kind: input, shape index: {}]
  %s11 = inlined_call_operand.hbm [shape: f32[2,4], index: 11, kind: output, shape index: {}]
  %s12 = sld [smem:[#allocation0]]
  $region54: #{tpu_custom_call.1} parent=0
    _
  %s14 = ssub.s32 1, %s12
  %s15 = scalar_select 0, %s14, %s12
  $region1: #{tpu_custom_call.1} parent=0
    #allocation2 [shape = 'u8[1024]{0}', space=vmem, size = 0x400, scoped, tag = 'output window, operand 0, single buffered']
    #allocation3 [shape = 's32[1]{0}', space=sflag, size = 0x4, scoped, tag = 'scoped memory for tpu_custom_call.1']
    %16 = vsyncpa [#allocation3], 0
    // Predicated region
    $region2: #{tpu_custom_call.1} parent=1 // pred_check
      _
    $region3: #{tpu_custom_call.1} parent=1 // pred_check_branch
      %18 = sbr.rel (0) target = $region5
    $region4: #{tpu_custom_call.1} parent=1 // pred_region
      _
    $region5: #{tpu_custom_call.1} parent=1 // pred_fallthru
      _
    // Predicated region
    $region6: #{tpu_custom_call.1} parent=1 // pred_check
      _
    $region7: #{tpu_custom_call.1} parent=1 // pred_check_branch
      %20 = sbr.rel (0) target = $region9
    $region8: #{tpu_custom_call.1} parent=1 // pred_region
      _
    $region9: #{tpu_custom_call.1} parent=1 // pred_fallthru
      _
    // Predicated region
    $region10: #{tpu_custom_call.1} parent=1 // pred_check
      _
    $region11: #{tpu_custom_call.1} parent=1 // pred_check_branch
      %22 = sbr.rel (0) target = $region13
    $region12: #{tpu_custom_call.1} parent=1 // pred_region
      _
    $region13: #{tpu_custom_call.1} parent=1 // pred_fallthru
      _
    // Predicated region
    $region14: #{tpu_custom_call.1} parent=1 // pred_check
      _
    $region15: #{tpu_custom_call.1} parent=1 // pred_check_branch
      %24 = sbr.rel (0) target = $region17
    $region16: #{tpu_custom_call.1} parent=1 // pred_region
      _
    $region17: #{tpu_custom_call.1} parent=1 // pred_fallthru
      _
    // Predicated region
    $region18: #{tpu_custom_call.1} parent=1 // pred_check
      _
    $region19: #{tpu_custom_call.1} parent=1 // pred_check_branch
      %26 = sbr.rel (0) target = $region21
    $region20: #{tpu_custom_call.1} parent=1 // pred_region
      _
    $region21: #{tpu_custom_call.1} parent=1 // pred_fallthru
      _
    // Predicated region
    $region22: #{tpu_custom_call.1} parent=1 // pred_check
      _
    $region23: #{tpu_custom_call.1} parent=1 // pred_check_branch
      %28 = sbr.rel (0) target = $region25
    $region24: #{tpu_custom_call.1} parent=1 // pred_region
      _
    $region25: #{tpu_custom_call.1} parent=1 // pred_fallthru
      _
    // Predicated region
    $region26: #{tpu_custom_call.1} parent=1 // pred_check
      _
    $region27: #{tpu_custom_call.1} parent=1 // pred_check_branch
      %30 = sbr.rel (0) target = $region29
    $region28: #{tpu_custom_call.1} parent=1 // pred_region
      _
    $region29: #{tpu_custom_call.1} parent=1 // pred_fallthru
      _
    // Predicated region
    $region30: #{tpu_custom_call.1} parent=1 // pred_check
      _
    $region31: #{tpu_custom_call.1} parent=1 // pred_check_branch
      %32 = sbr.rel (0) target = $region33
    $region32: #{tpu_custom_call.1} parent=1 // pred_region
      _
    $region33: #{tpu_custom_call.1} parent=1 // pred_fallthru
      _
    // Predicated region
    $region34: #{tpu_custom_call.1} parent=1 // pred_check
      _
    $region35: #{tpu_custom_call.1} parent=1 // pred_check_branch
      %34 = sbr.rel (0) target = $region37
    $region36: #{tpu_custom_call.1} parent=1 // pred_region
      _
    $region37: #{tpu_custom_call.1} parent=1 // pred_fallthru
      _
    // Predicated region
    $region38: #{tpu_custom_call.1} parent=1 // pred_check
      _
    $region39: #{tpu_custom_call.1} parent=1 // pred_check_branch
      %36 = sbr.rel (0) target = $region41
    $region40: #{tpu_custom_call.1} parent=1 // pred_region
      _
    $region41: #{tpu_custom_call.1} parent=1 // pred_fallthru
      _
    // Predicated region
    $region42: #{tpu_custom_call.1} parent=1 // pred_check
      _
    $region43: #{tpu_custom_call.1} parent=1 // pred_check_branch
      %38 = sbr.rel (0) target = $region45
    $region44: #{tpu_custom_call.1} parent=1 // pred_region
      _
    $region45: #{tpu_custom_call.1} parent=1 // pred_fallthru
      _
    %v40 = vld [vmem:[%s0] sm:$0x3]
    %v41 = vld [vmem:[%s0 + $0x2] sm:$0x3]
    %v42 = vld [vmem:[%s0 + $0x4] sm:$0x3]
    %v43 = vld [vmem:[%s0 + $0x6] sm:$0x3]
    %v44 = vld [vmem:[%s0 + $0x8] sm:$0x3]
    %v45 = vld [vmem:[%s0 + $0xa] sm:$0x3]
    %v46 = vld [vmem:[%s0 + $0xc] sm:$0x3]
    %v47 = vld [vmem:[%s0 + $0xe] sm:$0x3]
    %v48 = vld [vmem:[%s0 + $0x10] sm:$0x3]
    %v49 = vld [vmem:[%s0 + $0x12] sm:$0x3]
    %v50 = vld [vmem:[%s0 + $0x14] sm:$0x3]
    %v51 = vld [vmem:[%s0 + $0x16] sm:$0x3]
    %v52 = vld [vmem:[%s0 + $0x18] sm:$0x3]
    %v53 = vld [vmem:[%s0 + $0x1a] sm:$0x3]
    %v54 = vld [vmem:[%s0 + $0x1c] sm:$0x3]
    %v55 = vld [vmem:[%s0 + $0x1e] sm:$0x3]
    %v56 = vpack.c.bf16 %v40, %v40
    %v57 = vpack.c.bf16 %v41, %v41
    %v58 = vpack.c.bf16 %v42, %v42
    %v59 = vpack.c.bf16 %v43, %v43
    %v60 = vpack.c.bf16 %v44, %v44
    %v61 = vpack.c.bf16 %v45, %v45
    %v62 = vpack.c.bf16 %v46, %v46
    %v63 = vpack.c.bf16 %v47, %v47
    %v64 = vpack.c.bf16 %v48, %v48
    %v65 = vpack.c.bf16 %v49, %v49
    %v66 = vpack.c.bf16 %v50, %v50
    %v67 = vpack.c.bf16 %v51, %v51
    %v68 = vpack.c.bf16 %v52, %v52
    %v69 = vpack.c.bf16 %v53, %v53
    %v70 = vpack.c.bf16 %v54, %v54
    %v71 = vpack.c.bf16 %v55, %v55
    %v72 = vld [vmem:[%s1] sm:$0xf]
    %v73 = vld [vmem:[%s1 + $0x4] sm:$0xf]
    %s74 = scalar_lea.vmem %s1, 8
    %v75 = vld [vmem:[%s74] sm:$0xf]
    %v76 = vld [vmem:[%s74 + $0x4] sm:$0xf]
    %v77 = vld [vmem:[%s2] sm:$0xf]
    %v78 = vld [vmem:[%s2 + $0x4] sm:$0xf]
    %v79 = vld [vmem:[%s2 + $0x8] sm:$0xf]
    %v80 = vld [vmem:[%s2 + $0xc] sm:$0xf]
    %s81 = scalar_lea.vmem %s2, 16
    %v82 = vld [vmem:[%s81] sm:$0xf]
    %v83 = vld [vmem:[%s81 + $0x4] sm:$0xf]
    %v84 = vld [vmem:[%s81 + $0x8] sm:$0xf]
    %v85 = vld [vmem:[%s81 + $0xc] sm:$0xf]
    %v86 = vld [vmem:[%s3] sm:$0x1]
    %v88 = vlaneseq
    %v89 = vshrl.u32 %v88, 7
    %v90 = vsub.s32 0, %v89
    %v91 = vrot.slane %v86, %v90
    %s93 = scalar_lea.vmem %s3, 1
    %v94 = vld [vmem:[%s93] sm:$0x1]
    %v96 = vlaneseq
    %v97 = vshrl.u32 %v96, 7
    %v98 = vsub.s32 0, %v97
    %v99 = vrot.slane %v94, %v98
    %v103 = vunpack.c.l.b16 %v72
    %v104 = vunpack.c.l.b16 %v73
    %v105 = vpack.c.b16 %v104, %v103
    %vm107 = vcmask 130048
    %v109 = vsel %vm107, %v56, 0
    %111 = vmatprep.subr.bf16.mxu0 0
    %112 = vmatpush1.bf16.msra.mxu0 %v105
    %113 = vmatprep.subr.bf16.mxu0 0
    %114 = vmatpush1.bf16.msra.mxu0 0
    %115 = vmatprep.subr.bf16.mxu0 0
    %116 = vmatpush1.bf16.msra.mxu0 0
    %117 = vmatprep.subr.bf16.mxu0 0
    %118 = vmatpush1.bf16.msra.mxu0 0
    %119 = vmatprep.subr.bf16.mxu0 0
    %120 = vmatpush1.bf16.msra.mxu0 0
    %121 = vmatprep.subr.bf16.mxu0 0
    %122 = vmatpush1.bf16.msra.mxu0 0
    %123 = vmatprep.subr.bf16.mxu0 0
    %124 = vmatpush1.bf16.msra.mxu0 0
    %125 = vmatprep.subr.bf16.mxu0 0
    %126 = vmatpush1.bf16.msra.mxu0 0
    %127 = vmatprep.subr.bf16.mxu0 0
    %128 = vmatpush1.bf16.msra.mxu0 0
    %129 = vmatprep.subr.bf16.mxu0 0
    %130 = vmatpush1.bf16.msra.mxu0 0
    %131 = vmatprep.subr.bf16.mxu0 0
    %132 = vmatpush1.bf16.msra.mxu0 0
    %133 = vmatprep.subr.bf16.mxu0 0
    %134 = vmatpush1.bf16.msra.mxu0 0
    %135 = vmatprep.subr.bf16.mxu0 0
    %136 = vmatpush1.bf16.msra.mxu0 0
    %137 = vmatprep.subr.bf16.mxu0 0
    %138 = vmatpush1.bf16.msra.mxu0 0
    %139 = vmatprep.subr.bf16.mxu0 0
    %140 = vmatpush1.bf16.msra.mxu0 0
    %141 = vmatprep.subr.bf16.mxu0 0
    %142 = vmatpush1.bf16.msra.mxu0 0
    %143 = vmatprep.mubr.bf16.mxu0 0
    %144 = vmatmul.mubr.bf16.gmra.mrb[0].mxu0 %v109
    %v145 = vpop.f32.mrb[0].mxu0
    %v146 = vadd.f32 %v91, %v145
    %v147 = vpop.f32.mrb[0].mxu0
    %v148 = vpop.f32.mrb[0].mxu0
    %v149 = vpop.f32.mrb[0].mxu0
    %150 = vdwg.mxu0
    %v152 = vsel %vm107, %v57, 0
    %154 = vmatprep.subr.bf16.mxu0 0
    %155 = vmatpush1.bf16.msra.mxu0 %v105
    %156 = vmatprep.subr.bf16.mxu0 0
    %157 = vmatpush1.bf16.msra.mxu0 0
    %158 = vmatprep.subr.bf16.mxu0 0
    %159 = vmatpush1.bf16.msra.mxu0 0
    %160 = vmatprep.subr.bf16.mxu0 0
    %161 = vmatpush1.bf16.msra.mxu0 0
    %162 = vmatprep.subr.bf16.mxu0 0
    %163 = vmatpush1.bf16.msra.mxu0 0
    %164 = vmatprep.subr.bf16.mxu0 0
    %165 = vmatpush1.bf16.msra.mxu0 0
    %166 = vmatprep.subr.bf16.mxu0 0
    %167 = vmatpush1.bf16.msra.mxu0 0
    %168 = vmatprep.subr.bf16.mxu0 0
    %169 = vmatpush1.bf16.msra.mxu0 0
    %170 = vmatprep.subr.bf16.mxu0 0
    %171 = vmatpush1.bf16.msra.mxu0 0
    %172 = vmatprep.subr.bf16.mxu0 0
    %173 = vmatpush1.bf16.msra.mxu0 0
    %174 = vmatprep.subr.bf16.mxu0 0
    %175 = vmatpush1.bf16.msra.mxu0 0
    %176 = vmatprep.subr.bf16.mxu0 0
    %177 = vmatpush1.bf16.msra.mxu0 0
    %178 = vmatprep.subr.bf16.mxu0 0
    %179 = vmatpush1.bf16.msra.mxu0 0
    %180 = vmatprep.subr.bf16.mxu0 0
    %181 = vmatpush1.bf16.msra.mxu0 0
    %182 = vmatprep.subr.bf16.mxu0 0
    %183 = vmatpush1.bf16.msra.mxu0 0
    %184 = vmatprep.subr.bf16.mxu0 0
    %185 = vmatpush1.bf16.msra.mxu0 0
    %186 = vmatprep.mubr.bf16.mxu0 0
    %187 = vmatmul.mubr.bf16.gmra.mrb[0].mxu0 %v152
    %v188 = vpop.f32.mrb[0].mxu0
    %v189 = vadd.f32 %v91, %v188
    %v190 = vpop.f32.mrb[0].mxu0
    %v191 = vpop.f32.mrb[0].mxu0
    %v192 = vpop.f32.mrb[0].mxu0
    %193 = vdwg.mxu0
    %v195 = vsel %vm107, %v58, 0
    %197 = vmatprep.subr.bf16.mxu0 0
    %198 = vmatpush1.bf16.msra.mxu0 %v105
    %199 = vmatprep.subr.bf16.mxu0 0
    %200 = vmatpush1.bf16.msra.mxu0 0
    %201 = vmatprep.subr.bf16.mxu0 0
    %202 = vmatpush1.bf16.msra.mxu0 0
    %203 = vmatprep.subr.bf16.mxu0 0
    %204 = vmatpush1.bf16.msra.mxu0 0
    %205 = vmatprep.subr.bf16.mxu0 0
    %206 = vmatpush1.bf16.msra.mxu0 0
    %207 = vmatprep.subr.bf16.mxu0 0
    %208 = vmatpush1.bf16.msra.mxu0 0
    %209 = vmatprep.subr.bf16.mxu0 0
    %210 = vmatpush1.bf16.msra.mxu0 0
    %211 = vmatprep.subr.bf16.mxu0 0
    %212 = vmatpush1.bf16.msra.mxu0 0
    %213 = vmatprep.subr.bf16.mxu0 0
    %214 = vmatpush1.bf16.msra.mxu0 0
    %215 = vmatprep.subr.bf16.mxu0 0
    %216 = vmatpush1.bf16.msra.mxu0 0
    %217 = vmatprep.subr.bf16.mxu0 0
    %218 = vmatpush1.bf16.msra.mxu0 0
    %219 = vmatprep.subr.bf16.mxu0 0
    %220 = vmatpush1.bf16.msra.mxu0 0
    %221 = vmatprep.subr.bf16.mxu0 0
    %222 = vmatpush1.bf16.msra.mxu0 0
    %223 = vmatprep.subr.bf16.mxu0 0
    %224 = vmatpush1.bf16.msra.mxu0 0
    %225 = vmatprep.subr.bf16.mxu0 0
    %226 = vmatpush1.bf16.msra.mxu0 0
    %227 = vmatprep.subr.bf16.mxu0 0
    %228 = vmatpush1.bf16.msra.mxu0 0
    %229 = vmatprep.mubr.bf16.mxu0 0
    %230 = vmatmul.mubr.bf16.gmra.mrb[0].mxu0 %v195
    %v231 = vpop.f32.mrb[0].mxu0
    %v232 = vadd.f32 %v91, %v231
    %v233 = vpop.f32.mrb[0].mxu0
    %v234 = vpop.f32.mrb[0].mxu0
    %v235 = vpop.f32.mrb[0].mxu0
    %236 = vdwg.mxu0
    %v238 = vsel %vm107, %v59, 0
    %240 = vmatprep.subr.bf16.mxu0 0
    %241 = vmatpush1.bf16.msra.mxu0 %v105
    %242 = vmatprep.subr.bf16.mxu0 0
    %243 = vmatpush1.bf16.msra.mxu0 0
    %244 = vmatprep.subr.bf16.mxu0 0
    %245 = vmatpush1.bf16.msra.mxu0 0
    %246 = vmatprep.subr.bf16.mxu0 0
    %247 = vmatpush1.bf16.msra.mxu0 0
    %248 = vmatprep.subr.bf16.mxu0 0
    %249 = vmatpush1.bf16.msra.mxu0 0
    %250 = vmatprep.subr.bf16.mxu0 0
    %251 = vmatpush1.bf16.msra.mxu0 0
    %252 = vmatprep.subr.bf16.mxu0 0
    %253 = vmatpush1.bf16.msra.mxu0 0
    %254 = vmatprep.subr.bf16.mxu0 0
    %255 = vmatpush1.bf16.msra.mxu0 0
    %256 = vmatprep.subr.bf16.mxu0 0
    %257 = vmatpush1.bf16.msra.mxu0 0
    %258 = vmatprep.subr.bf16.mxu0 0
    %259 = vmatpush1.bf16.msra.mxu0 0
    %260 = vmatprep.subr.bf16.mxu0 0
    %261 = vmatpush1.bf16.msra.mxu0 0
    %262 = vmatprep.subr.bf16.mxu0 0
    %263 = vmatpush1.bf16.msra.mxu0 0
    %264 = vmatprep.subr.bf16.mxu0 0
    %265 = vmatpush1.bf16.msra.mxu0 0
    %266 = vmatprep.subr.bf16.mxu0 0
    %267 = vmatpush1.bf16.msra.mxu0 0
    %268 = vmatprep.subr.bf16.mxu0 0
    %269 = vmatpush1.bf16.msra.mxu0 0
    %270 = vmatprep.subr.bf16.mxu0 0
    %271 = vmatpush1.bf16.msra.mxu0 0
    %272 = vmatprep.mubr.bf16.mxu0 0
    %273 = vmatmul.mubr.bf16.gmra.mrb[0].mxu0 %v238
    %v274 = vpop.f32.mrb[0].mxu0
    %v275 = vadd.f32 %v91, %v274
    %v276 = vpop.f32.mrb[0].mxu0
    %v277 = vpop.f32.mrb[0].mxu0
    %v278 = vpop.f32.mrb[0].mxu0
    %279 = vdwg.mxu0
    %v281 = vsel %vm107, %v60, 0
    %283 = vmatprep.subr.bf16.mxu0 0
    %284 = vmatpush1.bf16.msra.mxu0 %v105
    %285 = vmatprep.subr.bf16.mxu0 0
    %286 = vmatpush1.bf16.msra.mxu0 0
    %287 = vmatprep.subr.bf16.mxu0 0
    %288 = vmatpush1.bf16.msra.mxu0 0
    %289 = vmatprep.subr.bf16.mxu0 0
    %290 = vmatpush1.bf16.msra.mxu0 0
    %291 = vmatprep.subr.bf16.mxu0 0
    %292 = vmatpush1.bf16.msra.mxu0 0
    %293 = vmatprep.subr.bf16.mxu0 0
    %294 = vmatpush1.bf16.msra.mxu0 0
    %295 = vmatprep.subr.bf16.mxu0 0
    %296 = vmatpush1.bf16.msra.mxu0 0
    %297 = vmatprep.subr.bf16.mxu0 0
    %298 = vmatpush1.bf16.msra.mxu0 0
    %299 = vmatprep.subr.bf16.mxu0 0
    %300 = vmatpush1.bf16.msra.mxu0 0
    %301 = vmatprep.subr.bf16.mxu0 0
    %302 = vmatpush1.bf16.msra.mxu0 0
    %303 = vmatprep.subr.bf16.mxu0 0
    %304 = vmatpush1.bf16.msra.mxu0 0
    %305 = vmatprep.subr.bf16.mxu0 0
    %306 = vmatpush1.bf16.msra.mxu0 0
    %307 = vmatprep.subr.bf16.mxu0 0
    %308 = vmatpush1.bf16.msra.mxu0 0
    %309 = vmatprep.subr.bf16.mxu0 0
    %310 = vmatpush1.bf16.msra.mxu0 0
    %311 = vmatprep.subr.bf16.mxu0 0
    %312 = vmatpush1.bf16.msra.mxu0 0
    %313 = vmatprep.subr.bf16.mxu0 0
    %314 = vmatpush1.bf16.msra.mxu0 0
    %315 = vmatprep.mubr.bf16.mxu0 0
    %316 = vmatmul.mubr.bf16.gmra.mrb[0].mxu0 %v281
    %v317 = vpop.f32.mrb[0].mxu0
    %v318 = vadd.f32 %v91, %v317
    %v319 = vpop.f32.mrb[0].mxu0
    %v320 = vpop.f32.mrb[0].mxu0
    %v321 = vpop.f32.mrb[0].mxu0
    %322 = vdwg.mxu0
    %v324 = vsel %vm107, %v61, 0
    %326 = vmatprep.subr.bf16.mxu0 0
    %327 = vmatpush1.bf16.msra.mxu0 %v105
    %328 = vmatprep.subr.bf16.mxu0 0
    %329 = vmatpush1.bf16.msra.mxu0 0
    %330 = vmatprep.subr.bf16.mxu0 0
    %331 = vmatpush1.bf16.msra.mxu0 0
    %332 = vmatprep.subr.bf16.mxu0 0
    %333 = vmatpush1.bf16.msra.mxu0 0
    %334 = vmatprep.subr.bf16.mxu0 0
    %335 = vmatpush1.bf16.msra.mxu0 0
    %336 = vmatprep.subr.bf16.mxu0 0
    %337 = vmatpush1.bf16.msra.mxu0 0
    %338 = vmatprep.subr.bf16.mxu0 0
    %339 = vmatpush1.bf16.msra.mxu0 0
    %340 = vmatprep.subr.bf16.mxu0 0
    %341 = vmatpush1.bf16.msra.mxu0 0
    %342 = vmatprep.subr.bf16.mxu0 0
    %343 = vmatpush1.bf16.msra.mxu0 0
    %344 = vmatprep.subr.bf16.mxu0 0
    %345 = vmatpush1.bf16.msra.mxu0 0
    %346 = vmatprep.subr.bf16.mxu0 0
    %347 = vmatpush1.bf16.msra.mxu0 0
    %348 = vmatprep.subr.bf16.mxu0 0
    %349 = vmatpush1.bf16.msra.mxu0 0
    %350 = vmatprep.subr.bf16.mxu0 0
    %351 = vmatpush1.bf16.msra.mxu0 0
    %352 = vmatprep.subr.bf16.mxu0 0
    %353 = vmatpush1.bf16.msra.mxu0 0
    %354 = vmatprep.subr.bf16.mxu0 0
    %355 = vmatpush1.bf16.msra.mxu0 0
    %356 = vmatprep.subr.bf16.mxu0 0
    %357 = vmatpush1.bf16.msra.mxu0 0
    %358 = vmatprep.mubr.bf16.mxu0 0
    %359 = vmatmul.mubr.bf16.gmra.mrb[0].mxu0 %v324
    %v360 = vpop.f32.mrb[0].mxu0
    %v361 = vadd.f32 %v91, %v360
    %v362 = vpop.f32.mrb[0].mxu0
    %v363 = vpop.f32.mrb[0].mxu0
    %v364 = vpop.f32.mrb[0].mxu0
    %365 = vdwg.mxu0
    %v367 = vsel %vm107, %v62, 0
    %369 = vmatprep.subr.bf16.mxu0 0
    %370 = vmatpush1.bf16.msra.mxu0 %v105
    %371 = vmatprep.subr.bf16.mxu0 0
    %372 = vmatpush1.bf16.msra.mxu0 0
    %373 = vmatprep.subr.bf16.mxu0 0
    %374 = vmatpush1.bf16.msra.mxu0 0
    %375 = vmatprep.subr.bf16.mxu0 0
    %376 = vmatpush1.bf16.msra.mxu0 0
    %377 = vmatprep.subr.bf16.mxu0 0
    %378 = vmatpush1.bf16.msra.mxu0 0
    %379 = vmatprep.subr.bf16.mxu0 0
    %380 = vmatpush1.bf16.msra.mxu0 0
    %381 = vmatprep.subr.bf16.mxu0 0
    %382 = vmatpush1.bf16.msra.mxu0 0
    %383 = vmatprep.subr.bf16.mxu0 0
    %384 = vmatpush1.bf16.msra.mxu0 0
    %385 = vmatprep.subr.bf16.mxu0 0
    %386 = vmatpush1.bf16.msra.mxu0 0
    %387 = vmatprep.subr.bf16.mxu0 0
    %388 = vmatpush1.bf16.msra.mxu0 0
    %389 = vmatprep.subr.bf16.mxu0 0
    %390 = vmatpush1.bf16.msra.mxu0 0
    %391 = vmatprep.subr.bf16.mxu0 0
    %392 = vmatpush1.bf16.msra.mxu0 0
    %393 = vmatprep.subr.bf16.mxu0 0
    %394 = vmatpush1.bf16.msra.mxu0 0
    %395 = vmatprep.subr.bf16.mxu0 0
    %396 = vmatpush1.bf16.msra.mxu0 0
    %397 = vmatprep.subr.bf16.mxu0 0
    %398 = vmatpush1.bf16.msra.mxu0 0
    %399 = vmatprep.subr.bf16.mxu0 0
    %400 = vmatpush1.bf16.msra.mxu0 0
    %401 = vmatprep.mubr.bf16.mxu0 0
    %402 = vmatmul.mubr.bf16.gmra.mrb[0].mxu0 %v367
    %v403 = vpop.f32.mrb[0].mxu0
    %v404 = vadd.f32 %v91, %v403
    %v405 = vpop.f32.mrb[0].mxu0
    %v406 = vpop.f32.mrb[0].mxu0
    %v407 = vpop.f32.mrb[0].mxu0
    %408 = vdwg.mxu0
    %v410 = vsel %vm107, %v63, 0
    %412 = vmatprep.subr.bf16.mxu0 0
    %413 = vmatpush1.bf16.msra.mxu0 %v105
    %414 = vmatprep.subr.bf16.mxu0 0
    %415 = vmatpush1.bf16.msra.mxu0 0
    %416 = vmatprep.subr.bf16.mxu0 0
    %417 = vmatpush1.bf16.msra.mxu0 0
    %418 = vmatprep.subr.bf16.mxu0 0
    %419 = vmatpush1.bf16.msra.mxu0 0
    %420 = vmatprep.subr.bf16.mxu0 0
    %421 = vmatpush1.bf16.msra.mxu0 0
    %422 = vmatprep.subr.bf16.mxu0 0
    %423 = vmatpush1.bf16.msra.mxu0 0
    %424 = vmatprep.subr.bf16.mxu0 0
    %425 = vmatpush1.bf16.msra.mxu0 0
    %426 = vmatprep.subr.bf16.mxu0 0
    %427 = vmatpush1.bf16.msra.mxu0 0
    %428 = vmatprep.subr.bf16.mxu0 0
    %429 = vmatpush1.bf16.msra.mxu0 0
    %430 = vmatprep.subr.bf16.mxu0 0
    %431 = vmatpush1.bf16.msra.mxu0 0
    %432 = vmatprep.subr.bf16.mxu0 0
    %433 = vmatpush1.bf16.msra.mxu0 0
    %434 = vmatprep.subr.bf16.mxu0 0
    %435 = vmatpush1.bf16.msra.mxu0 0
    %436 = vmatprep.subr.bf16.mxu0 0
    %437 = vmatpush1.bf16.msra.mxu0 0
    %438 = vmatprep.subr.bf16.mxu0 0
    %439 = vmatpush1.bf16.msra.mxu0 0
    %440 = vmatprep.subr.bf16.mxu0 0
    %441 = vmatpush1.bf16.msra.mxu0 0
    %442 = vmatprep.subr.bf16.mxu0 0
    %443 = vmatpush1.bf16.msra.mxu0 0
    %444 = vmatprep.mubr.bf16.mxu0 0
    %445 = vmatmul.mubr.bf16.gmra.mrb[0].mxu0 %v410
    %v446 = vpop.f32.mrb[0].mxu0
    %v447 = vadd.f32 %v91, %v446
    %v448 = vpop.f32.mrb[0].mxu0
    %v449 = vpop.f32.mrb[0].mxu0
    %v450 = vpop.f32.mrb[0].mxu0
    %451 = vdwg.mxu0
    %v454 = vunpack.c.l.b16 %v75
    %v455 = vunpack.c.l.b16 %v76
    %v456 = vpack.c.b16 %v455, %v454
    %458 = vmatprep.subr.bf16.mxu0 0
    %459 = vmatpush1.bf16.msra.mxu0 %v456
    %460 = vmatprep.subr.bf16.mxu0 0
    %461 = vmatpush1.bf16.msra.mxu0 0
    %462 = vmatprep.subr.bf16.mxu0 0
    %463 = vmatpush1.bf16.msra.mxu0 0
    %464 = vmatprep.subr.bf16.mxu0 0
    %465 = vmatpush1.bf16.msra.mxu0 0
    %466 = vmatprep.subr.bf16.mxu0 0
    %467 = vmatpush1.bf16.msra.mxu0 0
    %468 = vmatprep.subr.bf16.mxu0 0
    %469 = vmatpush1.bf16.msra.mxu0 0
    %470 = vmatprep.subr.bf16.mxu0 0
    %471 = vmatpush1.bf16.msra.mxu0 0
    %472 = vmatprep.subr.bf16.mxu0 0
    %473 = vmatpush1.bf16.msra.mxu0 0
    %474 = vmatprep.subr.bf16.mxu0 0
    %475 = vmatpush1.bf16.msra.mxu0 0
    %476 = vmatprep.subr.bf16.mxu0 0
    %477 = vmatpush1.bf16.msra.mxu0 0
    %478 = vmatprep.subr.bf16.mxu0 0
    %479 = vmatpush1.bf16.msra.mxu0 0
    %480 = vmatprep.subr.bf16.mxu0 0
    %481 = vmatpush1.bf16.msra.mxu0 0
    %482 = vmatprep.subr.bf16.mxu0 0
    %483 = vmatpush1.bf16.msra.mxu0 0
    %484 = vmatprep.subr.bf16.mxu0 0
    %485 = vmatpush1.bf16.msra.mxu0 0
    %486 = vmatprep.subr.bf16.mxu0 0
    %487 = vmatpush1.bf16.msra.mxu0 0
    %488 = vmatprep.subr.bf16.mxu0 0
    %489 = vmatpush1.bf16.msra.mxu0 0
    %490 = vmatprep.mubr.bf16.mxu0 0
    %491 = vmatmul.mubr.bf16.gmra.mrb[0].mxu0 %v109
    %v492 = vpop.f32.mrb[0].mxu0
    %v493 = vadd.f32 %v99, %v492
    %v494 = vpop.f32.mrb[0].mxu0
    %v495 = vpop.f32.mrb[0].mxu0
    %v496 = vpop.f32.mrb[0].mxu0
    %497 = vdwg.mxu0
    %498 = vmatprep.subr.bf16.mxu0 0
    %499 = vmatpush1.bf16.msra.mxu0 %v456
    %500 = vmatprep.subr.bf16.mxu0 0
    %501 = vmatpush1.bf16.msra.mxu0 0
    %502 = vmatprep.subr.bf16.mxu0 0
    %503 = vmatpush1.bf16.msra.mxu0 0
    %504 = vmatprep.subr.bf16.mxu0 0
    %505 = vmatpush1.bf16.msra.mxu0 0
    %506 = vmatprep.subr.bf16.mxu0 0
    %507 = vmatpush1.bf16.msra.mxu0 0
    %508 = vmatprep.subr.bf16.mxu0 0
    %509 = vmatpush1.bf16.msra.mxu0 0
    %510 = vmatprep.subr.bf16.mxu0 0
    %511 = vmatpush1.bf16.msra.mxu0 0
    %512 = vmatprep.subr.bf16.mxu0 0
    %513 = vmatpush1.bf16.msra.mxu0 0
    %514 = vmatprep.subr.bf16.mxu0 0
    %515 = vmatpush1.bf16.msra.mxu0 0
    %516 = vmatprep.subr.bf16.mxu0 0
    %517 = vmatpush1.bf16.msra.mxu0 0
    %518 = vmatprep.subr.bf16.mxu0 0
    %519 = vmatpush1.bf16.msra.mxu0 0
    %520 = vmatprep.subr.bf16.mxu0 0
    %521 = vmatpush1.bf16.msra.mxu0 0
    %522 = vmatprep.subr.bf16.mxu0 0
    %523 = vmatpush1.bf16.msra.mxu0 0
    %524 = vmatprep.subr.bf16.mxu0 0
    %525 = vmatpush1.bf16.msra.mxu0 0
    %526 = vmatprep.subr.bf16.mxu0 0
    %527 = vmatpush1.bf16.msra.mxu0 0
    %528 = vmatprep.subr.bf16.mxu0 0
    %529 = vmatpush1.bf16.msra.mxu0 0
    %530 = vmatprep.mubr.bf16.mxu0 0
    %531 = vmatmul.mubr.bf16.gmra.mrb[0].mxu0 %v152
    %v532 = vpop.f32.mrb[0].mxu0
    %v533 = vadd.f32 %v99, %v532
    %v534 = vpop.f32.mrb[0].mxu0
    %v535 = vpop.f32.mrb[0].mxu0
    %v536 = vpop.f32.mrb[0].mxu0
    %537 = vdwg.mxu0
    %538 = vmatprep.subr.bf16.mxu0 0
    %539 = vmatpush1.bf16.msra.mxu0 %v456
    %540 = vmatprep.subr.bf16.mxu0 0
    %541 = vmatpush1.bf16.msra.mxu0 0
    %542 = vmatprep.subr.bf16.mxu0 0
    %543 = vmatpush1.bf16.msra.mxu0 0
    %544 = vmatprep.subr.bf16.mxu0 0
    %545 = vmatpush1.bf16.msra.mxu0 0
    %546 = vmatprep.subr.bf16.mxu0 0
    %547 = vmatpush1.bf16.msra.mxu0 0
    %548 = vmatprep.subr.bf16.mxu0 0
    %549 = vmatpush1.bf16.msra.mxu0 0
    %550 = vmatprep.subr.bf16.mxu0 0
    %551 = vmatpush1.bf16.msra.mxu0 0
    %552 = vmatprep.subr.bf16.mxu0 0
    %553 = vmatpush1.bf16.msra.mxu0 0
    %554 = vmatprep.subr.bf16.mxu0 0
    %555 = vmatpush1.bf16.msra.mxu0 0
    %556 = vmatprep.subr.bf16.mxu0 0
    %557 = vmatpush1.bf16.msra.mxu0 0
    %558 = vmatprep.subr.bf16.mxu0 0
    %559 = vmatpush1.bf16.msra.mxu0 0
    %560 = vmatprep.subr.bf16.mxu0 0
    %561 = vmatpush1.bf16.msra.mxu0 0
    %562 = vmatprep.subr.bf16.mxu0 0
    %563 = vmatpush1.bf16.msra.mxu0 0
    %564 = vmatprep.subr.bf16.mxu0 0
    %565 = vmatpush1.bf16.msra.mxu0 0
    %566 = vmatprep.subr.bf16.mxu0 0
    %567 = vmatpush1.bf16.msra.mxu0 0
    %568 = vmatprep.subr.bf16.mxu0 0
    %569 = vmatpush1.bf16.msra.mxu0 0
    %570 = vmatprep.mubr.bf16.mxu0 0
    %571 = vmatmul.mubr.bf16.gmra.mrb[0].mxu0 %v195
    %v572 = vpop.f32.mrb[0].mxu0
    %v573 = vadd.f32 %v99, %v572
    %v574 = vpop.f32.mrb[0].mxu0
    %v575 = vpop.f32.mrb[0].mxu0
    %v576 = vpop.f32.mrb[0].mxu0
    %577 = vdwg.mxu0
    %578 = vmatprep.subr.bf16.mxu0 0
    %579 = vmatpush1.bf16.msra.mxu0 %v456
    %580 = vmatprep.subr.bf16.mxu0 0
    %581 = vmatpush1.bf16.msra.mxu0 0
    %582 = vmatprep.subr.bf16.mxu0 0
    %583 = vmatpush1.bf16.msra.mxu0 0
    %584 = vmatprep.subr.bf16.mxu0 0
    %585 = vmatpush1.bf16.msra.mxu0 0
    %586 = vmatprep.subr.bf16.mxu0 0
    %587 = vmatpush1.bf16.msra.mxu0 0
    %588 = vmatprep.subr.bf16.mxu0 0
    %589 = vmatpush1.bf16.msra.mxu0 0
    %590 = vmatprep.subr.bf16.mxu0 0
    %591 = vmatpush1.bf16.msra.mxu0 0
    %592 = vmatprep.subr.bf16.mxu0 0
    %593 = vmatpush1.bf16.msra.mxu0 0
    %594 = vmatprep.subr.bf16.mxu0 0
    %595 = vmatpush1.bf16.msra.mxu0 0
    %596 = vmatprep.subr.bf16.mxu0 0
    %597 = vmatpush1.bf16.msra.mxu0 0
    %598 = vmatprep.subr.bf16.mxu0 0
    %599 = vmatpush1.bf16.msra.mxu0 0
    %600 = vmatprep.subr.bf16.mxu0 0
    %601 = vmatpush1.bf16.msra.mxu0 0
    %602 = vmatprep.subr.bf16.mxu0 0
    %603 = vmatpush1.bf16.msra.mxu0 0
    %604 = vmatprep.subr.bf16.mxu0 0
    %605 = vmatpush1.bf16.msra.mxu0 0
    %606 = vmatprep.subr.bf16.mxu0 0
    %607 = vmatpush1.bf16.msra.mxu0 0
    %608 = vmatprep.subr.bf16.mxu0 0
    %609 = vmatpush1.bf16.msra.mxu0 0
    %610 = vmatprep.mubr.bf16.mxu0 0
    %611 = vmatmul.mubr.bf16.gmra.mrb[0].mxu0 %v238
    %v612 = vpop.f32.mrb[0].mxu0
    %v613 = vadd.f32 %v99, %v612
    %v614 = vpop.f32.mrb[0].mxu0
    %v615 = vpop.f32.mrb[0].mxu0
    %v616 = vpop.f32.mrb[0].mxu0
    %617 = vdwg.mxu0
    %618 = vmatprep.subr.bf16.mxu0 0
    %619 = vmatpush1.bf16.msra.mxu0 %v456
    %620 = vmatprep.subr.bf16.mxu0 0
    %621 = vmatpush1.bf16.msra.mxu0 0
    %622 = vmatprep.subr.bf16.mxu0 0
    %623 = vmatpush1.bf16.msra.mxu0 0
    %624 = vmatprep.subr.bf16.mxu0 0
    %625 = vmatpush1.bf16.msra.mxu0 0
    %626 = vmatprep.subr.bf16.mxu0 0
    %627 = vmatpush1.bf16.msra.mxu0 0
    %628 = vmatprep.subr.bf16.mxu0 0
    %629 = vmatpush1.bf16.msra.mxu0 0
    %630 = vmatprep.subr.bf16.mxu0 0
    %631 = vmatpush1.bf16.msra.mxu0 0
    %632 = vmatprep.subr.bf16.mxu0 0
    %633 = vmatpush1.bf16.msra.mxu0 0
    %634 = vmatprep.subr.bf16.mxu0 0
    %635 = vmatpush1.bf16.msra.mxu0 0
    %636 = vmatprep.subr.bf16.mxu0 0
    %637 = vmatpush1.bf16.msra.mxu0 0
    %638 = vmatprep.subr.bf16.mxu0 0
    %639 = vmatpush1.bf16.msra.mxu0 0
    %640 = vmatprep.subr.bf16.mxu0 0
    %641 = vmatpush1.bf16.msra.mxu0 0
    %642 = vmatprep.subr.bf16.mxu0 0
    %643 = vmatpush1.bf16.msra.mxu0 0
    %644 = vmatprep.subr.bf16.mxu0 0
    %645 = vmatpush1.bf16.msra.mxu0 0
    %646 = vmatprep.subr.bf16.mxu0 0
    %647 = vmatpush1.bf16.msra.mxu0 0
    %648 = vmatprep.subr.bf16.mxu0 0
    %649 = vmatpush1.bf16.msra.mxu0 0
    %650 = vmatprep.mubr.bf16.mxu0 0
    %651 = vmatmul.mubr.bf16.gmra.mrb[0].mxu0 %v281
    %v652 = vpop.f32.mrb[0].mxu0
    %v653 = vadd.f32 %v99, %v652
    %v654 = vpop.f32.mrb[0].mxu0
    %v655 = vpop.f32.mrb[0].mxu0
    %v656 = vpop.f32.mrb[0].mxu0
    %657 = vdwg.mxu0
    %658 = vmatprep.subr.bf16.mxu0 0
    %659 = vmatpush1.bf16.msra.mxu0 %v456
    %660 = vmatprep.subr.bf16.mxu0 0
    %661 = vmatpush1.bf16.msra.mxu0 0
    %662 = vmatprep.subr.bf16.mxu0 0
    %663 = vmatpush1.bf16.msra.mxu0 0
    %664 = vmatprep.subr.bf16.mxu0 0
    %665 = vmatpush1.bf16.msra.mxu0 0
    %666 = vmatprep.subr.bf16.mxu0 0
    %667 = vmatpush1.bf16.msra.mxu0 0
    %668 = vmatprep.subr.bf16.mxu0 0
    %669 = vmatpush1.bf16.msra.mxu0 0
    %670 = vmatprep.subr.bf16.mxu0 0
    %671 = vmatpush1.bf16.msra.mxu0 0
    %672 = vmatprep.subr.bf16.mxu0 0
    %673 = vmatpush1.bf16.msra.mxu0 0
    %674 = vmatprep.subr.bf16.mxu0 0
    %675 = vmatpush1.bf16.msra.mxu0 0
    %676 = vmatprep.subr.bf16.mxu0 0
    %677 = vmatpush1.bf16.msra.mxu0 0
    %678 = vmatprep.subr.bf16.mxu0 0
    %679 = vmatpush1.bf16.msra.mxu0 0
    %680 = vmatprep.subr.bf16.mxu0 0
    %681 = vmatpush1.bf16.msra.mxu0 0
    %682 = vmatprep.subr.bf16.mxu0 0
    %683 = vmatpush1.bf16.msra.mxu0 0
    %684 = vmatprep.subr.bf16.mxu0 0
    %685 = vmatpush1.bf16.msra.mxu0 0
    %686 = vmatprep.subr.bf16.mxu0 0
    %687 = vmatpush1.bf16.msra.mxu0 0
    %688 = vmatprep.subr.bf16.mxu0 0
    %689 = vmatpush1.bf16.msra.mxu0 0
    %690 = vmatprep.mubr.bf16.mxu0 0
    %691 = vmatmul.mubr.bf16.gmra.mrb[0].mxu0 %v324
    %v692 = vpop.f32.mrb[0].mxu0
    %v693 = vadd.f32 %v99, %v692
    %v694 = vpop.f32.mrb[0].mxu0
    %v695 = vpop.f32.mrb[0].mxu0
    %v696 = vpop.f32.mrb[0].mxu0
    %697 = vdwg.mxu0
    %698 = vmatprep.subr.bf16.mxu0 0
    %699 = vmatpush1.bf16.msra.mxu0 %v456
    %700 = vmatprep.subr.bf16.mxu0 0
    %701 = vmatpush1.bf16.msra.mxu0 0
    %702 = vmatprep.subr.bf16.mxu0 0
    %703 = vmatpush1.bf16.msra.mxu0 0
    %704 = vmatprep.subr.bf16.mxu0 0
    %705 = vmatpush1.bf16.msra.mxu0 0
    %706 = vmatprep.subr.bf16.mxu0 0
    %707 = vmatpush1.bf16.msra.mxu0 0
    %708 = vmatprep.subr.bf16.mxu0 0
    %709 = vmatpush1.bf16.msra.mxu0 0
    %710 = vmatprep.subr.bf16.mxu0 0
    %711 = vmatpush1.bf16.msra.mxu0 0
    %712 = vmatprep.subr.bf16.mxu0 0
    %713 = vmatpush1.bf16.msra.mxu0 0
    %714 = vmatprep.subr.bf16.mxu0 0
    %715 = vmatpush1.bf16.msra.mxu0 0
    %716 = vmatprep.subr.bf16.mxu0 0
    %717 = vmatpush1.bf16.msra.mxu0 0
    %718 = vmatprep.subr.bf16.mxu0 0
    %719 = vmatpush1.bf16.msra.mxu0 0
    %720 = vmatprep.subr.bf16.mxu0 0
    %721 = vmatpush1.bf16.msra.mxu0 0
    %722 = vmatprep.subr.bf16.mxu0 0
    %723 = vmatpush1.bf16.msra.mxu0 0
    %724 = vmatprep.subr.bf16.mxu0 0
    %725 = vmatpush1.bf16.msra.mxu0 0
    %726 = vmatprep.subr.bf16.mxu0 0
    %727 = vmatpush1.bf16.msra.mxu0 0
    %728 = vmatprep.subr.bf16.mxu0 0
    %729 = vmatpush1.bf16.msra.mxu0 0
    %730 = vmatprep.mubr.bf16.mxu0 0
    %731 = vmatmul.mubr.bf16.gmra.mrb[0].mxu0 %v367
    %v732 = vpop.f32.mrb[0].mxu0
    %v733 = vadd.f32 %v99, %v732
    %v734 = vpop.f32.mrb[0].mxu0
    %v735 = vpop.f32.mrb[0].mxu0
    %v736 = vpop.f32.mrb[0].mxu0
    %737 = vdwg.mxu0
    %738 = vmatprep.subr.bf16.mxu0 0
    %739 = vmatpush1.bf16.msra.mxu0 %v456
    %740 = vmatprep.subr.bf16.mxu0 0
    %741 = vmatpush1.bf16.msra.mxu0 0
    %742 = vmatprep.subr.bf16.mxu0 0
    %743 = vmatpush1.bf16.msra.mxu0 0
    %744 = vmatprep.subr.bf16.mxu0 0
    %745 = vmatpush1.bf16.msra.mxu0 0
    %746 = vmatprep.subr.bf16.mxu0 0
    %747 = vmatpush1.bf16.msra.mxu0 0
    %748 = vmatprep.subr.bf16.mxu0 0
    %749 = vmatpush1.bf16.msra.mxu0 0
    %750 = vmatprep.subr.bf16.mxu0 0
    %751 = vmatpush1.bf16.msra.mxu0 0
    %752 = vmatprep.subr.bf16.mxu0 0
    %753 = vmatpush1.bf16.msra.mxu0 0
    %754 = vmatprep.subr.bf16.mxu0 0
    %755 = vmatpush1.bf16.msra.mxu0 0
    %756 = vmatprep.subr.bf16.mxu0 0
    %757 = vmatpush1.bf16.msra.mxu0 0
    %758 = vmatprep.subr.bf16.mxu0 0
    %759 = vmatpush1.bf16.msra.mxu0 0
    %760 = vmatprep.subr.bf16.mxu0 0
    %761 = vmatpush1.bf16.msra.mxu0 0
    %762 = vmatprep.subr.bf16.mxu0 0
    %763 = vmatpush1.bf16.msra.mxu0 0
    %764 = vmatprep.subr.bf16.mxu0 0
    %765 = vmatpush1.bf16.msra.mxu0 0
    %766 = vmatprep.subr.bf16.mxu0 0
    %767 = vmatpush1.bf16.msra.mxu0 0
    %768 = vmatprep.subr.bf16.mxu0 0
    %769 = vmatpush1.bf16.msra.mxu0 0
    %770 = vmatprep.mubr.bf16.mxu0 0
    %771 = vmatmul.mubr.bf16.gmra.mrb[0].mxu0 %v410
    %v772 = vpop.f32.mrb[0].mxu0
    %v773 = vadd.f32 %v99, %v772
    %v774 = vpop.f32.mrb[0].mxu0
    %v775 = vpop.f32.mrb[0].mxu0
    %v776 = vpop.f32.mrb[0].mxu0
    %777 = vdwg.mxu0
    %v782 = vunpack.c.l.b16 %v77
    %v783 = vunpack.c.l.b16 %v78
    %v784 = vunpack.c.l.b16 %v79
    %v785 = vunpack.c.l.b16 %v80
    %v786 = vpack.c.b16 %v783, %v782
    %v787 = vpack.c.b16 %v785, %v784
    %vm790 = vcmask 261120
    %v792 = vsel %vm790, 0, 0
    %794 = vmatprep.subr.bf16.mxu0 0
    %795 = vmatpush1.bf16.msra.mxu0 %v786
    %796 = vmatprep.subr.bf16.mxu0 0
    %797 = vmatpush1.bf16.msra.mxu0 %v787
    %798 = vmatprep.subr.bf16.mxu0 0
    %799 = vmatpush1.bf16.msra.mxu0 0
    %800 = vmatprep.subr.bf16.mxu0 0
    %801 = vmatpush1.bf16.msra.mxu0 0
    %802 = vmatprep.subr.bf16.mxu0 0
    %803 = vmatpush1.bf16.msra.mxu0 0
    %804 = vmatprep.subr.bf16.mxu0 0
    %805 = vmatpush1.bf16.msra.mxu0 0
    %806 = vmatprep.subr.bf16.mxu0 0
    %807 = vmatpush1.bf16.msra.mxu0 0
    %808 = vmatprep.subr.bf16.mxu0 0
    %809 = vmatpush1.bf16.msra.mxu0 0
    %810 = vmatprep.subr.bf16.mxu0 0
    %811 = vmatpush1.bf16.msra.mxu0 0
    %812 = vmatprep.subr.bf16.mxu0 0
    %813 = vmatpush1.bf16.msra.mxu0 0
    %814 = vmatprep.subr.bf16.mxu0 0
    %815 = vmatpush1.bf16.msra.mxu0 0
    %816 = vmatprep.subr.bf16.mxu0 0
    %817 = vmatpush1.bf16.msra.mxu0 0
    %818 = vmatprep.subr.bf16.mxu0 0
    %819 = vmatpush1.bf16.msra.mxu0 0
    %820 = vmatprep.subr.bf16.mxu0 0
    %821 = vmatpush1.bf16.msra.mxu0 0
    %822 = vmatprep.subr.bf16.mxu0 0
    %823 = vmatpush1.bf16.msra.mxu0 0
    %824 = vmatprep.subr.bf16.mxu0 0
    %825 = vmatpush1.bf16.msra.mxu0 0
    %826 = vmatprep.mubr.bf16.mxu0 0
    %827 = vmatmul.mubr.bf16.gmra.mrb[0].mxu0 %v792
    %v828 = vpop.f32.mrb[0].mxu0
    %v829 = vadd.f32 0.0, %v828
    %v830 = vpop.f32.mrb[0].mxu0
    %v831 = vpop.f32.mrb[0].mxu0
    %v832 = vpop.f32.mrb[0].mxu0
    %833 = vdwg.mxu0
    %v834 = vadd.f32 %v146, %v829
    %v835 = vxor.u32 %v834, 2147483648
    %v836 = vmul.f32 %v835, 1.442695
    %v837 = vpow.pop %v836
    %v838 = vadd.f32 %v837, 1.0
    %v839 = vrcp.pop %v838
    %v840 = vmul.f32 1.0, %v839
    %v841 = vtanh.pop %v834
    %v842 = vmul.f32 %v840, 0.0
    %844 = vrot.lane.b32.xlu0 %v841, 64
    %v845 = vpop.permute.xlu0 %844
    %v847 = vmul.f32 %v840, %v845
    %849 = vrot.lane.b32.xlu0 %v847, 32
    %v850 = vpop.permute.xlu0 %849
    %v852 = vadd.f32 %v842, %v850
    %v853 = vtanh.pop %v852
    %855 = vrot.lane.b32.xlu0 %v853, 64
    %v856 = vpop.permute.xlu0 %855
    %v858 = vmul.f32 %v840, %v856
    %v863 = vunpack.c.l.b16 %v82
    %v864 = vunpack.c.l.b16 %v83
    %v865 = vunpack.c.l.b16 %v84
    %v866 = vunpack.c.l.b16 %v85
    %v867 = vpack.c.b16 %v864, %v863
    %v868 = vpack.c.b16 %v866, %v865
    %871 = vmatprep.subr.bf16.mxu0 0
    %872 = vmatpush1.bf16.msra.mxu0 %v867
    %873 = vmatprep.subr.bf16.mxu0 0
    %874 = vmatpush1.bf16.msra.mxu0 %v868
    %875 = vmatprep.subr.bf16.mxu0 0
    %876 = vmatpush1.bf16.msra.mxu0 0
    %877 = vmatprep.subr.bf16.mxu0 0
    %878 = vmatpush1.bf16.msra.mxu0 0
    %879 = vmatprep.subr.bf16.mxu0 0
    %880 = vmatpush1.bf16.msra.mxu0 0
    %881 = vmatprep.subr.bf16.mxu0 0
    %882 = vmatpush1.bf16.msra.mxu0 0
    %883 = vmatprep.subr.bf16.mxu0 0
    %884 = vmatpush1.bf16.msra.mxu0 0
    %885 = vmatprep.subr.bf16.mxu0 0
    %886 = vmatpush1.bf16.msra.mxu0 0
    %887 = vmatprep.subr.bf16.mxu0 0
    %888 = vmatpush1.bf16.msra.mxu0 0
    %889 = vmatprep.subr.bf16.mxu0 0
    %890 = vmatpush1.bf16.msra.mxu0 0
    %891 = vmatprep.subr.bf16.mxu0 0
    %892 = vmatpush1.bf16.msra.mxu0 0
    %893 = vmatprep.subr.bf16.mxu0 0
    %894 = vmatpush1.bf16.msra.mxu0 0
    %895 = vmatprep.subr.bf16.mxu0 0
    %896 = vmatpush1.bf16.msra.mxu0 0
    %897 = vmatprep.subr.bf16.mxu0 0
    %898 = vmatpush1.bf16.msra.mxu0 0
    %899 = vmatprep.subr.bf16.mxu0 0
    %900 = vmatpush1.bf16.msra.mxu0 0
    %901 = vmatprep.subr.bf16.mxu0 0
    %902 = vmatpush1.bf16.msra.mxu0 0
    %903 = vmatprep.mubr.bf16.mxu0 0
    %904 = vmatmul.mubr.bf16.gmra.mrb[0].mxu0 %v792
    %v905 = vpop.f32.mrb[0].mxu0
    %v906 = vadd.f32 0.0, %v905
    %v907 = vpop.f32.mrb[0].mxu0
    %v908 = vpop.f32.mrb[0].mxu0
    %v909 = vpop.f32.mrb[0].mxu0
    %910 = vdwg.mxu0
    %v911 = vadd.f32 %v773, %v906
    %v912 = vxor.u32 %v911, 2147483648
    %v913 = vmul.f32 %v912, 1.442695
    %v914 = vpow.pop %v913
    %v915 = vadd.f32 %v914, 1.0
    %v916 = vrcp.pop %v915
    %v917 = vmul.f32 1.0, %v916
    %v918 = vtanh.pop %v911
    %v919 = vmul.f32 %v917, 0.0
    %921 = vrot.lane.b32.xlu0 %v918, 64
    %v922 = vpop.permute.xlu0 %921
    %v924 = vmul.f32 %v917, %v922
    %926 = vrot.lane.b32.xlu0 %v924, 32
    %v927 = vpop.permute.xlu0 %926
    %v929 = vadd.f32 %v919, %v927
    %v930 = vtanh.pop %v929
    %932 = vrot.lane.b32.xlu0 %v930, 64
    %v933 = vpop.permute.xlu0 %932
    %v935 = vmul.f32 %v917, %v933
    %v936 = vpack.c.bf16 %v858, %v858
    %938 = vrot.lane.b32.xlu0 %v936, 32
    %v939 = vpop.permute.xlu0 %938
    %v941 = vsel %vm790, %v939, 0
    %943 = vmatprep.subr.bf16.mxu0 0
    %944 = vmatpush1.bf16.msra.mxu0 %v786
    %945 = vmatprep.subr.bf16.mxu0 0
    %946 = vmatpush1.bf16.msra.mxu0 %v787
    %947 = vmatprep.subr.bf16.mxu0 0
    %948 = vmatpush1.bf16.msra.mxu0 0
    %949 = vmatprep.subr.bf16.mxu0 0
    %950 = vmatpush1.bf16.msra.mxu0 0
    %951 = vmatprep.subr.bf16.mxu0 0
    %952 = vmatpush1.bf16.msra.mxu0 0
    %953 = vmatprep.subr.bf16.mxu0 0
    %954 = vmatpush1.bf16.msra.mxu0 0
    %955 = vmatprep.subr.bf16.mxu0 0
    %956 = vmatpush1.bf16.msra.mxu0 0
    %957 = vmatprep.subr.bf16.mxu0 0
    %958 = vmatpush1.bf16.msra.mxu0 0
    %959 = vmatprep.subr.bf16.mxu0 0
    %960 = vmatpush1.bf16.msra.mxu0 0
    %961 = vmatprep.subr.bf16.mxu0 0
    %962 = vmatpush1.bf16.msra.mxu0 0
    %963 = vmatprep.subr.bf16.mxu0 0
    %964 = vmatpush1.bf16.msra.mxu0 0
    %965 = vmatprep.subr.bf16.mxu0 0
    %966 = vmatpush1.bf16.msra.mxu0 0
    %967 = vmatprep.subr.bf16.mxu0 0
    %968 = vmatpush1.bf16.msra.mxu0 0
    %969 = vmatprep.subr.bf16.mxu0 0
    %970 = vmatpush1.bf16.msra.mxu0 0
    %971 = vmatprep.subr.bf16.mxu0 0
    %972 = vmatpush1.bf16.msra.mxu0 0
    %973 = vmatprep.subr.bf16.mxu0 0
    %974 = vmatpush1.bf16.msra.mxu0 0
    %975 = vmatprep.mubr.bf16.mxu0 0
    %976 = vmatmul.mubr.bf16.gmra.mrb[0].mxu0 %v941
    %v977 = vpop.f32.mrb[0].mxu0
    %v978 = vadd.f32 0.0, %v977
    %v979 = vpop.f32.mrb[0].mxu0
    %v980 = vpop.f32.mrb[0].mxu0
    %v981 = vpop.f32.mrb[0].mxu0
    %982 = vdwg.mxu0
    %v983 = vadd.f32 %v189, %v978
    %v984 = vxor.u32 %v983, 2147483648
    %v985 = vmul.f32 %v984, 1.442695
    %v986 = vpow.pop %v985
    %v987 = vadd.f32 %v986, 1.0
    %v988 = vrcp.pop %v987
    %v989 = vmul.f32 1.0, %v988
    %v990 = vtanh.pop %v983
    %v991 = vmul.f32 %v989, %v852
    %993 = vrot.lane.b32.xlu0 %v990, 64
    %v994 = vpop.permute.xlu0 %993
    %v996 = vmul.f32 %v989, %v994
    %998 = vrot.lane.b32.xlu0 %v996, 32
    %v999 = vpop.permute.xlu0 %998
    %v1001 = vadd.f32 %v991, %v999
    %v1002 = vtanh.pop %v1001
    %1004 = vrot.lane.b32.xlu0 %v1002, 64
    %v1005 = vpop.permute.xlu0 %1004
    %v1007 = vmul.f32 %v989, %v1005
    %v1008 = vpack.c.bf16 %v935, %v935
    %1010 = vrot.lane.b32.xlu0 %v1008, 32
    %v1011 = vpop.permute.xlu0 %1010
    %v1013 = vsel %vm790, %v1011, 0
    %1015 = vmatprep.subr.bf16.mxu0 0
    %1016 = vmatpush1.bf16.msra.mxu0 %v867
    %1017 = vmatprep.subr.bf16.mxu0 0
    %1018 = vmatpush1.bf16.msra.mxu0 %v868
    %1019 = vmatprep.subr.bf16.mxu0 0
    %1020 = vmatpush1.bf16.msra.mxu0 0
    %1021 = vmatprep.subr.bf16.mxu0 0
    %1022 = vmatpush1.bf16.msra.mxu0 0
    %1023 = vmatprep.subr.bf16.mxu0 0
    %1024 = vmatpush1.bf16.msra.mxu0 0
    %1025 = vmatprep.subr.bf16.mxu0 0
    %1026 = vmatpush1.bf16.msra.mxu0 0
    %1027 = vmatprep.subr.bf16.mxu0 0
    %1028 = vmatpush1.bf16.msra.mxu0 0
    %1029 = vmatprep.subr.bf16.mxu0 0
    %1030 = vmatpush1.bf16.msra.mxu0 0
    %1031 = vmatprep.subr.bf16.mxu0 0
    %1032 = vmatpush1.bf16.msra.mxu0 0
    %1033 = vmatprep.subr.bf16.mxu0 0
    %1034 = vmatpush1.bf16.msra.mxu0 0
    %1035 = vmatprep.subr.bf16.mxu0 0
    %1036 = vmatpush1.bf16.msra.mxu0 0
    %1037 = vmatprep.subr.bf16.mxu0 0
    %1038 = vmatpush1.bf16.msra.mxu0 0
    %1039 = vmatprep.subr.bf16.mxu0 0
    %1040 = vmatpush1.bf16.msra.mxu0 0
    %1041 = vmatprep.subr.bf16.mxu0 0
    %1042 = vmatpush1.bf16.msra.mxu0 0
    %1043 = vmatprep.subr.bf16.mxu0 0
    %1044 = vmatpush1.bf16.msra.mxu0 0
    %1045 = vmatprep.subr.bf16.mxu0 0
    %1046 = vmatpush1.bf16.msra.mxu0 0
    %1047 = vmatprep.mubr.bf16.mxu0 0
    %1048 = vmatmul.mubr.bf16.gmra.mrb[0].mxu0 %v1013
    %v1049 = vpop.f32.mrb[0].mxu0
    %v1050 = vadd.f32 0.0, %v1049
    %v1051 = vpop.f32.mrb[0].mxu0
    %v1052 = vpop.f32.mrb[0].mxu0
    %v1053 = vpop.f32.mrb[0].mxu0
    %1054 = vdwg.mxu0
    %v1055 = vadd.f32 %v733, %v1050
    %v1056 = vxor.u32 %v1055, 2147483648
    %v1057 = vmul.f32 %v1056, 1.442695
    %v1058 = vpow.pop %v1057
    %v1059 = vadd.f32 %v1058, 1.0
    %v1060 = vrcp.pop %v1059
    %v1061 = vmul.f32 1.0, %v1060
    %v1062 = vtanh.pop %v1055
    %v1063 = vmul.f32 %v1061, %v929
    %1065 = vrot.lane.b32.xlu0 %v1062, 64
    %v1066 = vpop.permute.xlu0 %1065
    %v1068 = vmul.f32 %v1061, %v1066
    %1070 = vrot.lane.b32.xlu0 %v1068, 32
    %v1071 = vpop.permute.xlu0 %1070
    %v1073 = vadd.f32 %v1063, %v1071
    %v1074 = vtanh.pop %v1073
    %1076 = vrot.lane.b32.xlu0 %v1074, 64
    %v1077 = vpop.permute.xlu0 %1076
    %v1079 = vmul.f32 %v1061, %v1077
    %v1080 = vpack.c.bf16 %v1007, %v1007
    %1082 = vrot.lane.b32.xlu0 %v1080, 32
    %v1083 = vpop.permute.xlu0 %1082
    %v1085 = vsel %vm790, %v1083, 0
    %1087 = vmatprep.subr.bf16.mxu0 0
    %1088 = vmatpush1.bf16.msra.mxu0 %v786
    %1089 = vmatprep.subr.bf16.mxu0 0
    %1090 = vmatpush1.bf16.msra.mxu0 %v787
    %1091 = vmatprep.subr.bf16.mxu0 0
    %1092 = vmatpush1.bf16.msra.mxu0 0
    %1093 = vmatprep.subr.bf16.mxu0 0
    %1094 = vmatpush1.bf16.msra.mxu0 0
    %1095 = vmatprep.subr.bf16.mxu0 0
    %1096 = vmatpush1.bf16.msra.mxu0 0
    %1097 = vmatprep.subr.bf16.mxu0 0
    %1098 = vmatpush1.bf16.msra.mxu0 0
    %1099 = vmatprep.subr.bf16.mxu0 0
    %1100 = vmatpush1.bf16.msra.mxu0 0
    %1101 = vmatprep.subr.bf16.mxu0 0
    %1102 = vmatpush1.bf16.msra.mxu0 0
    %1103 = vmatprep.subr.bf16.mxu0 0
    %1104 = vmatpush1.bf16.msra.mxu0 0
    %1105 = vmatprep.subr.bf16.mxu0 0
    %1106 = vmatpush1.bf16.msra.mxu0 0
    %1107 = vmatprep.subr.bf16.mxu0 0
    %1108 = vmatpush1.bf16.msra.mxu0 0
    %1109 = vmatprep.subr.bf16.mxu0 0
    %1110 = vmatpush1.bf16.msra.mxu0 0
    %1111 = vmatprep.subr.bf16.mxu0 0
    %1112 = vmatpush1.bf16.msra.mxu0 0
    %1113 = vmatprep.subr.bf16.mxu0 0
    %1114 = vmatpush1.bf16.msra.mxu0 0
    %1115 = vmatprep.subr.bf16.mxu0 0
    %1116 = vmatpush1.bf16.msra.mxu0 0
    %1117 = vmatprep.subr.bf16.mxu0 0
    %1118 = vmatpush1.bf16.msra.mxu0 0
    %1119 = vmatprep.mubr.bf16.mxu0 0
    %1120 = vmatmul.mubr.bf16.gmra.mrb[0].mxu0 %v1085
    %v1121 = vpop.f32.mrb[0].mxu0
    %v1122 = vadd.f32 0.0, %v1121
    %v1123 = vpop.f32.mrb[0].mxu0
    %v1124 = vpop.f32.mrb[0].mxu0
    %v1125 = vpop.f32.mrb[0].mxu0
    %1126 = vdwg.mxu0
    %v1127 = vadd.f32 %v232, %v1122
    %v1128 = vxor.u32 %v1127, 2147483648
    %v1129 = vmul.f32 %v1128, 1.442695
    %v1130 = vpow.pop %v1129
    %v1131 = vadd.f32 %v1130, 1.0
    %v1132 = vrcp.pop %v1131
    %v1133 = vmul.f32 1.0, %v1132
    %v1134 = vtanh.pop %v1127
    %v1135 = vmul.f32 %v1133, %v1001
    %1137 = vrot.lane.b32.xlu0 %v1134, 64
    %v1138 = vpop.permute.xlu0 %1137
    %v1140 = vmul.f32 %v1133, %v1138
    %1142 = vrot.lane.b32.xlu0 %v1140, 32
    %v1143 = vpop.permute.xlu0 %1142
    %v1145 = vadd.f32 %v1135, %v1143
    %v1146 = vtanh.pop %v1145
    %1148 = vrot.lane.b32.xlu0 %v1146, 64
    %v1149 = vpop.permute.xlu0 %1148
    %v1151 = vmul.f32 %v1133, %v1149
    %v1152 = vpack.c.bf16 %v1079, %v1079
    %1154 = vrot.lane.b32.xlu0 %v1152, 32
    %v1155 = vpop.permute.xlu0 %1154
    %v1157 = vsel %vm790, %v1155, 0
    %1159 = vmatprep.subr.bf16.mxu0 0
    %1160 = vmatpush1.bf16.msra.mxu0 %v867
    %1161 = vmatprep.subr.bf16.mxu0 0
    %1162 = vmatpush1.bf16.msra.mxu0 %v868
    %1163 = vmatprep.subr.bf16.mxu0 0
    %1164 = vmatpush1.bf16.msra.mxu0 0
    %1165 = vmatprep.subr.bf16.mxu0 0
    %1166 = vmatpush1.bf16.msra.mxu0 0
    %1167 = vmatprep.subr.bf16.mxu0 0
    %1168 = vmatpush1.bf16.msra.mxu0 0
    %1169 = vmatprep.subr.bf16.mxu0 0
    %1170 = vmatpush1.bf16.msra.mxu0 0
    %1171 = vmatprep.subr.bf16.mxu0 0
    %1172 = vmatpush1.bf16.msra.mxu0 0
    %1173 = vmatprep.subr.bf16.mxu0 0
    %1174 = vmatpush1.bf16.msra.mxu0 0
    %1175 = vmatprep.subr.bf16.mxu0 0
    %1176 = vmatpush1.bf16.msra.mxu0 0
    %1177 = vmatprep.subr.bf16.mxu0 0
    %1178 = vmatpush1.bf16.msra.mxu0 0
    %1179 = vmatprep.subr.bf16.mxu0 0
    %1180 = vmatpush1.bf16.msra.mxu0 0
    %1181 = vmatprep.subr.bf16.mxu0 0
    %1182 = vmatpush1.bf16.msra.mxu0 0
    %1183 = vmatprep.subr.bf16.mxu0 0
    %1184 = vmatpush1.bf16.msra.mxu0 0
    %1185 = vmatprep.subr.bf16.mxu0 0
    %1186 = vmatpush1.bf16.msra.mxu0 0
    %1187 = vmatprep.subr.bf16.mxu0 0
    %1188 = vmatpush1.bf16.msra.mxu0 0
    %1189 = vmatprep.subr.bf16.mxu0 0
    %1190 = vmatpush1.bf16.msra.mxu0 0
    %1191 = vmatprep.mubr.bf16.mxu0 0
    %1192 = vmatmul.mubr.bf16.gmra.mrb[0].mxu0 %v1157
    %v1193 = vpop.f32.mrb[0].mxu0
    %v1194 = vadd.f32 0.0, %v1193
    %v1195 = vpop.f32.mrb[0].mxu0
    %v1196 = vpop.f32.mrb[0].mxu0
    %v1197 = vpop.f32.mrb[0].mxu0
    %1198 = vdwg.mxu0
    %v1199 = vadd.f32 %v693, %v1194
    %v1200 = vxor.u32 %v1199, 2147483648
    %v1201 = vmul.f32 %v1200, 1.442695
    %v1202 = vpow.pop %v1201
    %v1203 = vadd.f32 %v1202, 1.0
    %v1204 = vrcp.pop %v1203
    %v1205 = vmul.f32 1.0, %v1204
    %v1206 = vtanh.pop %v1199
    %v1207 = vmul.f32 %v1205, %v1073
    %1209 = vrot.lane.b32.xlu0 %v1206, 64
    %v1210 = vpop.permute.xlu0 %1209
    %v1212 = vmul.f32 %v1205, %v1210
    %1214 = vrot.lane.b32.xlu0 %v1212, 32
    %v1215 = vpop.permute.xlu0 %1214
    %v1217 = vadd.f32 %v1207, %v1215
    %v1218 = vtanh.pop %v1217
    %1220 = vrot.lane.b32.xlu0 %v1218, 64
    %v1221 = vpop.permute.xlu0 %1220
    %v1223 = vmul.f32 %v1205, %v1221
    %v1224 = vpack.c.bf16 %v1151, %v1151
    %1226 = vrot.lane.b32.xlu0 %v1224, 32
    %v1227 = vpop.permute.xlu0 %1226
    %v1229 = vsel %vm790, %v1227, 0
    %1231 = vmatprep.subr.bf16.mxu0 0
    %1232 = vmatpush1.bf16.msra.mxu0 %v786
    %1233 = vmatprep.subr.bf16.mxu0 0
    %1234 = vmatpush1.bf16.msra.mxu0 %v787
    %1235 = vmatprep.subr.bf16.mxu0 0
    %1236 = vmatpush1.bf16.msra.mxu0 0
    %1237 = vmatprep.subr.bf16.mxu0 0
    %1238 = vmatpush1.bf16.msra.mxu0 0
    %1239 = vmatprep.subr.bf16.mxu0 0
    %1240 = vmatpush1.bf16.msra.mxu0 0
    %1241 = vmatprep.subr.bf16.mxu0 0
    %1242 = vmatpush1.bf16.msra.mxu0 0
    %1243 = vmatprep.subr.bf16.mxu0 0
    %1244 = vmatpush1.bf16.msra.mxu0 0
    %1245 = vmatprep.subr.bf16.mxu0 0
    %1246 = vmatpush1.bf16.msra.mxu0 0
    %1247 = vmatprep.subr.bf16.mxu0 0
    %1248 = vmatpush1.bf16.msra.mxu0 0
    %1249 = vmatprep.subr.bf16.mxu0 0
    %1250 = vmatpush1.bf16.msra.mxu0 0
    %1251 = vmatprep.subr.bf16.mxu0 0
    %1252 = vmatpush1.bf16.msra.mxu0 0
    %1253 = vmatprep.subr.bf16.mxu0 0
    %1254 = vmatpush1.bf16.msra.mxu0 0
    %1255 = vmatprep.subr.bf16.mxu0 0
    %1256 = vmatpush1.bf16.msra.mxu0 0
    %1257 = vmatprep.subr.bf16.mxu0 0
    %1258 = vmatpush1.bf16.msra.mxu0 0
    %1259 = vmatprep.subr.bf16.mxu0 0
    %1260 = vmatpush1.bf16.msra.mxu0 0
    %1261 = vmatprep.subr.bf16.mxu0 0
    %1262 = vmatpush1.bf16.msra.mxu0 0
    %1263 = vmatprep.mubr.bf16.mxu0 0
    %1264 = vmatmul.mubr.bf16.gmra.mrb[0].mxu0 %v1229
    %v1265 = vpop.f32.mrb[0].mxu0
    %v1266 = vadd.f32 0.0, %v1265
    %v1267 = vpop.f32.mrb[0].mxu0
    %v1268 = vpop.f32.mrb[0].mxu0
    %v1269 = vpop.f32.mrb[0].mxu0
    %1270 = vdwg.mxu0
    %v1271 = vadd.f32 %v275, %v1266
    %v1272 = vxor.u32 %v1271, 2147483648
    %v1273 = vmul.f32 %v1272, 1.442695
    %v1274 = vpow.pop %v1273
    %v1275 = vadd.f32 %v1274, 1.0
    %v1276 = vrcp.pop %v1275
    %v1277 = vmul.f32 1.0, %v1276
    %v1278 = vtanh.pop %v1271
    %v1279 = vmul.f32 %v1277, %v1145
    %1281 = vrot.lane.b32.xlu0 %v1278, 64
    %v1282 = vpop.permute.xlu0 %1281
    %v1284 = vmul.f32 %v1277, %v1282
    %1286 = vrot.lane.b32.xlu0 %v1284, 32
    %v1287 = vpop.permute.xlu0 %1286
    %v1289 = vadd.f32 %v1279, %v1287
    %v1290 = vtanh.pop %v1289
    %1292 = vrot.lane.b32.xlu0 %v1290, 64
    %v1293 = vpop.permute.xlu0 %1292
    %v1295 = vmul.f32 %v1277, %v1293
    %v1296 = vpack.c.bf16 %v1223, %v1223
    %1298 = vrot.lane.b32.xlu0 %v1296, 32
    %v1299 = vpop.permute.xlu0 %1298
    %v1301 = vsel %vm790, %v1299, 0
    %1303 = vmatprep.subr.bf16.mxu0 0
    %1304 = vmatpush1.bf16.msra.mxu0 %v867
    %1305 = vmatprep.subr.bf16.mxu0 0
    %1306 = vmatpush1.bf16.msra.mxu0 %v868
    %1307 = vmatprep.subr.bf16.mxu0 0
    %1308 = vmatpush1.bf16.msra.mxu0 0
    %1309 = vmatprep.subr.bf16.mxu0 0
    %1310 = vmatpush1.bf16.msra.mxu0 0
    %1311 = vmatprep.subr.bf16.mxu0 0
    %1312 = vmatpush1.bf16.msra.mxu0 0
    %1313 = vmatprep.subr.bf16.mxu0 0
    %1314 = vmatpush1.bf16.msra.mxu0 0
    %1315 = vmatprep.subr.bf16.mxu0 0
    %1316 = vmatpush1.bf16.msra.mxu0 0
    %1317 = vmatprep.subr.bf16.mxu0 0
    %1318 = vmatpush1.bf16.msra.mxu0 0
    %1319 = vmatprep.subr.bf16.mxu0 0
    %1320 = vmatpush1.bf16.msra.mxu0 0
    %1321 = vmatprep.subr.bf16.mxu0 0
    %1322 = vmatpush1.bf16.msra.mxu0 0
    %1323 = vmatprep.subr.bf16.mxu0 0
    %1324 = vmatpush1.bf16.msra.mxu0 0
    %1325 = vmatprep.subr.bf16.mxu0 0
    %1326 = vmatpush1.bf16.msra.mxu0 0
    %1327 = vmatprep.subr.bf16.mxu0 0
    %1328 = vmatpush1.bf16.msra.mxu0 0
    %1329 = vmatprep.subr.bf16.mxu0 0
    %1330 = vmatpush1.bf16.msra.mxu0 0
    %1331 = vmatprep.subr.bf16.mxu0 0
    %1332 = vmatpush1.bf16.msra.mxu0 0
    %1333 = vmatprep.subr.bf16.mxu0 0
    %1334 = vmatpush1.bf16.msra.mxu0 0
    %1335 = vmatprep.mubr.bf16.mxu0 0
    %1336 = vmatmul.mubr.bf16.gmra.mrb[0].mxu0 %v1301
    %v1337 = vpop.f32.mrb[0].mxu0
    %v1338 = vadd.f32 0.0, %v1337
    %v1339 = vpop.f32.mrb[0].mxu0
    %v1340 = vpop.f32.mrb[0].mxu0
    %v1341 = vpop.f32.mrb[0].mxu0
    %1342 = vdwg.mxu0
    %v1343 = vadd.f32 %v653, %v1338
    %v1344 = vxor.u32 %v1343, 2147483648
    %v1345 = vmul.f32 %v1344, 1.442695
    %v1346 = vpow.pop %v1345
    %v1347 = vadd.f32 %v1346, 1.0
    %v1348 = vrcp.pop %v1347
    %v1349 = vmul.f32 1.0, %v1348
    %v1350 = vtanh.pop %v1343
    %v1351 = vmul.f32 %v1349, %v1217
    %1353 = vrot.lane.b32.xlu0 %v1350, 64
    %v1354 = vpop.permute.xlu0 %1353
    %v1356 = vmul.f32 %v1349, %v1354
    %1358 = vrot.lane.b32.xlu0 %v1356, 32
    %v1359 = vpop.permute.xlu0 %1358
    %v1361 = vadd.f32 %v1351, %v1359
    %v1362 = vtanh.pop %v1361
    %1364 = vrot.lane.b32.xlu0 %v1362, 64
    %v1365 = vpop.permute.xlu0 %1364
    %v1367 = vmul.f32 %v1349, %v1365
    %v1368 = vpack.c.bf16 %v1295, %v1295
    %1370 = vrot.lane.b32.xlu0 %v1368, 32
    %v1371 = vpop.permute.xlu0 %1370
    %v1373 = vsel %vm790, %v1371, 0
    %1375 = vmatprep.subr.bf16.mxu0 0
    %1376 = vmatpush1.bf16.msra.mxu0 %v786
    %1377 = vmatprep.subr.bf16.mxu0 0
    %1378 = vmatpush1.bf16.msra.mxu0 %v787
    %1379 = vmatprep.subr.bf16.mxu0 0
    %1380 = vmatpush1.bf16.msra.mxu0 0
    %1381 = vmatprep.subr.bf16.mxu0 0
    %1382 = vmatpush1.bf16.msra.mxu0 0
    %1383 = vmatprep.subr.bf16.mxu0 0
    %1384 = vmatpush1.bf16.msra.mxu0 0
    %1385 = vmatprep.subr.bf16.mxu0 0
    %1386 = vmatpush1.bf16.msra.mxu0 0
    %1387 = vmatprep.subr.bf16.mxu0 0
    %1388 = vmatpush1.bf16.msra.mxu0 0
    %1389 = vmatprep.subr.bf16.mxu0 0
    %1390 = vmatpush1.bf16.msra.mxu0 0
    %1391 = vmatprep.subr.bf16.mxu0 0
    %1392 = vmatpush1.bf16.msra.mxu0 0
    %1393 = vmatprep.subr.bf16.mxu0 0
    %1394 = vmatpush1.bf16.msra.mxu0 0
    %1395 = vmatprep.subr.bf16.mxu0 0
    %1396 = vmatpush1.bf16.msra.mxu0 0
    %1397 = vmatprep.subr.bf16.mxu0 0
    %1398 = vmatpush1.bf16.msra.mxu0 0
    %1399 = vmatprep.subr.bf16.mxu0 0
    %1400 = vmatpush1.bf16.msra.mxu0 0
    %1401 = vmatprep.subr.bf16.mxu0 0
    %1402 = vmatpush1.bf16.msra.mxu0 0
    %1403 = vmatprep.subr.bf16.mxu0 0
    %1404 = vmatpush1.bf16.msra.mxu0 0
    %1405 = vmatprep.subr.bf16.mxu0 0
    %1406 = vmatpush1.bf16.msra.mxu0 0
    %1407 = vmatprep.mubr.bf16.mxu0 0
    %1408 = vmatmul.mubr.bf16.gmra.mrb[0].mxu0 %v1373
    %v1409 = vpop.f32.mrb[0].mxu0
    %v1410 = vadd.f32 0.0, %v1409
    %v1411 = vpop.f32.mrb[0].mxu0
    %v1412 = vpop.f32.mrb[0].mxu0
    %v1413 = vpop.f32.mrb[0].mxu0
    %1414 = vdwg.mxu0
    %v1415 = vadd.f32 %v318, %v1410
    %v1416 = vxor.u32 %v1415, 2147483648
    %v1417 = vmul.f32 %v1416, 1.442695
    %v1418 = vpow.pop %v1417
    %v1419 = vadd.f32 %v1418, 1.0
    %v1420 = vrcp.pop %v1419
    %v1421 = vmul.f32 1.0, %v1420
    %v1422 = vtanh.pop %v1415
    %v1423 = vmul.f32 %v1421, %v1289
    %1425 = vrot.lane.b32.xlu0 %v1422, 64
    %v1426 = vpop.permute.xlu0 %1425
    %v1428 = vmul.f32 %v1421, %v1426
    %1430 = vrot.lane.b32.xlu0 %v1428, 32
    %v1431 = vpop.permute.xlu0 %1430
    %v1433 = vadd.f32 %v1423, %v1431
    %v1434 = vtanh.pop %v1433
    %1436 = vrot.lane.b32.xlu0 %v1434, 64
    %v1437 = vpop.permute.xlu0 %1436
    %v1439 = vmul.f32 %v1421, %v1437
    %v1440 = vpack.c.bf16 %v1367, %v1367
    %1442 = vrot.lane.b32.xlu0 %v1440, 32
    %v1443 = vpop.permute.xlu0 %1442
    %v1445 = vsel %vm790, %v1443, 0
    %1447 = vmatprep.subr.bf16.mxu0 0
    %1448 = vmatpush1.bf16.msra.mxu0 %v867
    %1449 = vmatprep.subr.bf16.mxu0 0
    %1450 = vmatpush1.bf16.msra.mxu0 %v868
    %1451 = vmatprep.subr.bf16.mxu0 0
    %1452 = vmatpush1.bf16.msra.mxu0 0
    %1453 = vmatprep.subr.bf16.mxu0 0
    %1454 = vmatpush1.bf16.msra.mxu0 0
    %1455 = vmatprep.subr.bf16.mxu0 0
    %1456 = vmatpush1.bf16.msra.mxu0 0
    %1457 = vmatprep.subr.bf16.mxu0 0
    %1458 = vmatpush1.bf16.msra.mxu0 0
    %1459 = vmatprep.subr.bf16.mxu0 0
    %1460 = vmatpush1.bf16.msra.mxu0 0
    %1461 = vmatprep.subr.bf16.mxu0 0
    %1462 = vmatpush1.bf16.msra.mxu0 0
    %1463 = vmatprep.subr.bf16.mxu0 0
    %1464 = vmatpush1.bf16.msra.mxu0 0
    %1465 = vmatprep.subr.bf16.mxu0 0
    %1466 = vmatpush1.bf16.msra.mxu0 0
    %1467 = vmatprep.subr.bf16.mxu0 0
    %1468 = vmatpush1.bf16.msra.mxu0 0
    %1469 = vmatprep.subr.bf16.mxu0 0
    %1470 = vmatpush1.bf16.msra.mxu0 0
    %1471 = vmatprep.subr.bf16.mxu0 0
    %1472 = vmatpush1.bf16.msra.mxu0 0
    %1473 = vmatprep.subr.bf16.mxu0 0
    %1474 = vmatpush1.bf16.msra.mxu0 0
    %1475 = vmatprep.subr.bf16.mxu0 0
    %1476 = vmatpush1.bf16.msra.mxu0 0
    %1477 = vmatprep.subr.bf16.mxu0 0
    %1478 = vmatpush1.bf16.msra.mxu0 0
    %1479 = vmatprep.mubr.bf16.mxu0 0
    %1480 = vmatmul.mubr.bf16.gmra.mrb[0].mxu0 %v1445
    %v1481 = vpop.f32.mrb[0].mxu0
    %v1482 = vadd.f32 0.0, %v1481
    %v1483 = vpop.f32.mrb[0].mxu0
    %v1484 = vpop.f32.mrb[0].mxu0
    %v1485 = vpop.f32.mrb[0].mxu0
    %1486 = vdwg.mxu0
    %v1487 = vadd.f32 %v613, %v1482
    %v1488 = vxor.u32 %v1487, 2147483648
    %v1489 = vmul.f32 %v1488, 1.442695
    %v1490 = vpow.pop %v1489
    %v1491 = vadd.f32 %v1490, 1.0
    %v1492 = vrcp.pop %v1491
    %v1493 = vmul.f32 1.0, %v1492
    %v1494 = vtanh.pop %v1487
    %v1495 = vmul.f32 %v1493, %v1361
    %1497 = vrot.lane.b32.xlu0 %v1494, 64
    %v1498 = vpop.permute.xlu0 %1497
    %v1500 = vmul.f32 %v1493, %v1498
    %1502 = vrot.lane.b32.xlu0 %v1500, 32
    %v1503 = vpop.permute.xlu0 %1502
    %v1505 = vadd.f32 %v1495, %v1503
    %v1506 = vtanh.pop %v1505
    %1508 = vrot.lane.b32.xlu0 %v1506, 64
    %v1509 = vpop.permute.xlu0 %1508
    %v1511 = vmul.f32 %v1493, %v1509
    %v1512 = vpack.c.bf16 %v1439, %v1439
    %1514 = vrot.lane.b32.xlu0 %v1512, 32
    %v1515 = vpop.permute.xlu0 %1514
    %v1517 = vsel %vm790, %v1515, 0
    %1519 = vmatprep.subr.bf16.mxu0 0
    %1520 = vmatpush1.bf16.msra.mxu0 %v786
    %1521 = vmatprep.subr.bf16.mxu0 0
    %1522 = vmatpush1.bf16.msra.mxu0 %v787
    %1523 = vmatprep.subr.bf16.mxu0 0
    %1524 = vmatpush1.bf16.msra.mxu0 0
    %1525 = vmatprep.subr.bf16.mxu0 0
    %1526 = vmatpush1.bf16.msra.mxu0 0
    %1527 = vmatprep.subr.bf16.mxu0 0
    %1528 = vmatpush1.bf16.msra.mxu0 0
    %1529 = vmatprep.subr.bf16.mxu0 0
    %1530 = vmatpush1.bf16.msra.mxu0 0
    %1531 = vmatprep.subr.bf16.mxu0 0
    %1532 = vmatpush1.bf16.msra.mxu0 0
    %1533 = vmatprep.subr.bf16.mxu0 0
    %1534 = vmatpush1.bf16.msra.mxu0 0
    %1535 = vmatprep.subr.bf16.mxu0 0
    %1536 = vmatpush1.bf16.msra.mxu0 0
    %1537 = vmatprep.subr.bf16.mxu0 0
    %1538 = vmatpush1.bf16.msra.mxu0 0
    %1539 = vmatprep.subr.bf16.mxu0 0
    %1540 = vmatpush1.bf16.msra.mxu0 0
    %1541 = vmatprep.subr.bf16.mxu0 0
    %1542 = vmatpush1.bf16.msra.mxu0 0
    %1543 = vmatprep.subr.bf16.mxu0 0
    %1544 = vmatpush1.bf16.msra.mxu0 0
    %1545 = vmatprep.subr.bf16.mxu0 0
    %1546 = vmatpush1.bf16.msra.mxu0 0
    %1547 = vmatprep.subr.bf16.mxu0 0
    %1548 = vmatpush1.bf16.msra.mxu0 0
    %1549 = vmatprep.subr.bf16.mxu0 0
    %1550 = vmatpush1.bf16.msra.mxu0 0
    %1551 = vmatprep.mubr.bf16.mxu0 0
    %1552 = vmatmul.mubr.bf16.gmra.mrb[0].mxu0 %v1517
    %v1553 = vpop.f32.mrb[0].mxu0
    %v1554 = vadd.f32 0.0, %v1553
    %v1555 = vpop.f32.mrb[0].mxu0
    %v1556 = vpop.f32.mrb[0].mxu0
    %v1557 = vpop.f32.mrb[0].mxu0
    %1558 = vdwg.mxu0
    %v1559 = vadd.f32 %v361, %v1554
    %v1560 = vxor.u32 %v1559, 2147483648
    %v1561 = vmul.f32 %v1560, 1.442695
    %v1562 = vpow.pop %v1561
    %v1563 = vadd.f32 %v1562, 1.0
    %v1564 = vrcp.pop %v1563
    %v1565 = vmul.f32 1.0, %v1564
    %v1566 = vtanh.pop %v1559
    %v1567 = vmul.f32 %v1565, %v1433
    %1569 = vrot.lane.b32.xlu0 %v1566, 64
    %v1570 = vpop.permute.xlu0 %1569
    %v1572 = vmul.f32 %v1565, %v1570
    %1574 = vrot.lane.b32.xlu0 %v1572, 32
    %v1575 = vpop.permute.xlu0 %1574
    %v1577 = vadd.f32 %v1567, %v1575
    %v1578 = vtanh.pop %v1577
    %1580 = vrot.lane.b32.xlu0 %v1578, 64
    %v1581 = vpop.permute.xlu0 %1580
    %v1583 = vmul.f32 %v1565, %v1581
    %v1584 = vpack.c.bf16 %v1511, %v1511
    %1586 = vrot.lane.b32.xlu0 %v1584, 32
    %v1587 = vpop.permute.xlu0 %1586
    %v1589 = vsel %vm790, %v1587, 0
    %1591 = vmatprep.subr.bf16.mxu0 0
    %1592 = vmatpush1.bf16.msra.mxu0 %v867
    %1593 = vmatprep.subr.bf16.mxu0 0
    %1594 = vmatpush1.bf16.msra.mxu0 %v868
    %1595 = vmatprep.subr.bf16.mxu0 0
    %1596 = vmatpush1.bf16.msra.mxu0 0
    %1597 = vmatprep.subr.bf16.mxu0 0
    %1598 = vmatpush1.bf16.msra.mxu0 0
    %1599 = vmatprep.subr.bf16.mxu0 0
    %1600 = vmatpush1.bf16.msra.mxu0 0
    %1601 = vmatprep.subr.bf16.mxu0 0
    %1602 = vmatpush1.bf16.msra.mxu0 0
    %1603 = vmatprep.subr.bf16.mxu0 0
    %1604 = vmatpush1.bf16.msra.mxu0 0
    %1605 = vmatprep.subr.bf16.mxu0 0
    %1606 = vmatpush1.bf16.msra.mxu0 0
    %1607 = vmatprep.subr.bf16.mxu0 0
    %1608 = vmatpush1.bf16.msra.mxu0 0
    %1609 = vmatprep.subr.bf16.mxu0 0
    %1610 = vmatpush1.bf16.msra.mxu0 0
    %1611 = vmatprep.subr.bf16.mxu0 0
    %1612 = vmatpush1.bf16.msra.mxu0 0
    %1613 = vmatprep.subr.bf16.mxu0 0
    %1614 = vmatpush1.bf16.msra.mxu0 0
    %1615 = vmatprep.subr.bf16.mxu0 0
    %1616 = vmatpush1.bf16.msra.mxu0 0
    %1617 = vmatprep.subr.bf16.mxu0 0
    %1618 = vmatpush1.bf16.msra.mxu0 0
    %1619 = vmatprep.subr.bf16.mxu0 0
    %1620 = vmatpush1.bf16.msra.mxu0 0
    %1621 = vmatprep.subr.bf16.mxu0 0
    %1622 = vmatpush1.bf16.msra.mxu0 0
    %1623 = vmatprep.mubr.bf16.mxu0 0
    %1624 = vmatmul.mubr.bf16.gmra.mrb[0].mxu0 %v1589
    %v1625 = vpop.f32.mrb[0].mxu0
    %v1626 = vadd.f32 0.0, %v1625
    %v1627 = vpop.f32.mrb[0].mxu0
    %v1628 = vpop.f32.mrb[0].mxu0
    %v1629 = vpop.f32.mrb[0].mxu0
    %1630 = vdwg.mxu0
    %v1631 = vadd.f32 %v573, %v1626
    %v1632 = vxor.u32 %v1631, 2147483648
    %v1633 = vmul.f32 %v1632, 1.442695
    %v1634 = vpow.pop %v1633
    %v1635 = vadd.f32 %v1634, 1.0
    %v1636 = vrcp.pop %v1635
    %v1637 = vmul.f32 1.0, %v1636
    %v1638 = vtanh.pop %v1631
    %v1639 = vmul.f32 %v1637, %v1505
    %1641 = vrot.lane.b32.xlu0 %v1638, 64
    %v1642 = vpop.permute.xlu0 %1641
    %v1644 = vmul.f32 %v1637, %v1642
    %1646 = vrot.lane.b32.xlu0 %v1644, 32
    %v1647 = vpop.permute.xlu0 %1646
    %v1649 = vadd.f32 %v1639, %v1647
    %v1650 = vtanh.pop %v1649
    %1652 = vrot.lane.b32.xlu0 %v1650, 64
    %v1653 = vpop.permute.xlu0 %1652
    %v1655 = vmul.f32 %v1637, %v1653
    %v1656 = vpack.c.bf16 %v1583, %v1583
    %1658 = vrot.lane.b32.xlu0 %v1656, 32
    %v1659 = vpop.permute.xlu0 %1658
    %v1661 = vsel %vm790, %v1659, 0
    %1663 = vmatprep.subr.bf16.mxu0 0
    %1664 = vmatpush1.bf16.msra.mxu0 %v786
    %1665 = vmatprep.subr.bf16.mxu0 0
    %1666 = vmatpush1.bf16.msra.mxu0 %v787
    %1667 = vmatprep.subr.bf16.mxu0 0
    %1668 = vmatpush1.bf16.msra.mxu0 0
    %1669 = vmatprep.subr.bf16.mxu0 0
    %1670 = vmatpush1.bf16.msra.mxu0 0
    %1671 = vmatprep.subr.bf16.mxu0 0
    %1672 = vmatpush1.bf16.msra.mxu0 0
    %1673 = vmatprep.subr.bf16.mxu0 0
    %1674 = vmatpush1.bf16.msra.mxu0 0
    %1675 = vmatprep.subr.bf16.mxu0 0
    %1676 = vmatpush1.bf16.msra.mxu0 0
    %1677 = vmatprep.subr.bf16.mxu0 0
    %1678 = vmatpush1.bf16.msra.mxu0 0
    %1679 = vmatprep.subr.bf16.mxu0 0
    %1680 = vmatpush1.bf16.msra.mxu0 0
    %1681 = vmatprep.subr.bf16.mxu0 0
    %1682 = vmatpush1.bf16.msra.mxu0 0
    %1683 = vmatprep.subr.bf16.mxu0 0
    %1684 = vmatpush1.bf16.msra.mxu0 0
    %1685 = vmatprep.subr.bf16.mxu0 0
    %1686 = vmatpush1.bf16.msra.mxu0 0
    %1687 = vmatprep.subr.bf16.mxu0 0
    %1688 = vmatpush1.bf16.msra.mxu0 0
    %1689 = vmatprep.subr.bf16.mxu0 0
    %1690 = vmatpush1.bf16.msra.mxu0 0
    %1691 = vmatprep.subr.bf16.mxu0 0
    %1692 = vmatpush1.bf16.msra.mxu0 0
    %1693 = vmatprep.subr.bf16.mxu0 0
    %1694 = vmatpush1.bf16.msra.mxu0 0
    %1695 = vmatprep.mubr.bf16.mxu0 0
    %1696 = vmatmul.mubr.bf16.gmra.mrb[0].mxu0 %v1661
    %v1697 = vpop.f32.mrb[0].mxu0
    %v1698 = vadd.f32 0.0, %v1697
    %v1699 = vpop.f32.mrb[0].mxu0
    %v1700 = vpop.f32.mrb[0].mxu0
    %v1701 = vpop.f32.mrb[0].mxu0
    %1702 = vdwg.mxu0
    %v1703 = vadd.f32 %v404, %v1698
    %v1704 = vxor.u32 %v1703, 2147483648
    %v1705 = vmul.f32 %v1704, 1.442695
    %v1706 = vpow.pop %v1705
    %v1707 = vadd.f32 %v1706, 1.0
    %v1708 = vrcp.pop %v1707
    %v1709 = vmul.f32 1.0, %v1708
    %v1710 = vtanh.pop %v1703
    %v1711 = vmul.f32 %v1709, %v1577
    %1713 = vrot.lane.b32.xlu0 %v1710, 64
    %v1714 = vpop.permute.xlu0 %1713
    %v1716 = vmul.f32 %v1709, %v1714
    %1718 = vrot.lane.b32.xlu0 %v1716, 32
    %v1719 = vpop.permute.xlu0 %1718
    %v1721 = vadd.f32 %v1711, %v1719
    %v1722 = vtanh.pop %v1721
    %1724 = vrot.lane.b32.xlu0 %v1722, 64
    %v1725 = vpop.permute.xlu0 %1724
    %v1727 = vmul.f32 %v1709, %v1725
    %v1728 = vpack.c.bf16 %v1655, %v1655
    %1730 = vrot.lane.b32.xlu0 %v1728, 32
    %v1731 = vpop.permute.xlu0 %1730
    %v1733 = vsel %vm790, %v1731, 0
    %1735 = vmatprep.subr.bf16.mxu0 0
    %1736 = vmatpush1.bf16.msra.mxu0 %v867
    %1737 = vmatprep.subr.bf16.mxu0 0
    %1738 = vmatpush1.bf16.msra.mxu0 %v868
    %1739 = vmatprep.subr.bf16.mxu0 0
    %1740 = vmatpush1.bf16.msra.mxu0 0
    %1741 = vmatprep.subr.bf16.mxu0 0
    %1742 = vmatpush1.bf16.msra.mxu0 0
    %1743 = vmatprep.subr.bf16.mxu0 0
    %1744 = vmatpush1.bf16.msra.mxu0 0
    %1745 = vmatprep.subr.bf16.mxu0 0
    %1746 = vmatpush1.bf16.msra.mxu0 0
    %1747 = vmatprep.subr.bf16.mxu0 0
    %1748 = vmatpush1.bf16.msra.mxu0 0
    %1749 = vmatprep.subr.bf16.mxu0 0
    %1750 = vmatpush1.bf16.msra.mxu0 0
    %1751 = vmatprep.subr.bf16.mxu0 0
    %1752 = vmatpush1.bf16.msra.mxu0 0
    %1753 = vmatprep.subr.bf16.mxu0 0
    %1754 = vmatpush1.bf16.msra.mxu0 0
    %1755 = vmatprep.subr.bf16.mxu0 0
    %1756 = vmatpush1.bf16.msra.mxu0 0
    %1757 = vmatprep.subr.bf16.mxu0 0
    %1758 = vmatpush1.bf16.msra.mxu0 0
    %1759 = vmatprep.subr.bf16.mxu0 0
    %1760 = vmatpush1.bf16.msra.mxu0 0
    %1761 = vmatprep.subr.bf16.mxu0 0
    %1762 = vmatpush1.bf16.msra.mxu0 0
    %1763 = vmatprep.subr.bf16.mxu0 0
    %1764 = vmatpush1.bf16.msra.mxu0 0
    %1765 = vmatprep.subr.bf16.mxu0 0
    %1766 = vmatpush1.bf16.msra.mxu0 0
    %1767 = vmatprep.mubr.bf16.mxu0 0
    %1768 = vmatmul.mubr.bf16.gmra.mrb[0].mxu0 %v1733
    %v1769 = vpop.f32.mrb[0].mxu0
    %v1770 = vadd.f32 0.0, %v1769
    %v1771 = vpop.f32.mrb[0].mxu0
    %v1772 = vpop.f32.mrb[0].mxu0
    %v1773 = vpop.f32.mrb[0].mxu0
    %1774 = vdwg.mxu0
    %v1775 = vadd.f32 %v533, %v1770
    %v1776 = vxor.u32 %v1775, 2147483648
    %v1777 = vmul.f32 %v1776, 1.442695
    %v1778 = vpow.pop %v1777
    %v1779 = vadd.f32 %v1778, 1.0
    %v1780 = vrcp.pop %v1779
    %v1781 = vmul.f32 1.0, %v1780
    %v1782 = vtanh.pop %v1775
    %v1783 = vmul.f32 %v1781, %v1649
    %1785 = vrot.lane.b32.xlu0 %v1782, 64
    %v1786 = vpop.permute.xlu0 %1785
    %v1788 = vmul.f32 %v1781, %v1786
    %1790 = vrot.lane.b32.xlu0 %v1788, 32
    %v1791 = vpop.permute.xlu0 %1790
    %v1793 = vadd.f32 %v1783, %v1791
    %v1794 = vtanh.pop %v1793
    %1796 = vrot.lane.b32.xlu0 %v1794, 64
    %v1797 = vpop.permute.xlu0 %1796
    %v1799 = vmul.f32 %v1781, %v1797
    %v1800 = vpack.c.bf16 %v1727, %v1727
    %1802 = vrot.lane.b32.xlu0 %v1800, 32
    %v1803 = vpop.permute.xlu0 %1802
    %v1805 = vsel %vm790, %v1803, 0
    %1807 = vmatprep.subr.bf16.mxu0 0
    %1808 = vmatpush1.bf16.msra.mxu0 %v786
    %1809 = vmatprep.subr.bf16.mxu0 0
    %1810 = vmatpush1.bf16.msra.mxu0 %v787
    %1811 = vmatprep.subr.bf16.mxu0 0
    %1812 = vmatpush1.bf16.msra.mxu0 0
    %1813 = vmatprep.subr.bf16.mxu0 0
    %1814 = vmatpush1.bf16.msra.mxu0 0
    %1815 = vmatprep.subr.bf16.mxu0 0
    %1816 = vmatpush1.bf16.msra.mxu0 0
    %1817 = vmatprep.subr.bf16.mxu0 0
    %1818 = vmatpush1.bf16.msra.mxu0 0
    %1819 = vmatprep.subr.bf16.mxu0 0
    %1820 = vmatpush1.bf16.msra.mxu0 0
    %1821 = vmatprep.subr.bf16.mxu0 0
    %1822 = vmatpush1.bf16.msra.mxu0 0
    %1823 = vmatprep.subr.bf16.mxu0 0
    %1824 = vmatpush1.bf16.msra.mxu0 0
    %1825 = vmatprep.subr.bf16.mxu0 0
    %1826 = vmatpush1.bf16.msra.mxu0 0
    %1827 = vmatprep.subr.bf16.mxu0 0
    %1828 = vmatpush1.bf16.msra.mxu0 0
    %1829 = vmatprep.subr.bf16.mxu0 0
    %1830 = vmatpush1.bf16.msra.mxu0 0
    %1831 = vmatprep.subr.bf16.mxu0 0
    %1832 = vmatpush1.bf16.msra.mxu0 0
    %1833 = vmatprep.subr.bf16.mxu0 0
    %1834 = vmatpush1.bf16.msra.mxu0 0
    %1835 = vmatprep.subr.bf16.mxu0 0
    %1836 = vmatpush1.bf16.msra.mxu0 0
    %1837 = vmatprep.subr.bf16.mxu0 0
    %1838 = vmatpush1.bf16.msra.mxu0 0
    %1839 = vmatprep.mubr.bf16.mxu0 0
    %1840 = vmatmul.mubr.bf16.gmra.mrb[0].mxu0 %v1805
    %v1841 = vpop.f32.mrb[0].mxu0
    %v1842 = vadd.f32 0.0, %v1841
    %v1843 = vpop.f32.mrb[0].mxu0
    %v1844 = vpop.f32.mrb[0].mxu0
    %v1845 = vpop.f32.mrb[0].mxu0
    %1846 = vdwg.mxu0
    %v1847 = vadd.f32 %v447, %v1842
    %v1848 = vxor.u32 %v1847, 2147483648
    %v1849 = vmul.f32 %v1848, 1.442695
    %v1850 = vpow.pop %v1849
    %v1851 = vadd.f32 %v1850, 1.0
    %v1852 = vrcp.pop %v1851
    %v1853 = vmul.f32 1.0, %v1852
    %v1854 = vtanh.pop %v1847
    %v1855 = vmul.f32 %v1853, %v1721
    %1857 = vrot.lane.b32.xlu0 %v1854, 64
    %v1858 = vpop.permute.xlu0 %1857
    %v1860 = vmul.f32 %v1853, %v1858
    %1862 = vrot.lane.b32.xlu0 %v1860, 32
    %v1863 = vpop.permute.xlu0 %1862
    %v1865 = vadd.f32 %v1855, %v1863
    %v1866 = vtanh.pop %v1865
    %1868 = vrot.lane.b32.xlu0 %v1866, 64
    %v1869 = vpop.permute.xlu0 %1868
    %v1871 = vmul.f32 %v1853, %v1869
    %v1872 = vpack.c.bf16 %v1799, %v1799
    %1874 = vrot.lane.b32.xlu0 %v1872, 32
    %v1875 = vpop.permute.xlu0 %1874
    %v1877 = vsel %vm790, %v1875, 0
    %1879 = vmatprep.subr.bf16.mxu0 0
    %1880 = vmatpush1.bf16.msra.mxu0 %v867
    %1881 = vmatprep.subr.bf16.mxu0 0
    %1882 = vmatpush1.bf16.msra.mxu0 %v868
    %1883 = vmatprep.subr.bf16.mxu0 0
    %1884 = vmatpush1.bf16.msra.mxu0 0
    %1885 = vmatprep.subr.bf16.mxu0 0
    %1886 = vmatpush1.bf16.msra.mxu0 0
    %1887 = vmatprep.subr.bf16.mxu0 0
    %1888 = vmatpush1.bf16.msra.mxu0 0
    %1889 = vmatprep.subr.bf16.mxu0 0
    %1890 = vmatpush1.bf16.msra.mxu0 0
    %1891 = vmatprep.subr.bf16.mxu0 0
    %1892 = vmatpush1.bf16.msra.mxu0 0
    %1893 = vmatprep.subr.bf16.mxu0 0
    %1894 = vmatpush1.bf16.msra.mxu0 0
    %1895 = vmatprep.subr.bf16.mxu0 0
    %1896 = vmatpush1.bf16.msra.mxu0 0
    %1897 = vmatprep.subr.bf16.mxu0 0
    %1898 = vmatpush1.bf16.msra.mxu0 0
    %1899 = vmatprep.subr.bf16.mxu0 0
    %1900 = vmatpush1.bf16.msra.mxu0 0
    %1901 = vmatprep.subr.bf16.mxu0 0
    %1902 = vmatpush1.bf16.msra.mxu0 0
    %1903 = vmatprep.subr.bf16.mxu0 0
    %1904 = vmatpush1.bf16.msra.mxu0 0
    %1905 = vmatprep.subr.bf16.mxu0 0
    %1906 = vmatpush1.bf16.msra.mxu0 0
    %1907 = vmatprep.subr.bf16.mxu0 0
    %1908 = vmatpush1.bf16.msra.mxu0 0
    %1909 = vmatprep.subr.bf16.mxu0 0
    %1910 = vmatpush1.bf16.msra.mxu0 0
    %1911 = vmatprep.mubr.bf16.mxu0 0
    %1912 = vmatmul.mubr.bf16.gmra.mrb[0].mxu0 %v1877
    %v1913 = vpop.f32.mrb[0].mxu0
    %v1914 = vadd.f32 0.0, %v1913
    %v1915 = vpop.f32.mrb[0].mxu0
    %v1916 = vpop.f32.mrb[0].mxu0
    %v1917 = vpop.f32.mrb[0].mxu0
    %1918 = vdwg.mxu0
    %v1919 = vadd.f32 %v493, %v1914
    %v1920 = vxor.u32 %v1919, 2147483648
    %v1921 = vmul.f32 %v1920, 1.442695
    %v1922 = vpow.pop %v1921
    %v1923 = vadd.f32 %v1922, 1.0
    %v1924 = vrcp.pop %v1923
    %v1925 = vmul.f32 1.0, %v1924
    %v1926 = vtanh.pop %v1919
    %v1927 = vmul.f32 %v1925, %v1793
    %1929 = vrot.lane.b32.xlu0 %v1926, 64
    %v1930 = vpop.permute.xlu0 %1929
    %v1932 = vmul.f32 %v1925, %v1930
    %1934 = vrot.lane.b32.xlu0 %v1932, 32
    %v1935 = vpop.permute.xlu0 %1934
    %v1937 = vadd.f32 %v1927, %v1935
    %v1938 = vtanh.pop %v1937
    %1940 = vrot.lane.b32.xlu0 %v1938, 64
    %v1941 = vpop.permute.xlu0 %1940
    %v1943 = vmul.f32 %v1925, %v1941
    %v1944 = vld [vmem:[%s4] sm:$0xf]
    %v1945 = vld [vmem:[%s4 + $0x4] sm:$0xf]
    %s1946 = scalar_lea.vmem %s4, 8
    %v1947 = vld [vmem:[%s1946] sm:$0xf]
    %v1948 = vld [vmem:[%s1946 + $0x4] sm:$0xf]
    %v1949 = vld [vmem:[%s5] sm:$0xf]
    %v1950 = vld [vmem:[%s5 + $0x4] sm:$0xf]
    %v1951 = vld [vmem:[%s5 + $0x8] sm:$0xf]
    %v1952 = vld [vmem:[%s5 + $0xc] sm:$0xf]
    %s1953 = scalar_lea.vmem %s5, 16
    %v1954 = vld [vmem:[%s1953] sm:$0xf]
    %v1955 = vld [vmem:[%s1953 + $0x4] sm:$0xf]
    %v1956 = vld [vmem:[%s1953 + $0x8] sm:$0xf]
    %v1957 = vld [vmem:[%s1953 + $0xc] sm:$0xf]
    %v1958 = vld [vmem:[%s6] sm:$0x1]
    %v1960 = vlaneseq
    %v1961 = vshrl.u32 %v1960, 7
    %v1962 = vsub.s32 0, %v1961
    %v1963 = vrot.slane %v1958, %v1962
    %s1965 = scalar_lea.vmem %s6, 1
    %v1966 = vld [vmem:[%s1965] sm:$0x1]
    %v1968 = vlaneseq
    %v1969 = vshrl.u32 %v1968, 7
    %v1970 = vsub.s32 0, %v1969
    %v1971 = vrot.slane %v1966, %v1970
    %v1975 = vunpack.c.l.b16 %v1944
    %v1976 = vunpack.c.l.b16 %v1945
    %v1977 = vpack.c.b16 %v1976, %v1975
    %v1980 = vsel %vm107, %v64, 0
    %1982 = vmatprep.subr.bf16.mxu0 0
    %1983 = vmatpush1.bf16.msra.mxu0 %v1977
    %1984 = vmatprep.subr.bf16.mxu0 0
    %1985 = vmatpush1.bf16.msra.mxu0 0
    %1986 = vmatprep.subr.bf16.mxu0 0
    %1987 = vmatpush1.bf16.msra.mxu0 0
    %1988 = vmatprep.subr.bf16.mxu0 0
    %1989 = vmatpush1.bf16.msra.mxu0 0
    %1990 = vmatprep.subr.bf16.mxu0 0
    %1991 = vmatpush1.bf16.msra.mxu0 0
    %1992 = vmatprep.subr.bf16.mxu0 0
    %1993 = vmatpush1.bf16.msra.mxu0 0
    %1994 = vmatprep.subr.bf16.mxu0 0
    %1995 = vmatpush1.bf16.msra.mxu0 0
    %1996 = vmatprep.subr.bf16.mxu0 0
    %1997 = vmatpush1.bf16.msra.mxu0 0
    %1998 = vmatprep.subr.bf16.mxu0 0
    %1999 = vmatpush1.bf16.msra.mxu0 0
    %2000 = vmatprep.subr.bf16.mxu0 0
    %2001 = vmatpush1.bf16.msra.mxu0 0
    %2002 = vmatprep.subr.bf16.mxu0 0
    %2003 = vmatpush1.bf16.msra.mxu0 0
    %2004 = vmatprep.subr.bf16.mxu0 0
    %2005 = vmatpush1.bf16.msra.mxu0 0
    %2006 = vmatprep.subr.bf16.mxu0 0
    %2007 = vmatpush1.bf16.msra.mxu0 0
    %2008 = vmatprep.subr.bf16.mxu0 0
    %2009 = vmatpush1.bf16.msra.mxu0 0
    %2010 = vmatprep.subr.bf16.mxu0 0
    %2011 = vmatpush1.bf16.msra.mxu0 0
    %2012 = vmatprep.subr.bf16.mxu0 0
    %2013 = vmatpush1.bf16.msra.mxu0 0
    %2014 = vmatprep.mubr.bf16.mxu0 0
    %2015 = vmatmul.mubr.bf16.gmra.mrb[0].mxu0 %v1980
    %v2016 = vpop.f32.mrb[0].mxu0
    %v2017 = vadd.f32 %v1963, %v2016
    %v2018 = vpop.f32.mrb[0].mxu0
    %v2019 = vpop.f32.mrb[0].mxu0
    %v2020 = vpop.f32.mrb[0].mxu0
    %2021 = vdwg.mxu0
    %v2023 = vsel %vm107, %v65, 0
    %2025 = vmatprep.subr.bf16.mxu0 0
    %2026 = vmatpush1.bf16.msra.mxu0 %v1977
    %2027 = vmatprep.subr.bf16.mxu0 0
    %2028 = vmatpush1.bf16.msra.mxu0 0
    %2029 = vmatprep.subr.bf16.mxu0 0
    %2030 = vmatpush1.bf16.msra.mxu0 0
    %2031 = vmatprep.subr.bf16.mxu0 0
    %2032 = vmatpush1.bf16.msra.mxu0 0
    %2033 = vmatprep.subr.bf16.mxu0 0
    %2034 = vmatpush1.bf16.msra.mxu0 0
    %2035 = vmatprep.subr.bf16.mxu0 0
    %2036 = vmatpush1.bf16.msra.mxu0 0
    %2037 = vmatprep.subr.bf16.mxu0 0
    %2038 = vmatpush1.bf16.msra.mxu0 0
    %2039 = vmatprep.subr.bf16.mxu0 0
    %2040 = vmatpush1.bf16.msra.mxu0 0
    %2041 = vmatprep.subr.bf16.mxu0 0
    %2042 = vmatpush1.bf16.msra.mxu0 0
    %2043 = vmatprep.subr.bf16.mxu0 0
    %2044 = vmatpush1.bf16.msra.mxu0 0
    %2045 = vmatprep.subr.bf16.mxu0 0
    %2046 = vmatpush1.bf16.msra.mxu0 0
    %2047 = vmatprep.subr.bf16.mxu0 0
    %2048 = vmatpush1.bf16.msra.mxu0 0
    %2049 = vmatprep.subr.bf16.mxu0 0
    %2050 = vmatpush1.bf16.msra.mxu0 0
    %2051 = vmatprep.subr.bf16.mxu0 0
    %2052 = vmatpush1.bf16.msra.mxu0 0
    %2053 = vmatprep.subr.bf16.mxu0 0
    %2054 = vmatpush1.bf16.msra.mxu0 0
    %2055 = vmatprep.subr.bf16.mxu0 0
    %2056 = vmatpush1.bf16.msra.mxu0 0
    %2057 = vmatprep.mubr.bf16.mxu0 0
    %2058 = vmatmul.mubr.bf16.gmra.mrb[0].mxu0 %v2023
    %v2059 = vpop.f32.mrb[0].mxu0
    %v2060 = vadd.f32 %v1963, %v2059
    %v2061 = vpop.f32.mrb[0].mxu0
    %v2062 = vpop.f32.mrb[0].mxu0
    %v2063 = vpop.f32.mrb[0].mxu0
    %2064 = vdwg.mxu0
    %v2066 = vsel %vm107, %v66, 0
    %2068 = vmatprep.subr.bf16.mxu0 0
    %2069 = vmatpush1.bf16.msra.mxu0 %v1977
    %2070 = vmatprep.subr.bf16.mxu0 0
    %2071 = vmatpush1.bf16.msra.mxu0 0
    %2072 = vmatprep.subr.bf16.mxu0 0
    %2073 = vmatpush1.bf16.msra.mxu0 0
    %2074 = vmatprep.subr.bf16.mxu0 0
    %2075 = vmatpush1.bf16.msra.mxu0 0
    %2076 = vmatprep.subr.bf16.mxu0 0
    %2077 = vmatpush1.bf16.msra.mxu0 0
    %2078 = vmatprep.subr.bf16.mxu0 0
    %2079 = vmatpush1.bf16.msra.mxu0 0
    %2080 = vmatprep.subr.bf16.mxu0 0
    %2081 = vmatpush1.bf16.msra.mxu0 0
    %2082 = vmatprep.subr.bf16.mxu0 0
    %2083 = vmatpush1.bf16.msra.mxu0 0
    %2084 = vmatprep.subr.bf16.mxu0 0
    %2085 = vmatpush1.bf16.msra.mxu0 0
    %2086 = vmatprep.subr.bf16.mxu0 0
    %2087 = vmatpush1.bf16.msra.mxu0 0
    %2088 = vmatprep.subr.bf16.mxu0 0
    %2089 = vmatpush1.bf16.msra.mxu0 0
    %2090 = vmatprep.subr.bf16.mxu0 0
    %2091 = vmatpush1.bf16.msra.mxu0 0
    %2092 = vmatprep.subr.bf16.mxu0 0
    %2093 = vmatpush1.bf16.msra.mxu0 0
    %2094 = vmatprep.subr.bf16.mxu0 0
    %2095 = vmatpush1.bf16.msra.mxu0 0
    %2096 = vmatprep.subr.bf16.mxu0 0
    %2097 = vmatpush1.bf16.msra.mxu0 0
    %2098 = vmatprep.subr.bf16.mxu0 0
    %2099 = vmatpush1.bf16.msra.mxu0 0
    %2100 = vmatprep.mubr.bf16.mxu0 0
    %2101 = vmatmul.mubr.bf16.gmra.mrb[0].mxu0 %v2066
    %v2102 = vpop.f32.mrb[0].mxu0
    %v2103 = vadd.f32 %v1963, %v2102
    %v2104 = vpop.f32.mrb[0].mxu0
    %v2105 = vpop.f32.mrb[0].mxu0
    %v2106 = vpop.f32.mrb[0].mxu0
    %2107 = vdwg.mxu0
    %v2109 = vsel %vm107, %v67, 0
    %2111 = vmatprep.subr.bf16.mxu0 0
    %2112 = vmatpush1.bf16.msra.mxu0 %v1977
    %2113 = vmatprep.subr.bf16.mxu0 0
    %2114 = vmatpush1.bf16.msra.mxu0 0
    %2115 = vmatprep.subr.bf16.mxu0 0
    %2116 = vmatpush1.bf16.msra.mxu0 0
    %2117 = vmatprep.subr.bf16.mxu0 0
    %2118 = vmatpush1.bf16.msra.mxu0 0
    %2119 = vmatprep.subr.bf16.mxu0 0
    %2120 = vmatpush1.bf16.msra.mxu0 0
    %2121 = vmatprep.subr.bf16.mxu0 0
    %2122 = vmatpush1.bf16.msra.mxu0 0
    %2123 = vmatprep.subr.bf16.mxu0 0
    %2124 = vmatpush1.bf16.msra.mxu0 0
    %2125 = vmatprep.subr.bf16.mxu0 0
    %2126 = vmatpush1.bf16.msra.mxu0 0
    %2127 = vmatprep.subr.bf16.mxu0 0
    %2128 = vmatpush1.bf16.msra.mxu0 0
    %2129 = vmatprep.subr.bf16.mxu0 0
    %2130 = vmatpush1.bf16.msra.mxu0 0
    %2131 = vmatprep.subr.bf16.mxu0 0
    %2132 = vmatpush1.bf16.msra.mxu0 0
    %2133 = vmatprep.subr.bf16.mxu0 0
    %2134 = vmatpush1.bf16.msra.mxu0 0
    %2135 = vmatprep.subr.bf16.mxu0 0
    %2136 = vmatpush1.bf16.msra.mxu0 0
    %2137 = vmatprep.subr.bf16.mxu0 0
    %2138 = vmatpush1.bf16.msra.mxu0 0
    %2139 = vmatprep.subr.bf16.mxu0 0
    %2140 = vmatpush1.bf16.msra.mxu0 0
    %2141 = vmatprep.subr.bf16.mxu0 0
    %2142 = vmatpush1.bf16.msra.mxu0 0
    %2143 = vmatprep.mubr.bf16.mxu0 0
    %2144 = vmatmul.mubr.bf16.gmra.mrb[0].mxu0 %v2109
    %v2145 = vpop.f32.mrb[0].mxu0
    %v2146 = vadd.f32 %v1963, %v2145
    %v2147 = vpop.f32.mrb[0].mxu0
    %v2148 = vpop.f32.mrb[0].mxu0
    %v2149 = vpop.f32.mrb[0].mxu0
    %2150 = vdwg.mxu0
    %v2152 = vsel %vm107, %v68, 0
    %2154 = vmatprep.subr.bf16.mxu0 0
    %2155 = vmatpush1.bf16.msra.mxu0 %v1977
    %2156 = vmatprep.subr.bf16.mxu0 0
    %2157 = vmatpush1.bf16.msra.mxu0 0
    %2158 = vmatprep.subr.bf16.mxu0 0
    %2159 = vmatpush1.bf16.msra.mxu0 0
    %2160 = vmatprep.subr.bf16.mxu0 0
    %2161 = vmatpush1.bf16.msra.mxu0 0
    %2162 = vmatprep.subr.bf16.mxu0 0
    %2163 = vmatpush1.bf16.msra.mxu0 0
    %2164 = vmatprep.subr.bf16.mxu0 0
    %2165 = vmatpush1.bf16.msra.mxu0 0
    %2166 = vmatprep.subr.bf16.mxu0 0
    %2167 = vmatpush1.bf16.msra.mxu0 0
    %2168 = vmatprep.subr.bf16.mxu0 0
    %2169 = vmatpush1.bf16.msra.mxu0 0
    %2170 = vmatprep.subr.bf16.mxu0 0
    %2171 = vmatpush1.bf16.msra.mxu0 0
    %2172 = vmatprep.subr.bf16.mxu0 0
    %2173 = vmatpush1.bf16.msra.mxu0 0
    %2174 = vmatprep.subr.bf16.mxu0 0
    %2175 = vmatpush1.bf16.msra.mxu0 0
    %2176 = vmatprep.subr.bf16.mxu0 0
    %2177 = vmatpush1.bf16.msra.mxu0 0
    %2178 = vmatprep.subr.bf16.mxu0 0
    %2179 = vmatpush1.bf16.msra.mxu0 0
    %2180 = vmatprep.subr.bf16.mxu0 0
    %2181 = vmatpush1.bf16.msra.mxu0 0
    %2182 = vmatprep.subr.bf16.mxu0 0
    %2183 = vmatpush1.bf16.msra.mxu0 0
    %2184 = vmatprep.subr.bf16.mxu0 0
    %2185 = vmatpush1.bf16.msra.mxu0 0
    %2186 = vmatprep.mubr.bf16.mxu0 0
    %2187 = vmatmul.mubr.bf16.gmra.mrb[0].mxu0 %v2152
    %v2188 = vpop.f32.mrb[0].mxu0
    %v2189 = vadd.f32 %v1963, %v2188
    %v2190 = vpop.f32.mrb[0].mxu0
    %v2191 = vpop.f32.mrb[0].mxu0
    %v2192 = vpop.f32.mrb[0].mxu0
    %2193 = vdwg.mxu0
    %v2195 = vsel %vm107, %v69, 0
    %2197 = vmatprep.subr.bf16.mxu0 0
    %2198 = vmatpush1.bf16.msra.mxu0 %v1977
    %2199 = vmatprep.subr.bf16.mxu0 0
    %2200 = vmatpush1.bf16.msra.mxu0 0
    %2201 = vmatprep.subr.bf16.mxu0 0
    %2202 = vmatpush1.bf16.msra.mxu0 0
    %2203 = vmatprep.subr.bf16.mxu0 0
    %2204 = vmatpush1.bf16.msra.mxu0 0
    %2205 = vmatprep.subr.bf16.mxu0 0
    %2206 = vmatpush1.bf16.msra.mxu0 0
    %2207 = vmatprep.subr.bf16.mxu0 0
    %2208 = vmatpush1.bf16.msra.mxu0 0
    %2209 = vmatprep.subr.bf16.mxu0 0
    %2210 = vmatpush1.bf16.msra.mxu0 0
    %2211 = vmatprep.subr.bf16.mxu0 0
    %2212 = vmatpush1.bf16.msra.mxu0 0
    %2213 = vmatprep.subr.bf16.mxu0 0
    %2214 = vmatpush1.bf16.msra.mxu0 0
    %2215 = vmatprep.subr.bf16.mxu0 0
    %2216 = vmatpush1.bf16.msra.mxu0 0
    %2217 = vmatprep.subr.bf16.mxu0 0
    %2218 = vmatpush1.bf16.msra.mxu0 0
    %2219 = vmatprep.subr.bf16.mxu0 0
    %2220 = vmatpush1.bf16.msra.mxu0 0
    %2221 = vmatprep.subr.bf16.mxu0 0
    %2222 = vmatpush1.bf16.msra.mxu0 0
    %2223 = vmatprep.subr.bf16.mxu0 0
    %2224 = vmatpush1.bf16.msra.mxu0 0
    %2225 = vmatprep.subr.bf16.mxu0 0
    %2226 = vmatpush1.bf16.msra.mxu0 0
    %2227 = vmatprep.subr.bf16.mxu0 0
    %2228 = vmatpush1.bf16.msra.mxu0 0
    %2229 = vmatprep.mubr.bf16.mxu0 0
    %2230 = vmatmul.mubr.bf16.gmra.mrb[0].mxu0 %v2195
    %v2231 = vpop.f32.mrb[0].mxu0
    %v2232 = vadd.f32 %v1963, %v2231
    %v2233 = vpop.f32.mrb[0].mxu0
    %v2234 = vpop.f32.mrb[0].mxu0
    %v2235 = vpop.f32.mrb[0].mxu0
    %2236 = vdwg.mxu0
    %v2238 = vsel %vm107, %v70, 0
    %2240 = vmatprep.subr.bf16.mxu0 0
    %2241 = vmatpush1.bf16.msra.mxu0 %v1977
    %2242 = vmatprep.subr.bf16.mxu0 0
    %2243 = vmatpush1.bf16.msra.mxu0 0
    %2244 = vmatprep.subr.bf16.mxu0 0
    %2245 = vmatpush1.bf16.msra.mxu0 0
    %2246 = vmatprep.subr.bf16.mxu0 0
    %2247 = vmatpush1.bf16.msra.mxu0 0
    %2248 = vmatprep.subr.bf16.mxu0 0
    %2249 = vmatpush1.bf16.msra.mxu0 0
    %2250 = vmatprep.subr.bf16.mxu0 0
    %2251 = vmatpush1.bf16.msra.mxu0 0
    %2252 = vmatprep.subr.bf16.mxu0 0
    %2253 = vmatpush1.bf16.msra.mxu0 0
    %2254 = vmatprep.subr.bf16.mxu0 0
    %2255 = vmatpush1.bf16.msra.mxu0 0
    %2256 = vmatprep.subr.bf16.mxu0 0
    %2257 = vmatpush1.bf16.msra.mxu0 0
    %2258 = vmatprep.subr.bf16.mxu0 0
    %2259 = vmatpush1.bf16.msra.mxu0 0
    %2260 = vmatprep.subr.bf16.mxu0 0
    %2261 = vmatpush1.bf16.msra.mxu0 0
    %2262 = vmatprep.subr.bf16.mxu0 0
    %2263 = vmatpush1.bf16.msra.mxu0 0
    %2264 = vmatprep.subr.bf16.mxu0 0
    %2265 = vmatpush1.bf16.msra.mxu0 0
    %2266 = vmatprep.subr.bf16.mxu0 0
    %2267 = vmatpush1.bf16.msra.mxu0 0
    %2268 = vmatprep.subr.bf16.mxu0 0
    %2269 = vmatpush1.bf16.msra.mxu0 0
    %2270 = vmatprep.subr.bf16.mxu0 0
    %2271 = vmatpush1.bf16.msra.mxu0 0
    %2272 = vmatprep.mubr.bf16.mxu0 0
    %2273 = vmatmul.mubr.bf16.gmra.mrb[0].mxu0 %v2238
    %v2274 = vpop.f32.mrb[0].mxu0
    %v2275 = vadd.f32 %v1963, %v2274
    %v2276 = vpop.f32.mrb[0].mxu0
    %v2277 = vpop.f32.mrb[0].mxu0
    %v2278 = vpop.f32.mrb[0].mxu0
    %2279 = vdwg.mxu0
    %v2281 = vsel %vm107, %v71, 0
    %2283 = vmatprep.subr.bf16.mxu0 0
    %2284 = vmatpush1.bf16.msra.mxu0 %v1977
    %2285 = vmatprep.subr.bf16.mxu0 0
    %2286 = vmatpush1.bf16.msra.mxu0 0
    %2287 = vmatprep.subr.bf16.mxu0 0
    %2288 = vmatpush1.bf16.msra.mxu0 0
    %2289 = vmatprep.subr.bf16.mxu0 0
    %2290 = vmatpush1.bf16.msra.mxu0 0
    %2291 = vmatprep.subr.bf16.mxu0 0
    %2292 = vmatpush1.bf16.msra.mxu0 0
    %2293 = vmatprep.subr.bf16.mxu0 0
    %2294 = vmatpush1.bf16.msra.mxu0 0
    %2295 = vmatprep.subr.bf16.mxu0 0
    %2296 = vmatpush1.bf16.msra.mxu0 0
    %2297 = vmatprep.subr.bf16.mxu0 0
    %2298 = vmatpush1.bf16.msra.mxu0 0
    %2299 = vmatprep.subr.bf16.mxu0 0
    %2300 = vmatpush1.bf16.msra.mxu0 0
    %2301 = vmatprep.subr.bf16.mxu0 0
    %2302 = vmatpush1.bf16.msra.mxu0 0
    %2303 = vmatprep.subr.bf16.mxu0 0
    %2304 = vmatpush1.bf16.msra.mxu0 0
    %2305 = vmatprep.subr.bf16.mxu0 0
    %2306 = vmatpush1.bf16.msra.mxu0 0
    %2307 = vmatprep.subr.bf16.mxu0 0
    %2308 = vmatpush1.bf16.msra.mxu0 0
    %2309 = vmatprep.subr.bf16.mxu0 0
    %2310 = vmatpush1.bf16.msra.mxu0 0
    %2311 = vmatprep.subr.bf16.mxu0 0
    %2312 = vmatpush1.bf16.msra.mxu0 0
    %2313 = vmatprep.subr.bf16.mxu0 0
    %2314 = vmatpush1.bf16.msra.mxu0 0
    %2315 = vmatprep.mubr.bf16.mxu0 0
    %2316 = vmatmul.mubr.bf16.gmra.mrb[0].mxu0 %v2281
    %v2317 = vpop.f32.mrb[0].mxu0
    %v2318 = vadd.f32 %v1963, %v2317
    %v2319 = vpop.f32.mrb[0].mxu0
    %v2320 = vpop.f32.mrb[0].mxu0
    %v2321 = vpop.f32.mrb[0].mxu0
    %2322 = vdwg.mxu0
    %v2325 = vunpack.c.l.b16 %v1947
    %v2326 = vunpack.c.l.b16 %v1948
    %v2327 = vpack.c.b16 %v2326, %v2325
    %2329 = vmatprep.subr.bf16.mxu0 0
    %2330 = vmatpush1.bf16.msra.mxu0 %v2327
    %2331 = vmatprep.subr.bf16.mxu0 0
    %2332 = vmatpush1.bf16.msra.mxu0 0
    %2333 = vmatprep.subr.bf16.mxu0 0
    %2334 = vmatpush1.bf16.msra.mxu0 0
    %2335 = vmatprep.subr.bf16.mxu0 0
    %2336 = vmatpush1.bf16.msra.mxu0 0
    %2337 = vmatprep.subr.bf16.mxu0 0
    %2338 = vmatpush1.bf16.msra.mxu0 0
    %2339 = vmatprep.subr.bf16.mxu0 0
    %2340 = vmatpush1.bf16.msra.mxu0 0
    %2341 = vmatprep.subr.bf16.mxu0 0
    %2342 = vmatpush1.bf16.msra.mxu0 0
    %2343 = vmatprep.subr.bf16.mxu0 0
    %2344 = vmatpush1.bf16.msra.mxu0 0
    %2345 = vmatprep.subr.bf16.mxu0 0
    %2346 = vmatpush1.bf16.msra.mxu0 0
    %2347 = vmatprep.subr.bf16.mxu0 0
    %2348 = vmatpush1.bf16.msra.mxu0 0
    %2349 = vmatprep.subr.bf16.mxu0 0
    %2350 = vmatpush1.bf16.msra.mxu0 0
    %2351 = vmatprep.subr.bf16.mxu0 0
    %2352 = vmatpush1.bf16.msra.mxu0 0
    %2353 = vmatprep.subr.bf16.mxu0 0
    %2354 = vmatpush1.bf16.msra.mxu0 0
    %2355 = vmatprep.subr.bf16.mxu0 0
    %2356 = vmatpush1.bf16.msra.mxu0 0
    %2357 = vmatprep.subr.bf16.mxu0 0
    %2358 = vmatpush1.bf16.msra.mxu0 0
    %2359 = vmatprep.subr.bf16.mxu0 0
    %2360 = vmatpush1.bf16.msra.mxu0 0
    %2361 = vmatprep.mubr.bf16.mxu0 0
    %2362 = vmatmul.mubr.bf16.gmra.mrb[0].mxu0 %v2281
    %v2363 = vpop.f32.mrb[0].mxu0
    %v2364 = vadd.f32 %v1971, %v2363
    %v2365 = vpop.f32.mrb[0].mxu0
    %v2366 = vpop.f32.mrb[0].mxu0
    %v2367 = vpop.f32.mrb[0].mxu0
    %2368 = vdwg.mxu0
    %v2369 = vpack.c.bf16 %v1871, %v1871
    %2371 = vrot.lane.b32.xlu0 %v2369, 32
    %v2372 = vpop.permute.xlu0 %2371
    %v2377 = vunpack.c.l.b16 %v1949
    %v2378 = vunpack.c.l.b16 %v1950
    %v2379 = vunpack.c.l.b16 %v1951
    %v2380 = vunpack.c.l.b16 %v1952
    %v2381 = vpack.c.b16 %v2378, %v2377
    %v2382 = vpack.c.b16 %v2380, %v2379
    %v2386 = vsel %vm790, %v2372, 0
    %2388 = vmatprep.subr.bf16.mxu0 0
    %2389 = vmatpush1.bf16.msra.mxu0 %v2381
    %2390 = vmatprep.subr.bf16.mxu0 0
    %2391 = vmatpush1.bf16.msra.mxu0 %v2382
    %2392 = vmatprep.subr.bf16.mxu0 0
    %2393 = vmatpush1.bf16.msra.mxu0 0
    %2394 = vmatprep.subr.bf16.mxu0 0
    %2395 = vmatpush1.bf16.msra.mxu0 0
    %2396 = vmatprep.subr.bf16.mxu0 0
    %2397 = vmatpush1.bf16.msra.mxu0 0
    %2398 = vmatprep.subr.bf16.mxu0 0
    %2399 = vmatpush1.bf16.msra.mxu0 0
    %2400 = vmatprep.subr.bf16.mxu0 0
    %2401 = vmatpush1.bf16.msra.mxu0 0
    %2402 = vmatprep.subr.bf16.mxu0 0
    %2403 = vmatpush1.bf16.msra.mxu0 0
    %2404 = vmatprep.subr.bf16.mxu0 0
    %2405 = vmatpush1.bf16.msra.mxu0 0
    %2406 = vmatprep.subr.bf16.mxu0 0
    %2407 = vmatpush1.bf16.msra.mxu0 0
    %2408 = vmatprep.subr.bf16.mxu0 0
    %2409 = vmatpush1.bf16.msra.mxu0 0
    %2410 = vmatprep.subr.bf16.mxu0 0
    %2411 = vmatpush1.bf16.msra.mxu0 0
    %2412 = vmatprep.subr.bf16.mxu0 0
    %2413 = vmatpush1.bf16.msra.mxu0 0
    %2414 = vmatprep.subr.bf16.mxu0 0
    %2415 = vmatpush1.bf16.msra.mxu0 0
    %2416 = vmatprep.subr.bf16.mxu0 0
    %2417 = vmatpush1.bf16.msra.mxu0 0
    %2418 = vmatprep.subr.bf16.mxu0 0
    %2419 = vmatpush1.bf16.msra.mxu0 0
    %2420 = vmatprep.mubr.bf16.mxu0 0
    %2421 = vmatmul.mubr.bf16.gmra.mrb[0].mxu0 %v2386
    %v2422 = vpop.f32.mrb[0].mxu0
    %v2423 = vadd.f32 0.0, %v2422
    %v2424 = vpop.f32.mrb[0].mxu0
    %v2425 = vpop.f32.mrb[0].mxu0
    %v2426 = vpop.f32.mrb[0].mxu0
    %2427 = vdwg.mxu0
    %v2428 = vadd.f32 %v2017, %v2423
    %v2429 = vxor.u32 %v2428, 2147483648
    %v2430 = vmul.f32 %v2429, 1.442695
    %v2431 = vpow.pop %v2430
    %v2432 = vadd.f32 %v2431, 1.0
    %v2433 = vrcp.pop %v2432
    %v2434 = vmul.f32 1.0, %v2433
    %v2435 = vtanh.pop %v2428
    %v2436 = vmul.f32 %v2434, %v1865
    %2438 = vrot.lane.b32.xlu0 %v2435, 64
    %v2439 = vpop.permute.xlu0 %2438
    %v2441 = vmul.f32 %v2434, %v2439
    %2443 = vrot.lane.b32.xlu0 %v2441, 32
    %v2444 = vpop.permute.xlu0 %2443
    %v2446 = vadd.f32 %v2436, %v2444
    %v2447 = vtanh.pop %v2446
    %2449 = vrot.lane.b32.xlu0 %v2447, 64
    %v2450 = vpop.permute.xlu0 %2449
    %v2452 = vmul.f32 %v2434, %v2450
    %v2453 = vpack.c.bf16 %v1943, %v1943
    %2455 = vrot.lane.b32.xlu0 %v2453, 32
    %v2456 = vpop.permute.xlu0 %2455
    %v2461 = vunpack.c.l.b16 %v1954
    %v2462 = vunpack.c.l.b16 %v1955
    %v2463 = vunpack.c.l.b16 %v1956
    %v2464 = vunpack.c.l.b16 %v1957
    %v2465 = vpack.c.b16 %v2462, %v2461
    %v2466 = vpack.c.b16 %v2464, %v2463
    %v2470 = vsel %vm790, %v2456, 0
    %2472 = vmatprep.subr.bf16.mxu0 0
    %2473 = vmatpush1.bf16.msra.mxu0 %v2465
    %2474 = vmatprep.subr.bf16.mxu0 0
    %2475 = vmatpush1.bf16.msra.mxu0 %v2466
    %2476 = vmatprep.subr.bf16.mxu0 0
    %2477 = vmatpush1.bf16.msra.mxu0 0
    %2478 = vmatprep.subr.bf16.mxu0 0
    %2479 = vmatpush1.bf16.msra.mxu0 0
    %2480 = vmatprep.subr.bf16.mxu0 0
    %2481 = vmatpush1.bf16.msra.mxu0 0
    %2482 = vmatprep.subr.bf16.mxu0 0
    %2483 = vmatpush1.bf16.msra.mxu0 0
    %2484 = vmatprep.subr.bf16.mxu0 0
    %2485 = vmatpush1.bf16.msra.mxu0 0
    %2486 = vmatprep.subr.bf16.mxu0 0
    %2487 = vmatpush1.bf16.msra.mxu0 0
    %2488 = vmatprep.subr.bf16.mxu0 0
    %2489 = vmatpush1.bf16.msra.mxu0 0
    %2490 = vmatprep.subr.bf16.mxu0 0
    %2491 = vmatpush1.bf16.msra.mxu0 0
    %2492 = vmatprep.subr.bf16.mxu0 0
    %2493 = vmatpush1.bf16.msra.mxu0 0
    %2494 = vmatprep.subr.bf16.mxu0 0
    %2495 = vmatpush1.bf16.msra.mxu0 0
    %2496 = vmatprep.subr.bf16.mxu0 0
    %2497 = vmatpush1.bf16.msra.mxu0 0
    %2498 = vmatprep.subr.bf16.mxu0 0
    %2499 = vmatpush1.bf16.msra.mxu0 0
    %2500 = vmatprep.subr.bf16.mxu0 0
    %2501 = vmatpush1.bf16.msra.mxu0 0
    %2502 = vmatprep.subr.bf16.mxu0 0
    %2503 = vmatpush1.bf16.msra.mxu0 0
    %2504 = vmatprep.mubr.bf16.mxu0 0
    %2505 = vmatmul.mubr.bf16.gmra.mrb[0].mxu0 %v2470
    %v2506 = vpop.f32.mrb[0].mxu0
    %v2507 = vadd.f32 0.0, %v2506
    %v2508 = vpop.f32.mrb[0].mxu0
    %v2509 = vpop.f32.mrb[0].mxu0
    %v2510 = vpop.f32.mrb[0].mxu0
    %2511 = vdwg.mxu0
    %v2512 = vadd.f32 %v2364, %v2507
    %v2513 = vxor.u32 %v2512, 2147483648
    %v2514 = vmul.f32 %v2513, 1.442695
    %v2515 = vpow.pop %v2514
    %v2516 = vadd.f32 %v2515, 1.0
    %v2517 = vrcp.pop %v2516
    %v2518 = vmul.f32 1.0, %v2517
    %v2519 = vtanh.pop %v2512
    %v2520 = vmul.f32 %v2518, %v1937
    %2522 = vrot.lane.b32.xlu0 %v2519, 64
    %v2523 = vpop.permute.xlu0 %2522
    %v2525 = vmul.f32 %v2518, %v2523
    %2527 = vrot.lane.b32.xlu0 %v2525, 32
    %v2528 = vpop.permute.xlu0 %2527
    %v2530 = vadd.f32 %v2520, %v2528
    %v2531 = vtanh.pop %v2530
    %2533 = vrot.lane.b32.xlu0 %v2531, 64
    %v2534 = vpop.permute.xlu0 %2533
    %v2536 = vmul.f32 %v2518, %v2534
    %v2537 = vpack.c.bf16 %v2452, %v2452
    %2539 = vrot.lane.b32.xlu0 %v2537, 32
    %v2540 = vpop.permute.xlu0 %2539
    %v2542 = vsel %vm790, %v2540, 0
    %2544 = vmatprep.subr.bf16.mxu0 0
    %2545 = vmatpush1.bf16.msra.mxu0 %v2381
    %2546 = vmatprep.subr.bf16.mxu0 0
    %2547 = vmatpush1.bf16.msra.mxu0 %v2382
    %2548 = vmatprep.subr.bf16.mxu0 0
    %2549 = vmatpush1.bf16.msra.mxu0 0
    %2550 = vmatprep.subr.bf16.mxu0 0
    %2551 = vmatpush1.bf16.msra.mxu0 0
    %2552 = vmatprep.subr.bf16.mxu0 0
    %2553 = vmatpush1.bf16.msra.mxu0 0
    %2554 = vmatprep.subr.bf16.mxu0 0
    %2555 = vmatpush1.bf16.msra.mxu0 0
    %2556 = vmatprep.subr.bf16.mxu0 0
    %2557 = vmatpush1.bf16.msra.mxu0 0
    %2558 = vmatprep.subr.bf16.mxu0 0
    %2559 = vmatpush1.bf16.msra.mxu0 0
    %2560 = vmatprep.subr.bf16.mxu0 0
    %2561 = vmatpush1.bf16.msra.mxu0 0
    %2562 = vmatprep.subr.bf16.mxu0 0
    %2563 = vmatpush1.bf16.msra.mxu0 0
    %2564 = vmatprep.subr.bf16.mxu0 0
    %2565 = vmatpush1.bf16.msra.mxu0 0
    %2566 = vmatprep.subr.bf16.mxu0 0
    %2567 = vmatpush1.bf16.msra.mxu0 0
    %2568 = vmatprep.subr.bf16.mxu0 0
    %2569 = vmatpush1.bf16.msra.mxu0 0
    %2570 = vmatprep.subr.bf16.mxu0 0
    %2571 = vmatpush1.bf16.msra.mxu0 0
    %2572 = vmatprep.subr.bf16.mxu0 0
    %2573 = vmatpush1.bf16.msra.mxu0 0
    %2574 = vmatprep.subr.bf16.mxu0 0
    %2575 = vmatpush1.bf16.msra.mxu0 0
    %2576 = vmatprep.mubr.bf16.mxu0 0
    %2577 = vmatmul.mubr.bf16.gmra.mrb[0].mxu0 %v2542
    %v2578 = vpop.f32.mrb[0].mxu0
    %v2579 = vadd.f32 0.0, %v2578
    %v2580 = vpop.f32.mrb[0].mxu0
    %v2581 = vpop.f32.mrb[0].mxu0
    %v2582 = vpop.f32.mrb[0].mxu0
    %2583 = vdwg.mxu0
    %v2584 = vadd.f32 %v2060, %v2579
    %v2585 = vxor.u32 %v2584, 2147483648
    %v2586 = vmul.f32 %v2585, 1.442695
    %v2587 = vpow.pop %v2586
    %v2588 = vadd.f32 %v2587, 1.0
    %v2589 = vrcp.pop %v2588
    %v2590 = vmul.f32 1.0, %v2589
    %v2591 = vtanh.pop %v2584
    %v2592 = vmul.f32 %v2590, %v2446
    %2594 = vrot.lane.b32.xlu0 %v2591, 64
    %v2595 = vpop.permute.xlu0 %2594
    %v2597 = vmul.f32 %v2590, %v2595
    %2599 = vrot.lane.b32.xlu0 %v2597, 32
    %v2600 = vpop.permute.xlu0 %2599
    %v2602 = vadd.f32 %v2592, %v2600
    %v2603 = vtanh.pop %v2602
    %2605 = vrot.lane.b32.xlu0 %v2603, 64
    %v2606 = vpop.permute.xlu0 %2605
    %v2608 = vmul.f32 %v2590, %v2606
    %v2609 = vpack.c.bf16 %v2608, %v2608
    %2611 = vrot.lane.b32.xlu0 %v2609, 32
    %v2612 = vpop.permute.xlu0 %2611
    %v2614 = vsel %vm790, %v2612, 0
    %2616 = vmatprep.subr.bf16.mxu0 0
    %2617 = vmatpush1.bf16.msra.mxu0 %v2381
    %2618 = vmatprep.subr.bf16.mxu0 0
    %2619 = vmatpush1.bf16.msra.mxu0 %v2382
    %2620 = vmatprep.subr.bf16.mxu0 0
    %2621 = vmatpush1.bf16.msra.mxu0 0
    %2622 = vmatprep.subr.bf16.mxu0 0
    %2623 = vmatpush1.bf16.msra.mxu0 0
    %2624 = vmatprep.subr.bf16.mxu0 0
    %2625 = vmatpush1.bf16.msra.mxu0 0
    %2626 = vmatprep.subr.bf16.mxu0 0
    %2627 = vmatpush1.bf16.msra.mxu0 0
    %2628 = vmatprep.subr.bf16.mxu0 0
    %2629 = vmatpush1.bf16.msra.mxu0 0
    %2630 = vmatprep.subr.bf16.mxu0 0
    %2631 = vmatpush1.bf16.msra.mxu0 0
    %2632 = vmatprep.subr.bf16.mxu0 0
    %2633 = vmatpush1.bf16.msra.mxu0 0
    %2634 = vmatprep.subr.bf16.mxu0 0
    %2635 = vmatpush1.bf16.msra.mxu0 0
    %2636 = vmatprep.subr.bf16.mxu0 0
    %2637 = vmatpush1.bf16.msra.mxu0 0
    %2638 = vmatprep.subr.bf16.mxu0 0
    %2639 = vmatpush1.bf16.msra.mxu0 0
    %2640 = vmatprep.subr.bf16.mxu0 0
    %2641 = vmatpush1.bf16.msra.mxu0 0
    %2642 = vmatprep.subr.bf16.mxu0 0
    %2643 = vmatpush1.bf16.msra.mxu0 0
    %2644 = vmatprep.subr.bf16.mxu0 0
    %2645 = vmatpush1.bf16.msra.mxu0 0
    %2646 = vmatprep.subr.bf16.mxu0 0
    %2647 = vmatpush1.bf16.msra.mxu0 0
    %2648 = vmatprep.mubr.bf16.mxu0 0
    %2649 = vmatmul.mubr.bf16.gmra.mrb[0].mxu0 %v2614
    %v2650 = vpop.f32.mrb[0].mxu0
    %v2651 = vadd.f32 0.0, %v2650
    %v2652 = vpop.f32.mrb[0].mxu0
    %v2653 = vpop.f32.mrb[0].mxu0
    %v2654 = vpop.f32.mrb[0].mxu0
    %2655 = vdwg.mxu0
    %v2656 = vadd.f32 %v2103, %v2651
    %v2657 = vxor.u32 %v2656, 2147483648
    %v2658 = vmul.f32 %v2657, 1.442695
    %v2659 = vpow.pop %v2658
    %v2660 = vadd.f32 %v2659, 1.0
    %v2661 = vrcp.pop %v2660
    %v2662 = vmul.f32 1.0, %v2661
    %v2663 = vtanh.pop %v2656
    %v2664 = vmul.f32 %v2662, %v2602
    %2666 = vrot.lane.b32.xlu0 %v2663, 64
    %v2667 = vpop.permute.xlu0 %2666
    %v2669 = vmul.f32 %v2662, %v2667
    %2671 = vrot.lane.b32.xlu0 %v2669, 32
    %v2672 = vpop.permute.xlu0 %2671
    %v2674 = vadd.f32 %v2664, %v2672
    %v2675 = vtanh.pop %v2674
    %2677 = vrot.lane.b32.xlu0 %v2675, 64
    %v2678 = vpop.permute.xlu0 %2677
    %v2680 = vmul.f32 %v2662, %v2678
    %v2681 = vpack.c.bf16 %v2680, %v2680
    %2683 = vrot.lane.b32.xlu0 %v2681, 32
    %v2684 = vpop.permute.xlu0 %2683
    %v2686 = vsel %vm790, %v2684, 0
    %2688 = vmatprep.subr.bf16.mxu0 0
    %2689 = vmatpush1.bf16.msra.mxu0 %v2381
    %2690 = vmatprep.subr.bf16.mxu0 0
    %2691 = vmatpush1.bf16.msra.mxu0 %v2382
    %2692 = vmatprep.subr.bf16.mxu0 0
    %2693 = vmatpush1.bf16.msra.mxu0 0
    %2694 = vmatprep.subr.bf16.mxu0 0
    %2695 = vmatpush1.bf16.msra.mxu0 0
    %2696 = vmatprep.subr.bf16.mxu0 0
    %2697 = vmatpush1.bf16.msra.mxu0 0
    %2698 = vmatprep.subr.bf16.mxu0 0
    %2699 = vmatpush1.bf16.msra.mxu0 0
    %2700 = vmatprep.subr.bf16.mxu0 0
    %2701 = vmatpush1.bf16.msra.mxu0 0
    %2702 = vmatprep.subr.bf16.mxu0 0
    %2703 = vmatpush1.bf16.msra.mxu0 0
    %2704 = vmatprep.subr.bf16.mxu0 0
    %2705 = vmatpush1.bf16.msra.mxu0 0
    %2706 = vmatprep.subr.bf16.mxu0 0
    %2707 = vmatpush1.bf16.msra.mxu0 0
    %2708 = vmatprep.subr.bf16.mxu0 0
    %2709 = vmatpush1.bf16.msra.mxu0 0
    %2710 = vmatprep.subr.bf16.mxu0 0
    %2711 = vmatpush1.bf16.msra.mxu0 0
    %2712 = vmatprep.subr.bf16.mxu0 0
    %2713 = vmatpush1.bf16.msra.mxu0 0
    %2714 = vmatprep.subr.bf16.mxu0 0
    %2715 = vmatpush1.bf16.msra.mxu0 0
    %2716 = vmatprep.subr.bf16.mxu0 0
    %2717 = vmatpush1.bf16.msra.mxu0 0
    %2718 = vmatprep.subr.bf16.mxu0 0
    %2719 = vmatpush1.bf16.msra.mxu0 0
    %2720 = vmatprep.mubr.bf16.mxu0 0
    %2721 = vmatmul.mubr.bf16.gmra.mrb[0].mxu0 %v2686
    %v2722 = vpop.f32.mrb[0].mxu0
    %v2723 = vadd.f32 0.0, %v2722
    %v2724 = vpop.f32.mrb[0].mxu0
    %v2725 = vpop.f32.mrb[0].mxu0
    %v2726 = vpop.f32.mrb[0].mxu0
    %2727 = vdwg.mxu0
    %v2728 = vadd.f32 %v2146, %v2723
    %v2729 = vxor.u32 %v2728, 2147483648
    %v2730 = vmul.f32 %v2729, 1.442695
    %v2731 = vpow.pop %v2730
    %v2732 = vadd.f32 %v2731, 1.0
    %v2733 = vrcp.pop %v2732
    %v2734 = vmul.f32 1.0, %v2733
    %v2735 = vtanh.pop %v2728
    %v2736 = vmul.f32 %v2734, %v2674
    %2738 = vrot.lane.b32.xlu0 %v2735, 64
    %v2739 = vpop.permute.xlu0 %2738
    %v2741 = vmul.f32 %v2734, %v2739
    %2743 = vrot.lane.b32.xlu0 %v2741, 32
    %v2744 = vpop.permute.xlu0 %2743
    %v2746 = vadd.f32 %v2736, %v2744
    %v2747 = vtanh.pop %v2746
    %2749 = vrot.lane.b32.xlu0 %v2747, 64
    %v2750 = vpop.permute.xlu0 %2749
    %v2752 = vmul.f32 %v2734, %v2750
    %v2753 = vpack.c.bf16 %v2752, %v2752
    %2755 = vrot.lane.b32.xlu0 %v2753, 32
    %v2756 = vpop.permute.xlu0 %2755
    %v2758 = vsel %vm790, %v2756, 0
    %2760 = vmatprep.subr.bf16.mxu0 0
    %2761 = vmatpush1.bf16.msra.mxu0 %v2381
    %2762 = vmatprep.subr.bf16.mxu0 0
    %2763 = vmatpush1.bf16.msra.mxu0 %v2382
    %2764 = vmatprep.subr.bf16.mxu0 0
    %2765 = vmatpush1.bf16.msra.mxu0 0
    %2766 = vmatprep.subr.bf16.mxu0 0
    %2767 = vmatpush1.bf16.msra.mxu0 0
    %2768 = vmatprep.subr.bf16.mxu0 0
    %2769 = vmatpush1.bf16.msra.mxu0 0
    %2770 = vmatprep.subr.bf16.mxu0 0
    %2771 = vmatpush1.bf16.msra.mxu0 0
    %2772 = vmatprep.subr.bf16.mxu0 0
    %2773 = vmatpush1.bf16.msra.mxu0 0
    %2774 = vmatprep.subr.bf16.mxu0 0
    %2775 = vmatpush1.bf16.msra.mxu0 0
    %2776 = vmatprep.subr.bf16.mxu0 0
    %2777 = vmatpush1.bf16.msra.mxu0 0
    %2778 = vmatprep.subr.bf16.mxu0 0
    %2779 = vmatpush1.bf16.msra.mxu0 0
    %2780 = vmatprep.subr.bf16.mxu0 0
    %2781 = vmatpush1.bf16.msra.mxu0 0
    %2782 = vmatprep.subr.bf16.mxu0 0
    %2783 = vmatpush1.bf16.msra.mxu0 0
    %2784 = vmatprep.subr.bf16.mxu0 0
    %2785 = vmatpush1.bf16.msra.mxu0 0
    %2786 = vmatprep.subr.bf16.mxu0 0
    %2787 = vmatpush1.bf16.msra.mxu0 0
    %2788 = vmatprep.subr.bf16.mxu0 0
    %2789 = vmatpush1.bf16.msra.mxu0 0
    %2790 = vmatprep.subr.bf16.mxu0 0
    %2791 = vmatpush1.bf16.msra.mxu0 0
    %2792 = vmatprep.mubr.bf16.mxu0 0
    %2793 = vmatmul.mubr.bf16.gmra.mrb[0].mxu0 %v2758
    %v2794 = vpop.f32.mrb[0].mxu0
    %v2795 = vadd.f32 0.0, %v2794
    %v2796 = vpop.f32.mrb[0].mxu0
    %v2797 = vpop.f32.mrb[0].mxu0
    %v2798 = vpop.f32.mrb[0].mxu0
    %2799 = vdwg.mxu0
    %v2800 = vadd.f32 %v2189, %v2795
    %v2801 = vxor.u32 %v2800, 2147483648
    %v2802 = vmul.f32 %v2801, 1.442695
    %v2803 = vpow.pop %v2802
    %v2804 = vadd.f32 %v2803, 1.0
    %v2805 = vrcp.pop %v2804
    %v2806 = vmul.f32 1.0, %v2805
    %v2807 = vtanh.pop %v2800
    %v2808 = vmul.f32 %v2806, %v2746
    %2810 = vrot.lane.b32.xlu0 %v2807, 64
    %v2811 = vpop.permute.xlu0 %2810
    %v2813 = vmul.f32 %v2806, %v2811
    %2815 = vrot.lane.b32.xlu0 %v2813, 32
    %v2816 = vpop.permute.xlu0 %2815
    %v2818 = vadd.f32 %v2808, %v2816
    %v2819 = vtanh.pop %v2818
    %2821 = vrot.lane.b32.xlu0 %v2819, 64
    %v2822 = vpop.permute.xlu0 %2821
    %v2824 = vmul.f32 %v2806, %v2822
    %v2825 = vpack.c.bf16 %v2824, %v2824
    %2827 = vrot.lane.b32.xlu0 %v2825, 32
    %v2828 = vpop.permute.xlu0 %2827
    %v2830 = vsel %vm790, %v2828, 0
    %2832 = vmatprep.subr.bf16.mxu0 0
    %2833 = vmatpush1.bf16.msra.mxu0 %v2381
    %2834 = vmatprep.subr.bf16.mxu0 0
    %2835 = vmatpush1.bf16.msra.mxu0 %v2382
    %2836 = vmatprep.subr.bf16.mxu0 0
    %2837 = vmatpush1.bf16.msra.mxu0 0
    %2838 = vmatprep.subr.bf16.mxu0 0
    %2839 = vmatpush1.bf16.msra.mxu0 0
    %2840 = vmatprep.subr.bf16.mxu0 0
    %2841 = vmatpush1.bf16.msra.mxu0 0
    %2842 = vmatprep.subr.bf16.mxu0 0
    %2843 = vmatpush1.bf16.msra.mxu0 0
    %2844 = vmatprep.subr.bf16.mxu0 0
    %2845 = vmatpush1.bf16.msra.mxu0 0
    %2846 = vmatprep.subr.bf16.mxu0 0
    %2847 = vmatpush1.bf16.msra.mxu0 0
    %2848 = vmatprep.subr.bf16.mxu0 0
    %2849 = vmatpush1.bf16.msra.mxu0 0
    %2850 = vmatprep.subr.bf16.mxu0 0
    %2851 = vmatpush1.bf16.msra.mxu0 0
    %2852 = vmatprep.subr.bf16.mxu0 0
    %2853 = vmatpush1.bf16.msra.mxu0 0
    %2854 = vmatprep.subr.bf16.mxu0 0
    %2855 = vmatpush1.bf16.msra.mxu0 0
    %2856 = vmatprep.subr.bf16.mxu0 0
    %2857 = vmatpush1.bf16.msra.mxu0 0
    %2858 = vmatprep.subr.bf16.mxu0 0
    %2859 = vmatpush1.bf16.msra.mxu0 0
    %2860 = vmatprep.subr.bf16.mxu0 0
    %2861 = vmatpush1.bf16.msra.mxu0 0
    %2862 = vmatprep.subr.bf16.mxu0 0
    %2863 = vmatpush1.bf16.msra.mxu0 0
    %2864 = vmatprep.mubr.bf16.mxu0 0
    %2865 = vmatmul.mubr.bf16.gmra.mrb[0].mxu0 %v2830
    %v2866 = vpop.f32.mrb[0].mxu0
    %v2867 = vadd.f32 0.0, %v2866
    %v2868 = vpop.f32.mrb[0].mxu0
    %v2869 = vpop.f32.mrb[0].mxu0
    %v2870 = vpop.f32.mrb[0].mxu0
    %2871 = vdwg.mxu0
    %v2872 = vadd.f32 %v2232, %v2867
    %v2873 = vxor.u32 %v2872, 2147483648
    %v2874 = vmul.f32 %v2873, 1.442695
    %v2875 = vpow.pop %v2874
    %v2876 = vadd.f32 %v2875, 1.0
    %v2877 = vrcp.pop %v2876
    %v2878 = vmul.f32 1.0, %v2877
    %v2879 = vtanh.pop %v2872
    %v2880 = vmul.f32 %v2878, %v2818
    %2882 = vrot.lane.b32.xlu0 %v2879, 64
    %v2883 = vpop.permute.xlu0 %2882
    %v2885 = vmul.f32 %v2878, %v2883
    %2887 = vrot.lane.b32.xlu0 %v2885, 32
    %v2888 = vpop.permute.xlu0 %2887
    %v2890 = vadd.f32 %v2880, %v2888
    %v2891 = vtanh.pop %v2890
    %2893 = vrot.lane.b32.xlu0 %v2891, 64
    %v2894 = vpop.permute.xlu0 %2893
    %v2896 = vmul.f32 %v2878, %v2894
    %v2897 = vpack.c.bf16 %v2896, %v2896
    %2899 = vrot.lane.b32.xlu0 %v2897, 32
    %v2900 = vpop.permute.xlu0 %2899
    %v2902 = vsel %vm790, %v2900, 0
    %2904 = vmatprep.subr.bf16.mxu0 0
    %2905 = vmatpush1.bf16.msra.mxu0 %v2381
    %2906 = vmatprep.subr.bf16.mxu0 0
    %2907 = vmatpush1.bf16.msra.mxu0 %v2382
    %2908 = vmatprep.subr.bf16.mxu0 0
    %2909 = vmatpush1.bf16.msra.mxu0 0
    %2910 = vmatprep.subr.bf16.mxu0 0
    %2911 = vmatpush1.bf16.msra.mxu0 0
    %2912 = vmatprep.subr.bf16.mxu0 0
    %2913 = vmatpush1.bf16.msra.mxu0 0
    %2914 = vmatprep.subr.bf16.mxu0 0
    %2915 = vmatpush1.bf16.msra.mxu0 0
    %2916 = vmatprep.subr.bf16.mxu0 0
    %2917 = vmatpush1.bf16.msra.mxu0 0
    %2918 = vmatprep.subr.bf16.mxu0 0
    %2919 = vmatpush1.bf16.msra.mxu0 0
    %2920 = vmatprep.subr.bf16.mxu0 0
    %2921 = vmatpush1.bf16.msra.mxu0 0
    %2922 = vmatprep.subr.bf16.mxu0 0
    %2923 = vmatpush1.bf16.msra.mxu0 0
    %2924 = vmatprep.subr.bf16.mxu0 0
    %2925 = vmatpush1.bf16.msra.mxu0 0
    %2926 = vmatprep.subr.bf16.mxu0 0
    %2927 = vmatpush1.bf16.msra.mxu0 0
    %2928 = vmatprep.subr.bf16.mxu0 0
    %2929 = vmatpush1.bf16.msra.mxu0 0
    %2930 = vmatprep.subr.bf16.mxu0 0
    %2931 = vmatpush1.bf16.msra.mxu0 0
    %2932 = vmatprep.subr.bf16.mxu0 0
    %2933 = vmatpush1.bf16.msra.mxu0 0
    %2934 = vmatprep.subr.bf16.mxu0 0
    %2935 = vmatpush1.bf16.msra.mxu0 0
    %2936 = vmatprep.mubr.bf16.mxu0 0
    %2937 = vmatmul.mubr.bf16.gmra.mrb[0].mxu0 %v2902
    %v2938 = vpop.f32.mrb[0].mxu0
    %v2939 = vadd.f32 0.0, %v2938
    %v2940 = vpop.f32.mrb[0].mxu0
    %v2941 = vpop.f32.mrb[0].mxu0
    %v2942 = vpop.f32.mrb[0].mxu0
    %2943 = vdwg.mxu0
    %v2944 = vadd.f32 %v2275, %v2939
    %v2945 = vxor.u32 %v2944, 2147483648
    %v2946 = vmul.f32 %v2945, 1.442695
    %v2947 = vpow.pop %v2946
    %v2948 = vadd.f32 %v2947, 1.0
    %v2949 = vrcp.pop %v2948
    %v2950 = vmul.f32 1.0, %v2949
    %v2951 = vtanh.pop %v2944
    %v2952 = vmul.f32 %v2950, %v2890
    %2954 = vrot.lane.b32.xlu0 %v2951, 64
    %v2955 = vpop.permute.xlu0 %2954
    %v2957 = vmul.f32 %v2950, %v2955
    %2959 = vrot.lane.b32.xlu0 %v2957, 32
    %v2960 = vpop.permute.xlu0 %2959
    %v2962 = vadd.f32 %v2952, %v2960
    %v2963 = vtanh.pop %v2962
    %2965 = vrot.lane.b32.xlu0 %v2963, 64
    %v2966 = vpop.permute.xlu0 %2965
    %v2968 = vmul.f32 %v2950, %v2966
    %v2969 = vpack.c.bf16 %v2968, %v2968
    %2971 = vrot.lane.b32.xlu0 %v2969, 32
    %v2972 = vpop.permute.xlu0 %2971
    %v2974 = vsel %vm790, %v2972, 0
    %2976 = vmatprep.subr.bf16.mxu0 0
    %2977 = vmatpush1.bf16.msra.mxu0 %v2381
    %2978 = vmatprep.subr.bf16.mxu0 0
    %2979 = vmatpush1.bf16.msra.mxu0 %v2382
    %2980 = vmatprep.subr.bf16.mxu0 0
    %2981 = vmatpush1.bf16.msra.mxu0 0
    %2982 = vmatprep.subr.bf16.mxu0 0
    %2983 = vmatpush1.bf16.msra.mxu0 0
    %2984 = vmatprep.subr.bf16.mxu0 0
    %2985 = vmatpush1.bf16.msra.mxu0 0
    %2986 = vmatprep.subr.bf16.mxu0 0
    %2987 = vmatpush1.bf16.msra.mxu0 0
    %2988 = vmatprep.subr.bf16.mxu0 0
    %2989 = vmatpush1.bf16.msra.mxu0 0
    %2990 = vmatprep.subr.bf16.mxu0 0
    %2991 = vmatpush1.bf16.msra.mxu0 0
    %2992 = vmatprep.subr.bf16.mxu0 0
    %2993 = vmatpush1.bf16.msra.mxu0 0
    %2994 = vmatprep.subr.bf16.mxu0 0
    %2995 = vmatpush1.bf16.msra.mxu0 0
    %2996 = vmatprep.subr.bf16.mxu0 0
    %2997 = vmatpush1.bf16.msra.mxu0 0
    %2998 = vmatprep.subr.bf16.mxu0 0
    %2999 = vmatpush1.bf16.msra.mxu0 0
    %3000 = vmatprep.subr.bf16.mxu0 0
    %3001 = vmatpush1.bf16.msra.mxu0 0
    %3002 = vmatprep.subr.bf16.mxu0 0
    %3003 = vmatpush1.bf16.msra.mxu0 0
    %3004 = vmatprep.subr.bf16.mxu0 0
    %3005 = vmatpush1.bf16.msra.mxu0 0
    %3006 = vmatprep.subr.bf16.mxu0 0
    %3007 = vmatpush1.bf16.msra.mxu0 0
    %3008 = vmatprep.mubr.bf16.mxu0 0
    %3009 = vmatmul.mubr.bf16.gmra.mrb[0].mxu0 %v2974
    %v3010 = vpop.f32.mrb[0].mxu0
    %v3011 = vadd.f32 0.0, %v3010
    %v3012 = vpop.f32.mrb[0].mxu0
    %v3013 = vpop.f32.mrb[0].mxu0
    %v3014 = vpop.f32.mrb[0].mxu0
    %3015 = vdwg.mxu0
    %v3016 = vadd.f32 %v2318, %v3011
    %v3017 = vxor.u32 %v3016, 2147483648
    %v3018 = vmul.f32 %v3017, 1.442695
    %v3019 = vpow.pop %v3018
    %v3020 = vadd.f32 %v3019, 1.0
    %v3021 = vrcp.pop %v3020
    %v3022 = vmul.f32 1.0, %v3021
    %v3023 = vtanh.pop %v3016
    %v3024 = vmul.f32 %v3022, %v2962
    %3026 = vrot.lane.b32.xlu0 %v3023, 64
    %v3027 = vpop.permute.xlu0 %3026
    %v3029 = vmul.f32 %v3022, %v3027
    %3031 = vrot.lane.b32.xlu0 %v3029, 32
    %v3032 = vpop.permute.xlu0 %3031
    %v3034 = vadd.f32 %v3024, %v3032
    %v3035 = vtanh.pop %v3034
    %3037 = vrot.lane.b32.xlu0 %v3035, 64
    %v3038 = vpop.permute.xlu0 %3037
    %v3040 = vmul.f32 %v3022, %v3038
    %3042 = vrot.lane.b32.xlu0 %v1871, 32
    %v3043 = vpop.permute.xlu0 %3042
    %3046 = vrot.lane.b32.xlu0 %v935, 64
    %v3047 = vpop.permute.xlu0 %3046
    %3050 = vrot.lane.b32.xlu0 %v3040, 96
    %v3051 = vpop.permute.xlu0 %3050
    %v3053 = vsel %vm790, %v3043, %v3047
    %vm3054 = vcmask 523264
    %v3055 = vsel %vm3054, %v3053, %v3051
    %vm3056 = vcmask 785408
    %v3057 = vsel %vm3056, %v3055, %v2536
    %v3058 = vld [vmem:[%s7] sm:$0xff]
    %v3059 = vld [vmem:[%s7 + $0x8] sm:$0xff]
    %v3060 = vld [vmem:[%s7 + $0x10] sm:$0xff]
    %v3061 = vld [vmem:[%s7 + $0x18] sm:$0xff]
    %v3062 = vld [vmem:[%s7 + $0x20] sm:$0xff]
    %v3063 = vld [vmem:[%s7 + $0x28] sm:$0xff]
    %v3064 = vld [vmem:[%s7 + $0x30] sm:$0xff]
    %v3065 = vld [vmem:[%s7 + $0x38] sm:$0xff]
    %v3066 = vld [vmem:[%s7 + $0x40] sm:$0xff]
    %v3067 = vld [vmem:[%s7 + $0x48] sm:$0xff]
    %v3068 = vld [vmem:[%s7 + $0x50] sm:$0xff]
    %v3069 = vld [vmem:[%s7 + $0x58] sm:$0xff]
    %v3070 = vld [vmem:[%s7 + $0x60] sm:$0xff]
    %v3071 = vld [vmem:[%s7 + $0x68] sm:$0xff]
    %v3072 = vld [vmem:[%s7 + $0x70] sm:$0xff]
    %v3073 = vld [vmem:[%s7 + $0x78] sm:$0xff]
    %v3074 = vld [vmem:[%s8] sm:$0x1]
    %v3076 = vlaneseq
    %v3077 = vshrl.u32 %v3076, 7
    %v3078 = vsub.s32 0, %v3077
    %v3079 = vrot.slane %v3074, %v3078
    %3081 = vmatprep.subr.mxu0 0.0
    %3082 = vmatpush1.msra.mxu0 %v3058
    %3083 = vmatprep.subr.mxu0 0.0
    %3084 = vmatpush1.msra.mxu0 %v3059
    %3085 = vmatprep.subr.mxu0 0.0
    %3086 = vmatpush1.msra.mxu0 %v3060
    %3087 = vmatprep.subr.mxu0 0.0
    %3088 = vmatpush1.msra.mxu0 %v3061
    %3089 = vmatprep.subr.mxu0 0.0
    %3090 = vmatpush1.msra.mxu0 %v3062
    %3091 = vmatprep.subr.mxu0 0.0
    %3092 = vmatpush1.msra.mxu0 %v3063
    %3093 = vmatprep.subr.mxu0 0.0
    %3094 = vmatpush1.msra.mxu0 %v3064
    %3095 = vmatprep.subr.mxu0 0.0
    %3096 = vmatpush1.msra.mxu0 %v3065
    %3097 = vmatprep.subr.mxu0 0.0
    %3098 = vmatpush1.msra.mxu0 %v3066
    %3099 = vmatprep.subr.mxu0 0.0
    %3100 = vmatpush1.msra.mxu0 %v3067
    %3101 = vmatprep.subr.mxu0 0.0
    %3102 = vmatpush1.msra.mxu0 %v3068
    %3103 = vmatprep.subr.mxu0 0.0
    %3104 = vmatpush1.msra.mxu0 %v3069
    %3105 = vmatprep.subr.mxu0 0.0
    %3106 = vmatpush1.msra.mxu0 %v3070
    %3107 = vmatprep.subr.mxu0 0.0
    %3108 = vmatpush1.msra.mxu0 %v3071
    %3109 = vmatprep.subr.mxu0 0.0
    %3110 = vmatpush1.msra.mxu0 %v3072
    %3111 = vmatprep.subr.mxu0 0.0
    %3112 = vmatpush1.msra.mxu0 %v3073
    %3113 = vmatprep.subr.mxu0 0.0
    %3114 = vmatpush1.msra.mxu0 0.0
    %3115 = vmatprep.subr.mxu0 0.0
    %3116 = vmatpush1.msra.mxu0 0.0
    %3117 = vmatprep.subr.mxu0 0.0
    %3118 = vmatpush1.msra.mxu0 0.0
    %3119 = vmatprep.subr.mxu0 0.0
    %3120 = vmatpush1.msra.mxu0 0.0
    %3121 = vmatprep.subr.mxu0 0.0
    %3122 = vmatpush1.msra.mxu0 0.0
    %3123 = vmatprep.subr.mxu0 0.0
    %3124 = vmatpush1.msra.mxu0 0.0
    %3125 = vmatprep.subr.mxu0 0.0
    %3126 = vmatpush1.msra.mxu0 0.0
    %3127 = vmatprep.subr.mxu0 0.0
    %3128 = vmatpush1.msra.mxu0 0.0
    %3129 = vmatprep.subr.mxu0 0.0
    %3130 = vmatpush1.msra.mxu0 0.0
    %3131 = vmatprep.subr.mxu0 0.0
    %3132 = vmatpush1.msra.mxu0 0.0
    %3133 = vmatprep.subr.mxu0 0.0
    %3134 = vmatpush1.msra.mxu0 0.0
    %3135 = vmatprep.subr.mxu0 0.0
    %3136 = vmatpush1.msra.mxu0 0.0
    %3137 = vmatprep.subr.mxu0 0.0
    %3138 = vmatpush1.msra.mxu0 0.0
    %3139 = vmatprep.subr.mxu0 0.0
    %3140 = vmatpush1.msra.mxu0 0.0
    %3141 = vmatprep.subr.mxu0 0.0
    %3142 = vmatpush1.msra.mxu0 0.0
    %3143 = vmatprep.subr.mxu0 0.0
    %3144 = vmatpush1.msra.mxu0 0.0
    %3145 = vmatprep.mubr.f32.mxu0 0.0
    %3146 = vmatmul.mubr.f32.gmra.mrb[0].mxu0 %v3057
    %v3147 = vpop.f32.mrb[0].mxu0
    %v3148 = vadd.f32 %v3079, %v3147
    %v3149 = vpop.f32.mrb[0].mxu0
    %3150 = vdwg.mxu0
    %v3151 = vld [vmem:[%s9] sm:$0xff]
    %v3152 = vld [vmem:[%s9 + $0x8] sm:$0xff]
    %v3153 = vld [vmem:[%s9 + $0x10] sm:$0xff]
    %v3154 = vld [vmem:[%s9 + $0x18] sm:$0xff]
    %v3155 = vld [vmem:[%s10] sm:$0x1]
    %v3157 = vlaneseq
    %v3158 = vshrl.u32 %v3157, 7
    %v3159 = vsub.s32 0, %v3158
    %v3160 = vrot.slane %v3155, %v3159
    %v3163 = vsel %vm790, %v3148, 0
    %3165 = vmatprep.subr.mxu0 0.0
    %3166 = vmatpush1.msra.mxu0 %v3151
    %3167 = vmatprep.subr.mxu0 0.0
    %3168 = vmatpush1.msra.mxu0 %v3152
    %3169 = vmatprep.subr.mxu0 0.0
    %3170 = vmatpush1.msra.mxu0 %v3153
    %3171 = vmatprep.subr.mxu0 0.0
    %3172 = vmatpush1.msra.mxu0 %v3154
    %3173 = vmatprep.subr.mxu0 0.0
    %3174 = vmatpush1.msra.mxu0 0.0
    %3175 = vmatprep.subr.mxu0 0.0
    %3176 = vmatpush1.msra.mxu0 0.0
    %3177 = vmatprep.subr.mxu0 0.0
    %3178 = vmatpush1.msra.mxu0 0.0
    %3179 = vmatprep.subr.mxu0 0.0
    %3180 = vmatpush1.msra.mxu0 0.0
    %3181 = vmatprep.subr.mxu0 0.0
    %3182 = vmatpush1.msra.mxu0 0.0
    %3183 = vmatprep.subr.mxu0 0.0
    %3184 = vmatpush1.msra.mxu0 0.0
    %3185 = vmatprep.subr.mxu0 0.0
    %3186 = vmatpush1.msra.mxu0 0.0
    %3187 = vmatprep.subr.mxu0 0.0
    %3188 = vmatpush1.msra.mxu0 0.0
    %3189 = vmatprep.subr.mxu0 0.0
    %3190 = vmatpush1.msra.mxu0 0.0
    %3191 = vmatprep.subr.mxu0 0.0
    %3192 = vmatpush1.msra.mxu0 0.0
    %3193 = vmatprep.subr.mxu0 0.0
    %3194 = vmatpush1.msra.mxu0 0.0
    %3195 = vmatprep.subr.mxu0 0.0
    %3196 = vmatpush1.msra.mxu0 0.0
    %3197 = vmatprep.subr.mxu0 0.0
    %3198 = vmatpush1.msra.mxu0 0.0
    %3199 = vmatprep.subr.mxu0 0.0
    %3200 = vmatpush1.msra.mxu0 0.0
    %3201 = vmatprep.subr.mxu0 0.0
    %3202 = vmatpush1.msra.mxu0 0.0
    %3203 = vmatprep.subr.mxu0 0.0
    %3204 = vmatpush1.msra.mxu0 0.0
    %3205 = vmatprep.subr.mxu0 0.0
    %3206 = vmatpush1.msra.mxu0 0.0
    %3207 = vmatprep.subr.mxu0 0.0
    %3208 = vmatpush1.msra.mxu0 0.0
    %3209 = vmatprep.subr.mxu0 0.0
    %3210 = vmatpush1.msra.mxu0 0.0
    %3211 = vmatprep.subr.mxu0 0.0
    %3212 = vmatpush1.msra.mxu0 0.0
    %3213 = vmatprep.subr.mxu0 0.0
    %3214 = vmatpush1.msra.mxu0 0.0
    %3215 = vmatprep.subr.mxu0 0.0
    %3216 = vmatpush1.msra.mxu0 0.0
    %3217 = vmatprep.subr.mxu0 0.0
    %3218 = vmatpush1.msra.mxu0 0.0
    %3219 = vmatprep.subr.mxu0 0.0
    %3220 = vmatpush1.msra.mxu0 0.0
    %3221 = vmatprep.subr.mxu0 0.0
    %3222 = vmatpush1.msra.mxu0 0.0
    %3223 = vmatprep.subr.mxu0 0.0
    %3224 = vmatpush1.msra.mxu0 0.0
    %3225 = vmatprep.subr.mxu0 0.0
    %3226 = vmatpush1.msra.mxu0 0.0
    %3227 = vmatprep.subr.mxu0 0.0
    %3228 = vmatpush1.msra.mxu0 0.0
    %3229 = vmatprep.mubr.f32.mxu0 0.0
    %3230 = vmatmul.mubr.f32.gmra.mrb[0].mxu0 %v3163
    %v3231 = vpop.f32.mrb[0].mxu0
    %v3232 = vadd.f32 %v3160, %v3231
    %v3233 = vpop.f32.mrb[0].mxu0
    %3234 = vdwg.mxu0
    %vm3235 = vcmask 25600
    %v3236 = vsel %vm3235, %v3232, -inf
    %3237 = vmax.xlane.f32.xlu0 %v3236
    %v3238 = vpop.xlane.xlu0 %3237
    %v3239 = vsub.f32 %v3232, %v3238
    %v3240 = vmul.f32 %v3239, 1.442695
    %v3241 = vpow.pop %v3240
    %v3242 = vsel %vm3235, %v3241, 0.0
    %3243 = vadd.xlane.f32.xlu0 %v3242
    %v3244 = vpop.xlane.xlu0 %3243
    %v3245 = vrcp.pop %v3244
    %v3246 = vmul.f32 %v3241, %v3245
    %3247 = vst.msk [vmem:[#allocation2] sm:$0x3] %vm3235, %v3246
    // Predicated region
    $region46: #{tpu_custom_call.1} parent=1 // pred_check
      _
    $region47: #{tpu_custom_call.1} parent=1 // pred_check_branch
      %3249 = sbr.rel (0) target = $region49
    $region48: #{tpu_custom_call.1} parent=1 // pred_region
      %s3251 = ssub.s32 32, 32
      %3252 = vsyncadd [#allocation3], %s3251
      %s3254 = sshll.u32 [#allocation2], 4
      %s3255 = int_to_ptr.vmem [resolvable:$true] %s3254
      %3257 = dma.vmem_to_hbm [thread:$0]  %s3255, 32, %s11, [#allocation3]
    $region49: #{tpu_custom_call.1} parent=1 // pred_fallthru
      _
    // Predicated region
    $region50: #{tpu_custom_call.1} parent=1 // pred_check
      _
    $region51: #{tpu_custom_call.1} parent=1 // pred_check_branch
      %3259 = sbr.rel (0) target = $region53
    $region52: #{tpu_custom_call.1} parent=1 // pred_region
      %3260 = dma.done [#allocation3], 32
    $region53: #{tpu_custom_call.1} parent=1 // pred_fallthru
      _
    %3261 = vsyncpa [#allocation3], 1

</llo_original>
